<compile_context>
chip_gen: v6e
topology: v6e:2x2x1
jax: 0.10.0
libtpu: 0.0.40
codegen_flags: <defaults>
</compile_context>

<pallas_src>
import jax
import jax.numpy as jnp
from jax.experimental import pallas as pl
from jax.experimental.pallas import tpu as pltpu

# ---------------- model config (small, deterministic) ----------------
B = 2          # batch
S_TXT = 4      # text tokens
S_IMG = 4      # image regions
S_ENC = S_TXT + S_IMG
S_DEC = 8      # decoder (GPT) sequence length
H = 32         # hidden size
N_HEADS = 4
D_HEAD = H // N_HEADS
FFN = 64
VOCAB = 64
VOCAB_PAD = 128      # lane-dense LM head / kernel output width (>= 128)
IMG_DIM = 16
EPS = 1e-5
NEG = -1e9

SLAB_W = 128         # width of the packed parameter slabs (lane-dense)

assert S_ENC & (S_ENC - 1) == 0, "in-kernel seg mask uses a power-of-two modulus"

# -------- static packing layout (derived from the config, not from data) --------
_MAT_SPEC = [  # (name, rows, cols): every row offset ends up a multiple of 8
    ("enc_txt_emb", VOCAB, H),
    ("enc_img_w", IMG_DIM, H),
    ("enc_pos", B * S_ENC, H),
    ("enc_wqkv", H, 3 * H),
    ("enc_wo", H, H),
    ("enc_w1", H, FFN),
    ("enc_w2", FFN, H),
    ("dec_tok_emb", VOCAB, H),
    ("dec_pos", B * S_DEC, H),
    ("dec_wqkv", H, 3 * H),
    ("dec_self_wo", H, H),
    ("dec_cross_wq", H, H),
    ("dec_cross_wkv", H, 2 * H),
    ("dec_cross_wo", H, H),
    ("dec_w1", H, FFN),
    ("dec_w2", FFN, H),
    ("dec_lm_w", H, VOCAB_PAD),
]
_VEC_SPEC = [  # (name, cols): one row each in the f32 bias/gain slab
    ("enc_ln1_g", H), ("enc_ln1_b", H),
    ("enc_ln2_g", H), ("enc_ln2_b", H),
    ("enc_lnf_g", H), ("enc_lnf_b", H),
    ("enc_bqkv", 3 * H), ("enc_bo", H),
    ("enc_img_b", H),
    ("enc_b1", FFN), ("enc_b2", H),
    ("dec_ln1_g", H), ("dec_ln1_b", H),
    ("dec_ln2_g", H), ("dec_ln2_b", H),
    ("dec_ln3_g", H), ("dec_ln3_b", H),
    ("dec_lnf_g", H), ("dec_lnf_b", H),
    ("dec_self_bqkv", 3 * H), ("dec_self_bo", H),
    ("dec_cross_bq", H), ("dec_cross_bkv", 2 * H), ("dec_cross_bo", H),
    ("dec_b1", FFN), ("dec_b2", H),
    ("dec_lm_b", VOCAB_PAD),
]


def _build_layouts():
    m_lay, off = {}, 0
    for name, r, c in _MAT_SPEC:
        assert off % 8 == 0 and c <= SLAB_W, (name, off, c)
        m_lay[name] = (off, r, c)
        off += r
    v_lay = {name: (i, c) for i, (name, c) in enumerate(_VEC_SPEC)}
    v_rows = pl.cdiv(len(_VEC_SPEC), 8) * 8
    return m_lay, off, v_lay, v_rows


M_LAY, MAT_ROWS, V_LAY, VEC_ROWS = _build_layouts()


# ---------------------------------------------------------------------
# The single fused kernel: whole UNITER encoder + GPT decoder forward.
# Inputs: bf16 matrix slab, f32 vector slab, padded image features,
#         attention mask, stacked token ids.  No grid: everything in VMEM.
# ---------------------------------------------------------------------
def _uniter_gpt_kernel(mat_ref, vec_ref, img_ref, amask_ref, ids_ref, out_ref):
    f32, bf16 = jnp.float32, jnp.bfloat16
    scale = 1.0 / (D_HEAD ** 0.5)

    # -------- static-slice accessors into the packed slabs --------
    def M(name):                      # bf16 weight block [rows, cols]
        r0, rows, cols = M_LAY[name]
        return mat_ref[r0:r0 + rows, 0:cols]

    def V(name):                      # f32 bias / gain row [1, cols]
        r, cols = V_LAY[name]
        return vec_ref[r:r + 1, 0:cols]

    # -------- tiny fused building blocks (on [B*S, ...] 2-D slabs) --------
    def layernorm(x, gname, bname):
        # one-pass statistics: mean(x), mean(x^2) - mu^2  (one cross-lane reduce pair)
        mu = jnp.mean(x, axis=-1, keepdims=True)
        var = jnp.mean(x * x, axis=-1, keepdims=True) - mu * mu
        return (x - mu) * jax.lax.rsqrt(var + EPS) * V(gname) + V(bname)

    def dense(x, wname, bname):
        # bf16 operands on the MXU, f32 accumulation; bias add in f32
        return jnp.dot(x.astype(bf16), M(wname), preferred_element_type=f32) + V(bname)

    def attend(q2, k2, v2, nb, sq, sk, bias, wo_name, bo_name):
        """q2: [nb*sq, H]; k2/v2: [nb*sk, H]; bias broadcastable to [nb, sq, sk]."""
        bias_b = jnp.broadcast_to(bias, (nb, sq, sk))      # hoisted: one broadcast total
        q2b = (q2 * scale).astype(bf16)                    # pre-scale q once (2-D)
        k2b = k2.astype(bf16)
        v2b = v2.astype(bf16)
        heads = []
        for hd in range(N_HEADS):                          # static unrolled head loop
            sl = slice(hd * D_HEAD, (hd + 1) * D_HEAD)
            qh = q2b[:, sl].reshape(nb, sq, D_HEAD)        # layout-preserving reshapes
            kh = k2b[:, sl].reshape(nb, sk, D_HEAD)
            vh = v2b[:, sl].reshape(nb, sk, D_HEAD)
            s = jnp.einsum("bqd,bkd->bqk", qh, kh,
                           preferred_element_type=f32) + bias_b
            m = jnp.max(s, axis=-1, keepdims=True)
            p = jnp.exp(s - m)
            l = jnp.sum(p, axis=-1, keepdims=True)
            p = p * pl.reciprocal(l, approx=True)          # divide on the EUP slot
            heads.append(jnp.einsum("bqk,bkd->bqd", p.astype(bf16), vh,
                                    preferred_element_type=f32))
        # ONE deep output projection (contraction = H) on the concatenated heads
        o2 = jnp.concatenate(heads, axis=-1).reshape(nb * sq, H)
        return jnp.dot(o2.astype(bf16), M(wo_name),
                       preferred_element_type=f32) + V(bo_name)

    def self_attention(x2, nb, sq, bias, wqkv, bqkv, wo, bo):
        qkv = dense(x2, wqkv, bqkv)                        # fused QKV: one [H, 3H] matmul
        return attend(qkv[:, 0:H], qkv[:, H:2 * H], qkv[:, 2 * H:3 * H],
                      nb, sq, sq, bias, wo, bo)

    def ffn(x2, w1, b1, w2, b2):
        hdn = jax.nn.gelu(dense(x2, w1, b1), approximate=True)
        return jnp.dot(hdn.astype(bf16), M(w2), preferred_element_type=f32) + V(b2)

    def embed(ids_col, table_name, rows):
        # one-hot @ table keeps the lookup on the MXU (VOCAB=64, no gather)
        iota = jax.lax.broadcasted_iota(jnp.int32, (rows, VOCAB), 1)
        onehot = (iota == ids_col).astype(bf16)
        return jnp.dot(onehot, M(table_name), preferred_element_type=f32)

    # -------- attention biases, built in-kernel (no per-head bias arrays in HBM) -----
    pad_bias = (1.0 - amask_ref[...]) * NEG                            # [B, 1, S_ENC]
    r_i = jax.lax.broadcasted_iota(jnp.int32, (S_DEC, S_DEC), 0)
    c_i = jax.lax.broadcasted_iota(jnp.int32, (S_DEC, S_DEC), 1)
    causal_bias = jnp.where(c_i <= r_i, 0.0, NEG).astype(f32)[None]    # [1, S_DEC, S_DEC]

    # ================================ encoder ================================
    ridx = jax.lax.broadcasted_iota(jnp.int32, (B * S_ENC, 1), 0)
    seg = ((ridx & (S_ENC - 1)) < S_TXT).astype(f32)                   # 1 = text row
    txt_e = embed(ids_ref[0:B * S_ENC, :], "enc_txt_emb", B * S_ENC)
    img_e = dense(img_ref[...], "enc_img_w", "enc_img_b")
    h = seg * txt_e + (1.0 - seg) * img_e + M("enc_pos").astype(f32)

    h = h + self_attention(layernorm(h, "enc_ln1_g", "enc_ln1_b"), B, S_ENC, pad_bias,
                           "enc_wqkv", "enc_bqkv", "enc_wo", "enc_bo")
    h = h + ffn(layernorm(h, "enc_ln2_g", "enc_ln2_b"),
                "enc_w1", "enc_b1", "enc_w2", "enc_b2")
    enc_hid = layernorm(h, "enc_lnf_g", "enc_lnf_b")                   # [B*S_ENC, H]

    # ================================ decoder ================================
    g = embed(ids_ref[B * S_ENC:B * (S_ENC + S_DEC), :], "dec_tok_emb", B * S_DEC)
    g = g + M("dec_pos").astype(f32)

    g = g + self_attention(layernorm(g, "dec_ln1_g", "dec_ln1_b"), B, S_DEC, causal_bias,
                           "dec_wqkv", "dec_self_bqkv", "dec_self_wo", "dec_self_bo")

    x_ln = layernorm(g, "dec_ln2_g", "dec_ln2_b")
    q2 = dense(x_ln, "dec_cross_wq", "dec_cross_bq")
    kv = dense(enc_hid, "dec_cross_wkv", "dec_cross_bkv")              # fused K,V [H, 2H]
    g = g + attend(q2, kv[:, 0:H], kv[:, H:2 * H], B, S_DEC, S_ENC, pad_bias,
                   "dec_cross_wo", "dec_cross_bo")

    g = g + ffn(layernorm(g, "dec_ln3_g", "dec_ln3_b"),
                "dec_w1", "dec_b1", "dec_w2", "dec_b2")
    g = layernorm(g, "dec_lnf_g", "dec_lnf_b")

    # lane-dense LM head: 128-wide unmasked stores; host slices back to VOCAB
    out_ref[...] = jnp.dot(g.astype(bf16), M("dec_lm_w"),
                           preferred_element_type=f32) + V("dec_lm_b")


# ---------------------------------------------------------------------
# Cost estimate + VMEM budget (item-level sanity; tiny model -> trivially fits)
# ---------------------------------------------------------------------
def _cost_estimate():
    rows_e, rows_d = B * S_ENC, B * S_DEC
    mm = rows_e * (VOCAB * H + IMG_DIM * H + 3 * H * H + H * H + 2 * H * FFN)
    mm += rows_d * (VOCAB * H + 3 * H * H + H * H + H * H + 2 * H * H + H * H
                    + 2 * H * FFN + H * VOCAB_PAD)
    mm += 3 * B * N_HEADS * S_DEC * S_DEC * D_HEAD * 2      # scores + PV matmuls
    flops = 2 * mm
    trans = 3 * B * N_HEADS * S_DEC * S_DEC + (rows_e + rows_d) * FFN
    bytes_accessed = (MAT_ROWS * SLAB_W * 2 + VEC_ROWS * SLAB_W * 4
                      + rows_e * IMG_DIM * 4 + B * S_ENC * 4
                      + (rows_e + rows_d) * 4 + rows_d * VOCAB_PAD * 4)
    return pl.CostEstimate(flops=flops, transcendentals=trans,
                           bytes_accessed=bytes_accessed)


_COST = _cost_estimate()

# Everything (weights + activations + output) is VMEM-resident at once (<1 MiB):
# fine on v5e/v6e (128 MiB) and v7x (64 MiB physical / 32 MiB default scoped).
# Re-derive this if H / S / VOCAB are ever scaled up.
_RESIDENT_BYTES = (MAT_ROWS * SLAB_W * 2 + VEC_ROWS * SLAB_W * 4
                   + B * S_ENC * IMG_DIM * 4 + B * S_ENC * 4
                   + B * (S_ENC + S_DEC) * 4 + B * S_DEC * VOCAB_PAD * 4)
assert _RESIDENT_BYTES < 16 * 1024 * 1024, _RESIDENT_BYTES


# ---------------------------------------------------------------------
# Wrapper: cheap host-side glue + the single pallas_call
# ---------------------------------------------------------------------
@jax.jit
def uniter_gpt_forward(mat_slab, vec_slab, batch):
    """Mirrors UNITER_GPT.forward: encoder then decoder, fused in one Pallas kernel."""
    txt_ids = batch["txt_ids"].astype(jnp.int32)        # [B, S_TXT]
    img_feat = batch["img_feat"].astype(jnp.float32)    # [B, S_IMG, IMG_DIM]
    attn_mask = batch["attn_mask"].astype(jnp.float32)  # [B, S_ENC] (1 = attend)
    tgt_ids = batch["tgt_ids"].astype(jnp.int32)        # [B, S_DEC]

    # glue: put text + image on one [B*S_ENC] grid (masked add in-kernel) and stack the
    # encoder / decoder token ids into one int32 column -> 3 tiny batch inputs total.
    txt_ids_p = jnp.pad(txt_ids, ((0, 0), (0, S_IMG)))
    ids = jnp.concatenate([txt_ids_p.reshape(B * S_ENC, 1),
                           tgt_ids.reshape(B * S_DEC, 1)], axis=0)        # [B*(S_ENC+S_DEC), 1]
    img_feat_p = jnp.pad(img_feat, ((0, 0), (S_TXT, 0), (0, 0))).reshape(B * S_ENC, IMG_DIM)
    amask = attn_mask.reshape(B, 1, S_ENC)

    logits = pl.pallas_call(
        _uniter_gpt_kernel,
        out_shape=jax.ShapeDtypeStruct((B * S_DEC, VOCAB_PAD), jnp.float32),
        compiler_params=pltpu.CompilerParams(vmem_limit_bytes=16 * 1024 * 1024),
        cost_estimate=_COST,
    )(mat_slab, vec_slab, img_feat_p, amask, ids)
    return logits[:, :VOCAB].reshape(B, S_DEC, VOCAB)


# ---------------------------------------------------------------------
# Parameter construction (structured) + one-time packing into two slabs
# ---------------------------------------------------------------------
def _dense_init(key, din, dout, scale=0.02):
    return (jax.random.normal(key, (din, dout), jnp.float32) * scale,
            jnp.zeros((1, dout), jnp.float32))


def _self_attn_params(key):
    kq, kk, kv, ko = jax.random.split(key, 4)
    wq, _ = _dense_init(kq, H, H)
    wk, _ = _dense_init(kk, H, H)
    wv, _ = _dense_init(kv, H, H)
    wo, bo = _dense_init(ko, H, H)
    return dict(wqkv=jnp.concatenate([wq, wk, wv], axis=1),   # fused [H, 3H]
                bqkv=jnp.zeros((1, 3 * H), jnp.float32), wo=wo, bo=bo)


def _cross_attn_params(key):
    kq, kk, kv, ko = jax.random.split(key, 4)
    wq, bq = _dense_init(kq, H, H)
    wk, _ = _dense_init(kk, H, H)
    wv, _ = _dense_init(kv, H, H)
    wo, bo = _dense_init(ko, H, H)
    return dict(wq=wq, bq=bq,
                wkv=jnp.concatenate([wk, wv], axis=1),        # fused [H, 2H]
                bkv=jnp.zeros((1, 2 * H), jnp.float32), wo=wo, bo=bo)


def _ffn_params(key):
    k1, k2 = jax.random.split(key)
    w1, b1 = _dense_init(k1, H, FFN)
    w2, b2 = _dense_init(k2, FFN, H)
    return dict(w1=w1, b1=b1, w2=w2, b2=b2)


def _ln():
    return jnp.ones((1, H), jnp.float32), jnp.zeros((1, H), jnp.float32)


def make_params(key):
    ke, kd = jax.random.split(key)
    ek = jax.random.split(ke, 5)
    dk = jax.random.split(kd, 6)

    img_w, img_b = _dense_init(ek[1], IMG_DIM, H)
    enc_pos = jax.random.normal(ek[2], (S_ENC, H), jnp.float32) * 0.02
    e_ln1, e_ln2, e_lnf = _ln(), _ln(), _ln()
    encoder = dict(
        txt_emb=jax.random.normal(ek[0], (VOCAB, H), jnp.float32) * 0.02,
        img_w=img_w, img_b=img_b,
        pos_emb=jnp.tile(enc_pos, (B, 1)),                    # pre-tiled -> [B*S_ENC, H]
        attn=_self_attn_params(ek[3]),
        ffn=_ffn_params(ek[4]),
        ln1_g=e_ln1[0], ln1_b=e_ln1[1],
        ln2_g=e_ln2[0], ln2_b=e_ln2[1],
        lnf_g=e_lnf[0], lnf_b=e_lnf[1],
    )

    dec_pos = jax.random.normal(dk[1], (S_DEC, H), jnp.float32) * 0.02
    lm_w, lm_b = _dense_init(dk[5], H, VOCAB)
    d_ln1, d_ln2, d_ln3, d_lnf = _ln(), _ln(), _ln(), _ln()
    decoder = dict(
        tok_emb=jax.random.normal(dk[0], (VOCAB, H), jnp.float32) * 0.02,
        pos_emb=jnp.tile(dec_pos, (B, 1)),                    # pre-tiled -> [B*S_DEC, H]
        self_attn=_self_attn_params(dk[2]),
        cross_attn=_cross_attn_params(dk[3]),
        ffn=_ffn_params(dk[4]),
        ln1_g=d_ln1[0], ln1_b=d_ln1[1],
        ln2_g=d_ln2[0], ln2_b=d_ln2[1],
        ln3_g=d_ln3[0], ln3_b=d_ln3[1],
        lnf_g=d_lnf[0], lnf_b=d_lnf[1],
        lm_w=lm_w, lm_b=lm_b,
    )
    return dict(encoder=encoder, decoder=decoder)


def pack_params(params):
    """Pack all parameters into two slabs (one DMA each):
       bf16 [MAT_ROWS, 128] matrices/embeddings, f32 [VEC_ROWS, 128] biases/LN rows."""
    EN, DE = params["encoder"], params["decoder"]
    EA, EF = EN["attn"], EN["ffn"]
    DS, DC, DF = DE["self_attn"], DE["cross_attn"], DE["ffn"]

    mats = {
        "enc_txt_emb": EN["txt_emb"], "enc_img_w": EN["img_w"], "enc_pos": EN["pos_emb"],
        "enc_wqkv": EA["wqkv"], "enc_wo": EA["wo"],
        "enc_w1": EF["w1"], "enc_w2": EF["w2"],
        "dec_tok_emb": DE["tok_emb"], "dec_pos": DE["pos_emb"],
        "dec_wqkv": DS["wqkv"], "dec_self_wo": DS["wo"],
        "dec_cross_wq": DC["wq"], "dec_cross_wkv": DC["wkv"], "dec_cross_wo": DC["wo"],
        "dec_w1": DF["w1"], "dec_w2": DF["w2"],
        "dec_lm_w": jnp.pad(DE["lm_w"], ((0, 0), (0, VOCAB_PAD - VOCAB))),
    }
    vecs = {
        "enc_ln1_g": EN["ln1_g"], "enc_ln1_b": EN["ln1_b"],
        "enc_ln2_g": EN["ln2_g"], "enc_ln2_b": EN["ln2_b"],
        "enc_lnf_g": EN["lnf_g"], "enc_lnf_b": EN["lnf_b"],
        "enc_bqkv": EA["bqkv"], "enc_bo": EA["bo"],
        "enc_img_b": EN["img_b"],
        "enc_b1": EF["b1"], "enc_b2": EF["b2"],
        "dec_ln1_g": DE["ln1_g"], "dec_ln1_b": DE["ln1_b"],
        "dec_ln2_g": DE["ln2_g"], "dec_ln2_b": DE["ln2_b"],
        "dec_ln3_g": DE["ln3_g"], "dec_ln3_b": DE["ln3_b"],
        "dec_lnf_g": DE["lnf_g"], "dec_lnf_b": DE["lnf_b"],
        "dec_self_bqkv": DS["bqkv"], "dec_self_bo": DS["bo"],
        "dec_cross_bq": DC["bq"], "dec_cross_bkv": DC["bkv"], "dec_cross_bo": DC["bo"],
        "dec_b1": DF["b1"], "dec_b2": DF["b2"],
        "dec_lm_b": jnp.pad(DE["lm_b"], ((0, 0), (0, VOCAB_PAD - VOCAB))),
    }

    m_rows = []
    for name, rows, cols in _MAT_SPEC:
        a = mats[name]
        assert a.shape == (rows, cols), (name, a.shape)
        m_rows.append(jnp.pad(a, ((0, 0), (0, SLAB_W - cols))))
    mat_slab = jnp.concatenate(m_rows, axis=0).astype(jnp.bfloat16)

    v_rows = []
    for name, cols in _VEC_SPEC:
        a = vecs[name]
        assert a.shape == (1, cols), (name, a.shape)
        v_rows.append(jnp.pad(a, ((0, 0), (0, SLAB_W - cols))))
    v_rows.append(jnp.zeros((VEC_ROWS - len(_VEC_SPEC), SLAB_W), jnp.float32))
    vec_slab = jnp.concatenate(v_rows, axis=0).astype(jnp.float32)
    return mat_slab, vec_slab


if __name__ == "__main__":
    key = jax.random.PRNGKey(0)
    kp, k1, k2, k3 = jax.random.split(key, 4)
    params = make_params(kp)
    mat_slab, vec_slab = pack_params(params)            # one-time host-side packing

    batch = {
        "txt_ids": jax.random.randint(k1, (B, S_TXT), 0, VOCAB, dtype=jnp.int32),
        "img_feat": jax.random.normal(k2, (B, S_IMG, IMG_DIM), jnp.float32),
        # last encoder position of batch item 1 is padding, exercising the mask
        "attn_mask": jnp.array([[1] * S_ENC, [1] * (S_ENC - 1) + [0]], jnp.float32),
        "tgt_ids": jax.random.randint(k3, (B, S_DEC), 0, VOCAB, dtype=jnp.int32),
    }

    logits = uniter_gpt_forward(mat_slab, vec_slab, batch)
    jax.block_until_ready(logits)
    assert logits.shape == (B, S_DEC, VOCAB), logits.shape
    assert bool(jnp.all(jnp.isfinite(logits)))
    print("KERNEL_OK")
</pallas_src>

<mosaic_0001>
module attributes {stable_mosaic.version = 11 : i64} {
  func.func @_uniter_gpt_kernel(%arg0: memref<624x128xbf16, #tpu.memory_space<vmem>>, %arg1: memref<32x128xf32, #tpu.memory_space<vmem>>, %arg2: memref<16x16xf32, #tpu.memory_space<vmem>>, %arg3: memref<2x1x8xf32, #tpu.memory_space<vmem>>, %arg4: memref<32x1xi32, #tpu.memory_space<vmem>>, %arg5: memref<16x128xf32, #tpu.memory_space<vmem>>) attributes {dimension_semantics = [], scalar_prefetch = 0 : i64, scratch_operands = 0 : i64, tpu.core_type = #tpu.core_type<tc>} {
    %c0 = arith.constant 0 : index
    %c0_0 = arith.constant 0 : index
    %c0_1 = arith.constant 0 : index
    %0 = vector.load %arg3[%c0, %c0_0, %c0_1] : memref<2x1x8xf32, #tpu.memory_space<vmem>>, vector<2x1x8xf32>
    %cst = arith.constant 1.000000e+00 : f32
    %1 = vector.broadcast %cst : f32 to vector<2x1x8xf32>
    %2 = arith.subf %1, %0 : vector<2x1x8xf32>
    %cst_2 = arith.constant -1.000000e+09 : f32
    %3 = vector.broadcast %cst_2 : f32 to vector<2x1x8xf32>
    %4 = arith.mulf %2, %3 : vector<2x1x8xf32>
    %5 = tpu.iota {dimensions = array<i32: 0>} : vector<8x8xi32>
    %6 = tpu.iota {dimensions = array<i32: 1>} : vector<8x8xi32>
    %7 = arith.cmpi sle, %6, %5 : vector<8x8xi32>
    %cst_3 = arith.constant 0.000000e+00 : f32
    %cst_4 = arith.constant -1.000000e+09 : f32
    %8 = vector.broadcast %cst_3 : f32 to vector<8x8xf32>
    %9 = vector.broadcast %cst_4 : f32 to vector<8x8xf32>
    %10 = arith.select %7, %8, %9 : vector<8x8xi1>, vector<8x8xf32>
    %11 = vector.shape_cast %10 : vector<8x8xf32> to vector<1x8x8xf32>
    %12 = tpu.iota {dimensions = array<i32: 0>} : vector<16x1xi32>
    %c7_i32 = arith.constant 7 : i32
    %13 = vector.broadcast %c7_i32 : i32 to vector<16x1xi32>
    %14 = arith.andi %12, %13 : vector<16x1xi32>
    %c4_i32 = arith.constant 4 : i32
    %15 = vector.broadcast %c4_i32 : i32 to vector<16x1xi32>
    %16 = arith.cmpi slt, %14, %15 : vector<16x1xi32>
    %17 = arith.extui %16 : vector<16x1xi1> to vector<16x1xi32>
    %18 = arith.sitofp %17 : vector<16x1xi32> to vector<16x1xf32>
    %c0_5 = arith.constant 0 : index
    %c0_6 = arith.constant 0 : index
    %19 = vector.load %arg4[%c0_5, %c0_6] : memref<32x1xi32, #tpu.memory_space<vmem>>, vector<16x1xi32>
    %20 = tpu.iota {dimensions = array<i32: 1>} : vector<16x64xi32>
    %21 = vector.broadcast %19 : vector<16x1xi32> to vector<16x64xi32>
    %22 = arith.cmpi eq, %20, %21 : vector<16x64xi32>
    %23 = arith.extui %22 : vector<16x64xi1> to vector<16x64xi32>
    %24 = arith.sitofp %23 : vector<16x64xi32> to vector<16x64xf32>
    %25 = arith.truncf %24 : vector<16x64xf32> to vector<16x64xbf16>
    %c0_7 = arith.constant 0 : index
    %c0_8 = arith.constant 0 : index
    %26 = vector.load %arg0[%c0_7, %c0_8] : memref<624x128xbf16, #tpu.memory_space<vmem>>, vector<64x32xbf16>
    %cst_9 = arith.constant dense<0.000000e+00> : vector<16x32xf32>
    %27 = tpu.matmul %25, %26, %cst_9 {dimension_numbers = #tpu.dot_dimension_numbers<[1], [0], [0], [1], [0, 0, 1, 1], [], []>} : vector<16x64xbf16>, vector<64x32xbf16>, vector<16x32xf32> -> vector<16x32xf32>
    %c0_10 = arith.constant 0 : index
    %c0_11 = arith.constant 0 : index
    %28 = vector.load %arg2[%c0_10, %c0_11] : memref<16x16xf32, #tpu.memory_space<vmem>>, vector<16x16xf32>
    %29 = arith.truncf %28 : vector<16x16xf32> to vector<16x16xbf16>
    %c64 = arith.constant 64 : index
    %c0_12 = arith.constant 0 : index
    %30 = vector.load %arg0[%c64, %c0_12] : memref<624x128xbf16, #tpu.memory_space<vmem>>, vector<16x32xbf16>
    %cst_13 = arith.constant dense<0.000000e+00> : vector<16x32xf32>
    %31 = tpu.matmul %29, %30, %cst_13 {dimension_numbers = #tpu.dot_dimension_numbers<[1], [0], [0], [1], [0, 0, 1, 1], [], []>} : vector<16x16xbf16>, vector<16x32xbf16>, vector<16x32xf32> -> vector<16x32xf32>
    %c8 = arith.constant 8 : index
    %c0_14 = arith.constant 0 : index
    %32 = vector.load %arg1[%c8, %c0_14] : memref<32x128xf32, #tpu.memory_space<vmem>>, vector<1x32xf32>
    %33 = vector.broadcast %32 : vector<1x32xf32> to vector<16x32xf32>
    %34 = arith.addf %31, %33 : vector<16x32xf32>
    %35 = vector.broadcast %18 : vector<16x1xf32> to vector<16x32xf32>
    %36 = arith.mulf %35, %27 : vector<16x32xf32>
    %cst_15 = arith.constant 1.000000e+00 : f32
    %37 = vector.broadcast %cst_15 : f32 to vector<16x1xf32>
    %38 = arith.subf %37, %18 : vector<16x1xf32>
    %39 = vector.broadcast %38 : vector<16x1xf32> to vector<16x32xf32>
    %40 = arith.mulf %39, %34 : vector<16x32xf32>
    %41 = arith.addf %36, %40 : vector<16x32xf32>
    %c80 = arith.constant 80 : index
    %c0_16 = arith.constant 0 : index
    %42 = vector.load %arg0[%c80, %c0_16] : memref<624x128xbf16, #tpu.memory_space<vmem>>, vector<16x32xbf16>
    %43 = arith.extf %42 : vector<16x32xbf16> to vector<16x32xf32>
    %44 = arith.addf %41, %43 : vector<16x32xf32>
    %cst_17 = arith.constant dense<0.000000e+00> : vector<16xf32>
    %45 = vector.multi_reduction <add>, %44, %cst_17 [1] : vector<16x32xf32> to vector<16xf32>
    %46 = vector.shape_cast %45 : vector<16xf32> to vector<16x1xf32>
    %cst_18 = arith.constant 3.200000e+01 : f32
    %47 = vector.broadcast %cst_18 : f32 to vector<16x1xf32>
    %48 = arith.divf %46, %47 : vector<16x1xf32>
    %49 = arith.mulf %44, %44 : vector<16x32xf32>
    %cst_19 = arith.constant dense<0.000000e+00> : vector<16xf32>
    %50 = vector.multi_reduction <add>, %49, %cst_19 [1] : vector<16x32xf32> to vector<16xf32>
    %51 = vector.shape_cast %50 : vector<16xf32> to vector<16x1xf32>
    %cst_20 = arith.constant 3.200000e+01 : f32
    %52 = vector.broadcast %cst_20 : f32 to vector<16x1xf32>
    %53 = arith.divf %51, %52 : vector<16x1xf32>
    %54 = arith.mulf %48, %48 : vector<16x1xf32>
    %55 = arith.subf %53, %54 : vector<16x1xf32>
    %56 = vector.broadcast %48 : vector<16x1xf32> to vector<16x32xf32>
    %57 = arith.subf %44, %56 : vector<16x32xf32>
    %cst_21 = arith.constant 9.99999974E-6 : f32
    %58 = vector.broadcast %cst_21 : f32 to vector<16x1xf32>
    %59 = arith.addf %55, %58 : vector<16x1xf32>
    %60 = math.rsqrt %59 : vector<16x1xf32>
    %61 = vector.broadcast %60 : vector<16x1xf32> to vector<16x32xf32>
    %62 = arith.mulf %57, %61 : vector<16x32xf32>
    %c0_22 = arith.constant 0 : index
    %c0_23 = arith.constant 0 : index
    %63 = vector.load %arg1[%c0_22, %c0_23] : memref<32x128xf32, #tpu.memory_space<vmem>>, vector<1x32xf32>
    %64 = vector.broadcast %63 : vector<1x32xf32> to vector<16x32xf32>
    %65 = arith.mulf %62, %64 : vector<16x32xf32>
    %c1 = arith.constant 1 : index
    %c0_24 = arith.constant 0 : index
    %66 = vector.load %arg1[%c1, %c0_24] : memref<32x128xf32, #tpu.memory_space<vmem>>, vector<1x32xf32>
    %67 = vector.broadcast %66 : vector<1x32xf32> to vector<16x32xf32>
    %68 = arith.addf %65, %67 : vector<16x32xf32>
    %69 = arith.truncf %68 : vector<16x32xf32> to vector<16x32xbf16>
    %c96 = arith.constant 96 : index
    %c0_25 = arith.constant 0 : index
    %70 = vector.load %arg0[%c96, %c0_25] : memref<624x128xbf16, #tpu.memory_space<vmem>>, vector<32x96xbf16>
    %cst_26 = arith.constant dense<0.000000e+00> : vector<16x96xf32>
    %71 = tpu.matmul %69, %70, %cst_26 {dimension_numbers = #tpu.dot_dimension_numbers<[1], [0], [0], [1], [0, 0, 1, 1], [], []>} : vector<16x32xbf16>, vector<32x96xbf16>, vector<16x96xf32> -> vector<16x96xf32>
    %c6 = arith.constant 6 : index
    %c0_27 = arith.constant 0 : index
    %72 = vector.load %arg1[%c6, %c0_27] : memref<32x128xf32, #tpu.memory_space<vmem>>, vector<1x96xf32>
    %73 = vector.broadcast %72 : vector<1x96xf32> to vector<16x96xf32>
    %74 = arith.addf %71, %73 : vector<16x96xf32>
    %75 = vector.extract_strided_slice %74 {offsets = [0, 0], sizes = [16, 32], strides = [1, 1]} : vector<16x96xf32> to vector<16x32xf32>
    %76 = vector.extract_strided_slice %74 {offsets = [0, 32], sizes = [16, 32], strides = [1, 1]} : vector<16x96xf32> to vector<16x32xf32>
    %77 = vector.extract_strided_slice %74 {offsets = [0, 64], sizes = [16, 32], strides = [1, 1]} : vector<16x96xf32> to vector<16x32xf32>
    %78 = vector.shape_cast %4 : vector<2x1x8xf32> to vector<2x1x8xf32>
    %79 = vector.broadcast %78 : vector<2x1x8xf32> to vector<2x8x8xf32>
    %cst_28 = arith.constant 0.353553385 : f32
    %80 = vector.broadcast %cst_28 : f32 to vector<16x32xf32>
    %81 = arith.mulf %75, %80 : vector<16x32xf32>
    %82 = arith.truncf %81 : vector<16x32xf32> to vector<16x32xbf16>
    %83 = arith.truncf %76 : vector<16x32xf32> to vector<16x32xbf16>
    %84 = arith.truncf %77 : vector<16x32xf32> to vector<16x32xbf16>
    %85 = vector.extract_strided_slice %82 {offsets = [0, 0], sizes = [16, 8], strides = [1, 1]} : vector<16x32xbf16> to vector<16x8xbf16>
    %86 = vector.shape_cast %85 : vector<16x8xbf16> to vector<2x8x8xbf16>
    %87 = vector.extract_strided_slice %83 {offsets = [0, 0], sizes = [16, 8], strides = [1, 1]} : vector<16x32xbf16> to vector<16x8xbf16>
    %88 = vector.shape_cast %87 : vector<16x8xbf16> to vector<2x8x8xbf16>
    %89 = vector.extract_strided_slice %84 {offsets = [0, 0], sizes = [16, 8], strides = [1, 1]} : vector<16x32xbf16> to vector<16x8xbf16>
    %90 = vector.shape_cast %89 : vector<16x8xbf16> to vector<2x8x8xbf16>
    "tpu.trace_start"() <{level = 10 : i32, message = "bqd,bkd->bqk"}> : () -> ()
    %cst_29 = arith.constant dense<0.000000e+00> : vector<2x8x8xf32>
    %91 = tpu.matmul %86, %88, %cst_29 {dimension_numbers = #tpu.dot_dimension_numbers<[2], [2], [1], [1], [0, 0, 0, 1, 1, 1], [0], [0]>} : vector<2x8x8xbf16>, vector<2x8x8xbf16>, vector<2x8x8xf32> -> vector<2x8x8xf32>
    "tpu.trace_stop"() : () -> ()
    %92 = arith.addf %91, %79 : vector<2x8x8xf32>
    %cst_30 = arith.constant dense<0xFF800000> : vector<2x8xf32>
    %93 = vector.multi_reduction <maximumf>, %92, %cst_30 [2] : vector<2x8x8xf32> to vector<2x8xf32>
    %94 = vector.shape_cast %93 : vector<2x8xf32> to vector<2x8x1xf32>
    %95 = vector.broadcast %94 : vector<2x8x1xf32> to vector<2x8x8xf32>
    %96 = arith.subf %92, %95 : vector<2x8x8xf32>
    %97 = math.exp %96 : vector<2x8x8xf32>
    %cst_31 = arith.constant dense<0.000000e+00> : vector<2x8xf32>
    %98 = vector.multi_reduction <add>, %97, %cst_31 [2] : vector<2x8x8xf32> to vector<2x8xf32>
    %99 = vector.shape_cast %98 : vector<2x8xf32> to vector<2x8x1xf32>
    %100 = tpu.reciprocal %99 {approx = true} : vector<2x8x1xf32> -> vector<2x8x1xf32>
    %101 = vector.broadcast %100 : vector<2x8x1xf32> to vector<2x8x8xf32>
    %102 = arith.mulf %97, %101 : vector<2x8x8xf32>
    %103 = arith.truncf %102 : vector<2x8x8xf32> to vector<2x8x8xbf16>
    "tpu.trace_start"() <{level = 10 : i32, message = "bqk,bkd->bqd"}> : () -> ()
    %cst_32 = arith.constant dense<0.000000e+00> : vector<2x8x8xf32>
    %104 = tpu.matmul %103, %90, %cst_32 {dimension_numbers = #tpu.dot_dimension_numbers<[2], [1], [1], [2], [0, 0, 0, 1, 1, 2], [0], [0]>} : vector<2x8x8xbf16>, vector<2x8x8xbf16>, vector<2x8x8xf32> -> vector<2x8x8xf32>
    "tpu.trace_stop"() : () -> ()
    %105 = vector.extract_strided_slice %82 {offsets = [0, 8], sizes = [16, 8], strides = [1, 1]} : vector<16x32xbf16> to vector<16x8xbf16>
    %106 = vector.shape_cast %105 : vector<16x8xbf16> to vector<2x8x8xbf16>
    %107 = vector.extract_strided_slice %83 {offsets = [0, 8], sizes = [16, 8], strides = [1, 1]} : vector<16x32xbf16> to vector<16x8xbf16>
    %108 = vector.shape_cast %107 : vector<16x8xbf16> to vector<2x8x8xbf16>
    %109 = vector.extract_strided_slice %84 {offsets = [0, 8], sizes = [16, 8], strides = [1, 1]} : vector<16x32xbf16> to vector<16x8xbf16>
    %110 = vector.shape_cast %109 : vector<16x8xbf16> to vector<2x8x8xbf16>
    "tpu.trace_start"() <{level = 10 : i32, message = "bqd,bkd->bqk"}> : () -> ()
    %cst_33 = arith.constant dense<0.000000e+00> : vector<2x8x8xf32>
    %111 = tpu.matmul %106, %108, %cst_33 {dimension_numbers = #tpu.dot_dimension_numbers<[2], [2], [1], [1], [0, 0, 0, 1, 1, 1], [0], [0]>} : vector<2x8x8xbf16>, vector<2x8x8xbf16>, vector<2x8x8xf32> -> vector<2x8x8xf32>
    "tpu.trace_stop"() : () -> ()
    %112 = arith.addf %111, %79 : vector<2x8x8xf32>
    %cst_34 = arith.constant dense<0xFF800000> : vector<2x8xf32>
    %113 = vector.multi_reduction <maximumf>, %112, %cst_34 [2] : vector<2x8x8xf32> to vector<2x8xf32>
    %114 = vector.shape_cast %113 : vector<2x8xf32> to vector<2x8x1xf32>
    %115 = vector.broadcast %114 : vector<2x8x1xf32> to vector<2x8x8xf32>
    %116 = arith.subf %112, %115 : vector<2x8x8xf32>
    %117 = math.exp %116 : vector<2x8x8xf32>
    %cst_35 = arith.constant dense<0.000000e+00> : vector<2x8xf32>
    %118 = vector.multi_reduction <add>, %117, %cst_35 [2] : vector<2x8x8xf32> to vector<2x8xf32>
    %119 = vector.shape_cast %118 : vector<2x8xf32> to vector<2x8x1xf32>
    %120 = tpu.reciprocal %119 {approx = true} : vector<2x8x1xf32> -> vector<2x8x1xf32>
    %121 = vector.broadcast %120 : vector<2x8x1xf32> to vector<2x8x8xf32>
    %122 = arith.mulf %117, %121 : vector<2x8x8xf32>
    %123 = arith.truncf %122 : vector<2x8x8xf32> to vector<2x8x8xbf16>
    "tpu.trace_start"() <{level = 10 : i32, message = "bqk,bkd->bqd"}> : () -> ()
    %cst_36 = arith.constant dense<0.000000e+00> : vector<2x8x8xf32>
    %124 = tpu.matmul %123, %110, %cst_36 {dimension_numbers = #tpu.dot_dimension_numbers<[2], [1], [1], [2], [0, 0, 0, 1, 1, 2], [0], [0]>} : vector<2x8x8xbf16>, vector<2x8x8xbf16>, vector<2x8x8xf32> -> vector<2x8x8xf32>
    "tpu.trace_stop"() : () -> ()
    %125 = vector.extract_strided_slice %82 {offsets = [0, 16], sizes = [16, 8], strides = [1, 1]} : vector<16x32xbf16> to vector<16x8xbf16>
    %126 = vector.shape_cast %125 : vector<16x8xbf16> to vector<2x8x8xbf16>
    %127 = vector.extract_strided_slice %83 {offsets = [0, 16], sizes = [16, 8], strides = [1, 1]} : vector<16x32xbf16> to vector<16x8xbf16>
    %128 = vector.shape_cast %127 : vector<16x8xbf16> to vector<2x8x8xbf16>
    %129 = vector.extract_strided_slice %84 {offsets = [0, 16], sizes = [16, 8], strides = [1, 1]} : vector<16x32xbf16> to vector<16x8xbf16>
    %130 = vector.shape_cast %129 : vector<16x8xbf16> to vector<2x8x8xbf16>
    "tpu.trace_start"() <{level = 10 : i32, message = "bqd,bkd->bqk"}> : () -> ()
    %cst_37 = arith.constant dense<0.000000e+00> : vector<2x8x8xf32>
    %131 = tpu.matmul %126, %128, %cst_37 {dimension_numbers = #tpu.dot_dimension_numbers<[2], [2], [1], [1], [0, 0, 0, 1, 1, 1], [0], [0]>} : vector<2x8x8xbf16>, vector<2x8x8xbf16>, vector<2x8x8xf32> -> vector<2x8x8xf32>
    "tpu.trace_stop"() : () -> ()
    %132 = arith.addf %131, %79 : vector<2x8x8xf32>
    %cst_38 = arith.constant dense<0xFF800000> : vector<2x8xf32>
    %133 = vector.multi_reduction <maximumf>, %132, %cst_38 [2] : vector<2x8x8xf32> to vector<2x8xf32>
    %134 = vector.shape_cast %133 : vector<2x8xf32> to vector<2x8x1xf32>
    %135 = vector.broadcast %134 : vector<2x8x1xf32> to vector<2x8x8xf32>
    %136 = arith.subf %132, %135 : vector<2x8x8xf32>
    %137 = math.exp %136 : vector<2x8x8xf32>
    %cst_39 = arith.constant dense<0.000000e+00> : vector<2x8xf32>
    %138 = vector.multi_reduction <add>, %137, %cst_39 [2] : vector<2x8x8xf32> to vector<2x8xf32>
    %139 = vector.shape_cast %138 : vector<2x8xf32> to vector<2x8x1xf32>
    %140 = tpu.reciprocal %139 {approx = true} : vector<2x8x1xf32> -> vector<2x8x1xf32>
    %141 = vector.broadcast %140 : vector<2x8x1xf32> to vector<2x8x8xf32>
    %142 = arith.mulf %137, %141 : vector<2x8x8xf32>
    %143 = arith.truncf %142 : vector<2x8x8xf32> to vector<2x8x8xbf16>
    "tpu.trace_start"() <{level = 10 : i32, message = "bqk,bkd->bqd"}> : () -> ()
    %cst_40 = arith.constant dense<0.000000e+00> : vector<2x8x8xf32>
    %144 = tpu.matmul %143, %130, %cst_40 {dimension_numbers = #tpu.dot_dimension_numbers<[2], [1], [1], [2], [0, 0, 0, 1, 1, 2], [0], [0]>} : vector<2x8x8xbf16>, vector<2x8x8xbf16>, vector<2x8x8xf32> -> vector<2x8x8xf32>
    "tpu.trace_stop"() : () -> ()
    %145 = vector.extract_strided_slice %82 {offsets = [0, 24], sizes = [16, 8], strides = [1, 1]} : vector<16x32xbf16> to vector<16x8xbf16>
    %146 = vector.shape_cast %145 : vector<16x8xbf16> to vector<2x8x8xbf16>
    %147 = vector.extract_strided_slice %83 {offsets = [0, 24], sizes = [16, 8], strides = [1, 1]} : vector<16x32xbf16> to vector<16x8xbf16>
    %148 = vector.shape_cast %147 : vector<16x8xbf16> to vector<2x8x8xbf16>
    %149 = vector.extract_strided_slice %84 {offsets = [0, 24], sizes = [16, 8], strides = [1, 1]} : vector<16x32xbf16> to vector<16x8xbf16>
    %150 = vector.shape_cast %149 : vector<16x8xbf16> to vector<2x8x8xbf16>
    "tpu.trace_start"() <{level = 10 : i32, message = "bqd,bkd->bqk"}> : () -> ()
    %cst_41 = arith.constant dense<0.000000e+00> : vector<2x8x8xf32>
    %151 = tpu.matmul %146, %148, %cst_41 {dimension_numbers = #tpu.dot_dimension_numbers<[2], [2], [1], [1], [0, 0, 0, 1, 1, 1], [0], [0]>} : vector<2x8x8xbf16>, vector<2x8x8xbf16>, vector<2x8x8xf32> -> vector<2x8x8xf32>
    "tpu.trace_stop"() : () -> ()
    %152 = arith.addf %151, %79 : vector<2x8x8xf32>
    %cst_42 = arith.constant dense<0xFF800000> : vector<2x8xf32>
    %153 = vector.multi_reduction <maximumf>, %152, %cst_42 [2] : vector<2x8x8xf32> to vector<2x8xf32>
    %154 = vector.shape_cast %153 : vector<2x8xf32> to vector<2x8x1xf32>
    %155 = vector.broadcast %154 : vector<2x8x1xf32> to vector<2x8x8xf32>
    %156 = arith.subf %152, %155 : vector<2x8x8xf32>
    %157 = math.exp %156 : vector<2x8x8xf32>
    %cst_43 = arith.constant dense<0.000000e+00> : vector<2x8xf32>
    %158 = vector.multi_reduction <add>, %157, %cst_43 [2] : vector<2x8x8xf32> to vector<2x8xf32>
    %159 = vector.shape_cast %158 : vector<2x8xf32> to vector<2x8x1xf32>
    %160 = tpu.reciprocal %159 {approx = true} : vector<2x8x1xf32> -> vector<2x8x1xf32>
    %161 = vector.broadcast %160 : vector<2x8x1xf32> to vector<2x8x8xf32>
    %162 = arith.mulf %157, %161 : vector<2x8x8xf32>
    %163 = arith.truncf %162 : vector<2x8x8xf32> to vector<2x8x8xbf16>
    "tpu.trace_start"() <{level = 10 : i32, message = "bqk,bkd->bqd"}> : () -> ()
    %cst_44 = arith.constant dense<0.000000e+00> : vector<2x8x8xf32>
    %164 = tpu.matmul %163, %150, %cst_44 {dimension_numbers = #tpu.dot_dimension_numbers<[2], [1], [1], [2], [0, 0, 0, 1, 1, 2], [0], [0]>} : vector<2x8x8xbf16>, vector<2x8x8xbf16>, vector<2x8x8xf32> -> vector<2x8x8xf32>
    "tpu.trace_stop"() : () -> ()
    %165 = tpu.concatenate %104, %124, %144, %164 in 2 : vector<2x8x8xf32>, vector<2x8x8xf32>, vector<2x8x8xf32>, vector<2x8x8xf32> -> vector<2x8x32xf32>
    %166 = vector.shape_cast %165 : vector<2x8x32xf32> to vector<16x32xf32>
    %167 = arith.truncf %166 : vector<16x32xf32> to vector<16x32xbf16>
    %c128 = arith.constant 128 : index
    %c0_45 = arith.constant 0 : index
    %168 = vector.load %arg0[%c128, %c0_45] : memref<624x128xbf16, #tpu.memory_space<vmem>>, vector<32x32xbf16>
    %cst_46 = arith.constant dense<0.000000e+00> : vector<16x32xf32>
    %169 = tpu.matmul %167, %168, %cst_46 {dimension_numbers = #tpu.dot_dimension_numbers<[1], [0], [0], [1], [0, 0, 1, 1], [], []>} : vector<16x32xbf16>, vector<32x32xbf16>, vector<16x32xf32> -> vector<16x32xf32>
    %c7 = arith.constant 7 : index
    %c0_47 = arith.constant 0 : index
    %170 = vector.load %arg1[%c7, %c0_47] : memref<32x128xf32, #tpu.memory_space<vmem>>, vector<1x32xf32>
    %171 = vector.broadcast %170 : vector<1x32xf32> to vector<16x32xf32>
    %172 = arith.addf %169, %171 : vector<16x32xf32>
    %173 = arith.addf %44, %172 : vector<16x32xf32>
    %cst_48 = arith.constant dense<0.000000e+00> : vector<16xf32>
    %174 = vector.multi_reduction <add>, %173, %cst_48 [1] : vector<16x32xf32> to vector<16xf32>
    %175 = vector.shape_cast %174 : vector<16xf32> to vector<16x1xf32>
    %cst_49 = arith.constant 3.200000e+01 : f32
    %176 = vector.broadcast %cst_49 : f32 to vector<16x1xf32>
    %177 = arith.divf %175, %176 : vector<16x1xf32>
    %178 = arith.mulf %173, %173 : vector<16x32xf32>
    %cst_50 = arith.constant dense<0.000000e+00> : vector<16xf32>
    %179 = vector.multi_reduction <add>, %178, %cst_50 [1] : vector<16x32xf32> to vector<16xf32>
    %180 = vector.shape_cast %179 : vector<16xf32> to vector<16x1xf32>
    %cst_51 = arith.constant 3.200000e+01 : f32
    %181 = vector.broadcast %cst_51 : f32 to vector<16x1xf32>
    %182 = arith.divf %180, %181 : vector<16x1xf32>
    %183 = arith.mulf %177, %177 : vector<16x1xf32>
    %184 = arith.subf %182, %183 : vector<16x1xf32>
    %185 = vector.broadcast %177 : vector<16x1xf32> to vector<16x32xf32>
    %186 = arith.subf %173, %185 : vector<16x32xf32>
    %cst_52 = arith.constant 9.99999974E-6 : f32
    %187 = vector.broadcast %cst_52 : f32 to vector<16x1xf32>
    %188 = arith.addf %184, %187 : vector<16x1xf32>
    %189 = math.rsqrt %188 : vector<16x1xf32>
    %190 = vector.broadcast %189 : vector<16x1xf32> to vector<16x32xf32>
    %191 = arith.mulf %186, %190 : vector<16x32xf32>
    %c2 = arith.constant 2 : index
    %c0_53 = arith.constant 0 : index
    %192 = vector.load %arg1[%c2, %c0_53] : memref<32x128xf32, #tpu.memory_space<vmem>>, vector<1x32xf32>
    %193 = vector.broadcast %192 : vector<1x32xf32> to vector<16x32xf32>
    %194 = arith.mulf %191, %193 : vector<16x32xf32>
    %c3 = arith.constant 3 : index
    %c0_54 = arith.constant 0 : index
    %195 = vector.load %arg1[%c3, %c0_54] : memref<32x128xf32, #tpu.memory_space<vmem>>, vector<1x32xf32>
    %196 = vector.broadcast %195 : vector<1x32xf32> to vector<16x32xf32>
    %197 = arith.addf %194, %196 : vector<16x32xf32>
    %198 = arith.truncf %197 : vector<16x32xf32> to vector<16x32xbf16>
    %c160 = arith.constant 160 : index
    %c0_55 = arith.constant 0 : index
    %199 = vector.load %arg0[%c160, %c0_55] : memref<624x128xbf16, #tpu.memory_space<vmem>>, vector<32x64xbf16>
    %cst_56 = arith.constant dense<0.000000e+00> : vector<16x64xf32>
    %200 = tpu.matmul %198, %199, %cst_56 {dimension_numbers = #tpu.dot_dimension_numbers<[1], [0], [0], [1], [0, 0, 1, 1], [], []>} : vector<16x32xbf16>, vector<32x64xbf16>, vector<16x64xf32> -> vector<16x64xf32>
    %c9 = arith.constant 9 : index
    %c0_57 = arith.constant 0 : index
    %201 = vector.load %arg1[%c9, %c0_57] : memref<32x128xf32, #tpu.memory_space<vmem>>, vector<1x64xf32>
    %202 = vector.broadcast %201 : vector<1x64xf32> to vector<16x64xf32>
    %203 = arith.addf %200, %202 : vector<16x64xf32>
    %204 = arith.mulf %203, %203 : vector<16x64xf32>
    %205 = arith.mulf %203, %204 : vector<16x64xf32>
    %cst_58 = arith.constant 4.471500e-02 : f32
    %206 = vector.broadcast %cst_58 : f32 to vector<16x64xf32>
    %207 = arith.mulf %206, %205 : vector<16x64xf32>
    %208 = arith.addf %203, %207 : vector<16x64xf32>
    %cst_59 = arith.constant 0.797884583 : f32
    %209 = vector.broadcast %cst_59 : f32 to vector<16x64xf32>
    %210 = arith.mulf %209, %208 : vector<16x64xf32>
    %211 = math.tanh %210 : vector<16x64xf32>
    %cst_60 = arith.constant 1.000000e+00 : f32
    %212 = vector.broadcast %cst_60 : f32 to vector<16x64xf32>
    %213 = arith.addf %212, %211 : vector<16x64xf32>
    %cst_61 = arith.constant 5.000000e-01 : f32
    %214 = vector.broadcast %cst_61 : f32 to vector<16x64xf32>
    %215 = arith.mulf %214, %213 : vector<16x64xf32>
    %216 = arith.mulf %203, %215 : vector<16x64xf32>
    %217 = arith.truncf %216 : vector<16x64xf32> to vector<16x64xbf16>
    %c192 = arith.constant 192 : index
    %c0_62 = arith.constant 0 : index
    %218 = vector.load %arg0[%c192, %c0_62] : memref<624x128xbf16, #tpu.memory_space<vmem>>, vector<64x32xbf16>
    %cst_63 = arith.constant dense<0.000000e+00> : vector<16x32xf32>
    %219 = tpu.matmul %217, %218, %cst_63 {dimension_numbers = #tpu.dot_dimension_numbers<[1], [0], [0], [1], [0, 0, 1, 1], [], []>} : vector<16x64xbf16>, vector<64x32xbf16>, vector<16x32xf32> -> vector<16x32xf32>
    %c10 = arith.constant 10 : index
    %c0_64 = arith.constant 0 : index
    %220 = vector.load %arg1[%c10, %c0_64] : memref<32x128xf32, #tpu.memory_space<vmem>>, vector<1x32xf32>
    %221 = vector.broadcast %220 : vector<1x32xf32> to vector<16x32xf32>
    %222 = arith.addf %219, %221 : vector<16x32xf32>
    %223 = arith.addf %173, %222 : vector<16x32xf32>
    %cst_65 = arith.constant dense<0.000000e+00> : vector<16xf32>
    %224 = vector.multi_reduction <add>, %223, %cst_65 [1] : vector<16x32xf32> to vector<16xf32>
    %225 = vector.shape_cast %224 : vector<16xf32> to vector<16x1xf32>
    %cst_66 = arith.constant 3.200000e+01 : f32
    %226 = vector.broadcast %cst_66 : f32 to vector<16x1xf32>
    %227 = arith.divf %225, %226 : vector<16x1xf32>
    %228 = arith.mulf %223, %223 : vector<16x32xf32>
    %cst_67 = arith.constant dense<0.000000e+00> : vector<16xf32>
    %229 = vector.multi_reduction <add>, %228, %cst_67 [1] : vector<16x32xf32> to vector<16xf32>
    %230 = vector.shape_cast %229 : vector<16xf32> to vector<16x1xf32>
    %cst_68 = arith.constant 3.200000e+01 : f32
    %231 = vector.broadcast %cst_68 : f32 to vector<16x1xf32>
    %232 = arith.divf %230, %231 : vector<16x1xf32>
    %233 = arith.mulf %227, %227 : vector<16x1xf32>
    %234 = arith.subf %232, %233 : vector<16x1xf32>
    %235 = vector.broadcast %227 : vector<16x1xf32> to vector<16x32xf32>
    %236 = arith.subf %223, %235 : vector<16x32xf32>
    %cst_69 = arith.constant 9.99999974E-6 : f32
    %237 = vector.broadcast %cst_69 : f32 to vector<16x1xf32>
    %238 = arith.addf %234, %237 : vector<16x1xf32>
    %239 = math.rsqrt %238 : vector<16x1xf32>
    %240 = vector.broadcast %239 : vector<16x1xf32> to vector<16x32xf32>
    %241 = arith.mulf %236, %240 : vector<16x32xf32>
    %c4 = arith.constant 4 : index
    %c0_70 = arith.constant 0 : index
    %242 = vector.load %arg1[%c4, %c0_70] : memref<32x128xf32, #tpu.memory_space<vmem>>, vector<1x32xf32>
    %243 = vector.broadcast %242 : vector<1x32xf32> to vector<16x32xf32>
    %244 = arith.mulf %241, %243 : vector<16x32xf32>
    %c5 = arith.constant 5 : index
    %c0_71 = arith.constant 0 : index
    %245 = vector.load %arg1[%c5, %c0_71] : memref<32x128xf32, #tpu.memory_space<vmem>>, vector<1x32xf32>
    %246 = vector.broadcast %245 : vector<1x32xf32> to vector<16x32xf32>
    %247 = arith.addf %244, %246 : vector<16x32xf32>
    %c16 = arith.constant 16 : index
    %c0_72 = arith.constant 0 : index
    %248 = vector.load %arg4[%c16, %c0_72] : memref<32x1xi32, #tpu.memory_space<vmem>>, vector<16x1xi32>
    %249 = tpu.iota {dimensions = array<i32: 1>} : vector<16x64xi32>
    %250 = vector.broadcast %248 : vector<16x1xi32> to vector<16x64xi32>
    %251 = arith.cmpi eq, %249, %250 : vector<16x64xi32>
    %252 = arith.extui %251 : vector<16x64xi1> to vector<16x64xi32>
    %253 = arith.sitofp %252 : vector<16x64xi32> to vector<16x64xf32>
    %254 = arith.truncf %253 : vector<16x64xf32> to vector<16x64xbf16>
    %c256 = arith.constant 256 : index
    %c0_73 = arith.constant 0 : index
    %255 = vector.load %arg0[%c256, %c0_73] : memref<624x128xbf16, #tpu.memory_space<vmem>>, vector<64x32xbf16>
    %cst_74 = arith.constant dense<0.000000e+00> : vector<16x32xf32>
    %256 = tpu.matmul %254, %255, %cst_74 {dimension_numbers = #tpu.dot_dimension_numbers<[1], [0], [0], [1], [0, 0, 1, 1], [], []>} : vector<16x64xbf16>, vector<64x32xbf16>, vector<16x32xf32> -> vector<16x32xf32>
    %c320 = arith.constant 320 : index
    %c0_75 = arith.constant 0 : index
    %257 = vector.load %arg0[%c320, %c0_75] : memref<624x128xbf16, #tpu.memory_space<vmem>>, vector<16x32xbf16>
    %258 = arith.extf %257 : vector<16x32xbf16> to vector<16x32xf32>
    %259 = arith.addf %256, %258 : vector<16x32xf32>
    %cst_76 = arith.constant dense<0.000000e+00> : vector<16xf32>
    %260 = vector.multi_reduction <add>, %259, %cst_76 [1] : vector<16x32xf32> to vector<16xf32>
    %261 = vector.shape_cast %260 : vector<16xf32> to vector<16x1xf32>
    %cst_77 = arith.constant 3.200000e+01 : f32
    %262 = vector.broadcast %cst_77 : f32 to vector<16x1xf32>
    %263 = arith.divf %261, %262 : vector<16x1xf32>
    %264 = arith.mulf %259, %259 : vector<16x32xf32>
    %cst_78 = arith.constant dense<0.000000e+00> : vector<16xf32>
    %265 = vector.multi_reduction <add>, %264, %cst_78 [1] : vector<16x32xf32> to vector<16xf32>
    %266 = vector.shape_cast %265 : vector<16xf32> to vector<16x1xf32>
    %cst_79 = arith.constant 3.200000e+01 : f32
    %267 = vector.broadcast %cst_79 : f32 to vector<16x1xf32>
    %268 = arith.divf %266, %267 : vector<16x1xf32>
    %269 = arith.mulf %263, %263 : vector<16x1xf32>
    %270 = arith.subf %268, %269 : vector<16x1xf32>
    %271 = vector.broadcast %263 : vector<16x1xf32> to vector<16x32xf32>
    %272 = arith.subf %259, %271 : vector<16x32xf32>
    %cst_80 = arith.constant 9.99999974E-6 : f32
    %273 = vector.broadcast %cst_80 : f32 to vector<16x1xf32>
    %274 = arith.addf %270, %273 : vector<16x1xf32>
    %275 = math.rsqrt %274 : vector<16x1xf32>
    %276 = vector.broadcast %275 : vector<16x1xf32> to vector<16x32xf32>
    %277 = arith.mulf %272, %276 : vector<16x32xf32>
    %c11 = arith.constant 11 : index
    %c0_81 = arith.constant 0 : index
    %278 = vector.load %arg1[%c11, %c0_81] : memref<32x128xf32, #tpu.memory_space<vmem>>, vector<1x32xf32>
    %279 = vector.broadcast %278 : vector<1x32xf32> to vector<16x32xf32>
    %280 = arith.mulf %277, %279 : vector<16x32xf32>
    %c12 = arith.constant 12 : index
    %c0_82 = arith.constant 0 : index
    %281 = vector.load %arg1[%c12, %c0_82] : memref<32x128xf32, #tpu.memory_space<vmem>>, vector<1x32xf32>
    %282 = vector.broadcast %281 : vector<1x32xf32> to vector<16x32xf32>
    %283 = arith.addf %280, %282 : vector<16x32xf32>
    %284 = arith.truncf %283 : vector<16x32xf32> to vector<16x32xbf16>
    %c336 = arith.constant 336 : index
    %c0_83 = arith.constant 0 : index
    %285 = vector.load %arg0[%c336, %c0_83] : memref<624x128xbf16, #tpu.memory_space<vmem>>, vector<32x96xbf16>
    %cst_84 = arith.constant dense<0.000000e+00> : vector<16x96xf32>
    %286 = tpu.matmul %284, %285, %cst_84 {dimension_numbers = #tpu.dot_dimension_numbers<[1], [0], [0], [1], [0, 0, 1, 1], [], []>} : vector<16x32xbf16>, vector<32x96xbf16>, vector<16x96xf32> -> vector<16x96xf32>
    %c19 = arith.constant 19 : index
    %c0_85 = arith.constant 0 : index
    %287 = vector.load %arg1[%c19, %c0_85] : memref<32x128xf32, #tpu.memory_space<vmem>>, vector<1x96xf32>
    %288 = vector.broadcast %287 : vector<1x96xf32> to vector<16x96xf32>
    %289 = arith.addf %286, %288 : vector<16x96xf32>
    %290 = vector.extract_strided_slice %289 {offsets = [0, 0], sizes = [16, 32], strides = [1, 1]} : vector<16x96xf32> to vector<16x32xf32>
    %291 = vector.extract_strided_slice %289 {offsets = [0, 32], sizes = [16, 32], strides = [1, 1]} : vector<16x96xf32> to vector<16x32xf32>
    %292 = vector.extract_strided_slice %289 {offsets = [0, 64], sizes = [16, 32], strides = [1, 1]} : vector<16x96xf32> to vector<16x32xf32>
    %293 = vector.shape_cast %11 : vector<1x8x8xf32> to vector<1x8x8xf32>
    %294 = vector.broadcast %293 : vector<1x8x8xf32> to vector<2x8x8xf32>
    %cst_86 = arith.constant 0.353553385 : f32
    %295 = vector.broadcast %cst_86 : f32 to vector<16x32xf32>
    %296 = arith.mulf %290, %295 : vector<16x32xf32>
    %297 = arith.truncf %296 : vector<16x32xf32> to vector<16x32xbf16>
    %298 = arith.truncf %291 : vector<16x32xf32> to vector<16x32xbf16>
    %299 = arith.truncf %292 : vector<16x32xf32> to vector<16x32xbf16>
    %300 = vector.extract_strided_slice %297 {offsets = [0, 0], sizes = [16, 8], strides = [1, 1]} : vector<16x32xbf16> to vector<16x8xbf16>
    %301 = vector.shape_cast %300 : vector<16x8xbf16> to vector<2x8x8xbf16>
    %302 = vector.extract_strided_slice %298 {offsets = [0, 0], sizes = [16, 8], strides = [1, 1]} : vector<16x32xbf16> to vector<16x8xbf16>
    %303 = vector.shape_cast %302 : vector<16x8xbf16> to vector<2x8x8xbf16>
    %304 = vector.extract_strided_slice %299 {offsets = [0, 0], sizes = [16, 8], strides = [1, 1]} : vector<16x32xbf16> to vector<16x8xbf16>
    %305 = vector.shape_cast %304 : vector<16x8xbf16> to vector<2x8x8xbf16>
    "tpu.trace_start"() <{level = 10 : i32, message = "bqd,bkd->bqk"}> : () -> ()
    %cst_87 = arith.constant dense<0.000000e+00> : vector<2x8x8xf32>
    %306 = tpu.matmul %301, %303, %cst_87 {dimension_numbers = #tpu.dot_dimension_numbers<[2], [2], [1], [1], [0, 0, 0, 1, 1, 1], [0], [0]>} : vector<2x8x8xbf16>, vector<2x8x8xbf16>, vector<2x8x8xf32> -> vector<2x8x8xf32>
    "tpu.trace_stop"() : () -> ()
    %307 = arith.addf %306, %294 : vector<2x8x8xf32>
    %cst_88 = arith.constant dense<0xFF800000> : vector<2x8xf32>
    %308 = vector.multi_reduction <maximumf>, %307, %cst_88 [2] : vector<2x8x8xf32> to vector<2x8xf32>
    %309 = vector.shape_cast %308 : vector<2x8xf32> to vector<2x8x1xf32>
    %310 = vector.broadcast %309 : vector<2x8x1xf32> to vector<2x8x8xf32>
    %311 = arith.subf %307, %310 : vector<2x8x8xf32>
    %312 = math.exp %311 : vector<2x8x8xf32>
    %cst_89 = arith.constant dense<0.000000e+00> : vector<2x8xf32>
    %313 = vector.multi_reduction <add>, %312, %cst_89 [2] : vector<2x8x8xf32> to vector<2x8xf32>
    %314 = vector.shape_cast %313 : vector<2x8xf32> to vector<2x8x1xf32>
    %315 = tpu.reciprocal %314 {approx = true} : vector<2x8x1xf32> -> vector<2x8x1xf32>
    %316 = vector.broadcast %315 : vector<2x8x1xf32> to vector<2x8x8xf32>
    %317 = arith.mulf %312, %316 : vector<2x8x8xf32>
    %318 = arith.truncf %317 : vector<2x8x8xf32> to vector<2x8x8xbf16>
    "tpu.trace_start"() <{level = 10 : i32, message = "bqk,bkd->bqd"}> : () -> ()
    %cst_90 = arith.constant dense<0.000000e+00> : vector<2x8x8xf32>
    %319 = tpu.matmul %318, %305, %cst_90 {dimension_numbers = #tpu.dot_dimension_numbers<[2], [1], [1], [2], [0, 0, 0, 1, 1, 2], [0], [0]>} : vector<2x8x8xbf16>, vector<2x8x8xbf16>, vector<2x8x8xf32> -> vector<2x8x8xf32>
    "tpu.trace_stop"() : () -> ()
    %320 = vector.extract_strided_slice %297 {offsets = [0, 8], sizes = [16, 8], strides = [1, 1]} : vector<16x32xbf16> to vector<16x8xbf16>
    %321 = vector.shape_cast %320 : vector<16x8xbf16> to vector<2x8x8xbf16>
    %322 = vector.extract_strided_slice %298 {offsets = [0, 8], sizes = [16, 8], strides = [1, 1]} : vector<16x32xbf16> to vector<16x8xbf16>
    %323 = vector.shape_cast %322 : vector<16x8xbf16> to vector<2x8x8xbf16>
    %324 = vector.extract_strided_slice %299 {offsets = [0, 8], sizes = [16, 8], strides = [1, 1]} : vector<16x32xbf16> to vector<16x8xbf16>
    %325 = vector.shape_cast %324 : vector<16x8xbf16> to vector<2x8x8xbf16>
    "tpu.trace_start"() <{level = 10 : i32, message = "bqd,bkd->bqk"}> : () -> ()
    %cst_91 = arith.constant dense<0.000000e+00> : vector<2x8x8xf32>
    %326 = tpu.matmul %321, %323, %cst_91 {dimension_numbers = #tpu.dot_dimension_numbers<[2], [2], [1], [1], [0, 0, 0, 1, 1, 1], [0], [0]>} : vector<2x8x8xbf16>, vector<2x8x8xbf16>, vector<2x8x8xf32> -> vector<2x8x8xf32>
    "tpu.trace_stop"() : () -> ()
    %327 = arith.addf %326, %294 : vector<2x8x8xf32>
    %cst_92 = arith.constant dense<0xFF800000> : vector<2x8xf32>
    %328 = vector.multi_reduction <maximumf>, %327, %cst_92 [2] : vector<2x8x8xf32> to vector<2x8xf32>
    %329 = vector.shape_cast %328 : vector<2x8xf32> to vector<2x8x1xf32>
    %330 = vector.broadcast %329 : vector<2x8x1xf32> to vector<2x8x8xf32>
    %331 = arith.subf %327, %330 : vector<2x8x8xf32>
    %332 = math.exp %331 : vector<2x8x8xf32>
    %cst_93 = arith.constant dense<0.000000e+00> : vector<2x8xf32>
    %333 = vector.multi_reduction <add>, %332, %cst_93 [2] : vector<2x8x8xf32> to vector<2x8xf32>
    %334 = vector.shape_cast %333 : vector<2x8xf32> to vector<2x8x1xf32>
    %335 = tpu.reciprocal %334 {approx = true} : vector<2x8x1xf32> -> vector<2x8x1xf32>
    %336 = vector.broadcast %335 : vector<2x8x1xf32> to vector<2x8x8xf32>
    %337 = arith.mulf %332, %336 : vector<2x8x8xf32>
    %338 = arith.truncf %337 : vector<2x8x8xf32> to vector<2x8x8xbf16>
    "tpu.trace_start"() <{level = 10 : i32, message = "bqk,bkd->bqd"}> : () -> ()
    %cst_94 = arith.constant dense<0.000000e+00> : vector<2x8x8xf32>
    %339 = tpu.matmul %338, %325, %cst_94 {dimension_numbers = #tpu.dot_dimension_numbers<[2], [1], [1], [2], [0, 0, 0, 1, 1, 2], [0], [0]>} : vector<2x8x8xbf16>, vector<2x8x8xbf16>, vector<2x8x8xf32> -> vector<2x8x8xf32>
    "tpu.trace_stop"() : () -> ()
    %340 = vector.extract_strided_slice %297 {offsets = [0, 16], sizes = [16, 8], strides = [1, 1]} : vector<16x32xbf16> to vector<16x8xbf16>
    %341 = vector.shape_cast %340 : vector<16x8xbf16> to vector<2x8x8xbf16>
    %342 = vector.extract_strided_slice %298 {offsets = [0, 16], sizes = [16, 8], strides = [1, 1]} : vector<16x32xbf16> to vector<16x8xbf16>
    %343 = vector.shape_cast %342 : vector<16x8xbf16> to vector<2x8x8xbf16>
    %344 = vector.extract_strided_slice %299 {offsets = [0, 16], sizes = [16, 8], strides = [1, 1]} : vector<16x32xbf16> to vector<16x8xbf16>
    %345 = vector.shape_cast %344 : vector<16x8xbf16> to vector<2x8x8xbf16>
    "tpu.trace_start"() <{level = 10 : i32, message = "bqd,bkd->bqk"}> : () -> ()
    %cst_95 = arith.constant dense<0.000000e+00> : vector<2x8x8xf32>
    %346 = tpu.matmul %341, %343, %cst_95 {dimension_numbers = #tpu.dot_dimension_numbers<[2], [2], [1], [1], [0, 0, 0, 1, 1, 1], [0], [0]>} : vector<2x8x8xbf16>, vector<2x8x8xbf16>, vector<2x8x8xf32> -> vector<2x8x8xf32>
    "tpu.trace_stop"() : () -> ()
    %347 = arith.addf %346, %294 : vector<2x8x8xf32>
    %cst_96 = arith.constant dense<0xFF800000> : vector<2x8xf32>
    %348 = vector.multi_reduction <maximumf>, %347, %cst_96 [2] : vector<2x8x8xf32> to vector<2x8xf32>
    %349 = vector.shape_cast %348 : vector<2x8xf32> to vector<2x8x1xf32>
    %350 = vector.broadcast %349 : vector<2x8x1xf32> to vector<2x8x8xf32>
    %351 = arith.subf %347, %350 : vector<2x8x8xf32>
    %352 = math.exp %351 : vector<2x8x8xf32>
    %cst_97 = arith.constant dense<0.000000e+00> : vector<2x8xf32>
    %353 = vector.multi_reduction <add>, %352, %cst_97 [2] : vector<2x8x8xf32> to vector<2x8xf32>
    %354 = vector.shape_cast %353 : vector<2x8xf32> to vector<2x8x1xf32>
    %355 = tpu.reciprocal %354 {approx = true} : vector<2x8x1xf32> -> vector<2x8x1xf32>
    %356 = vector.broadcast %355 : vector<2x8x1xf32> to vector<2x8x8xf32>
    %357 = arith.mulf %352, %356 : vector<2x8x8xf32>
    %358 = arith.truncf %357 : vector<2x8x8xf32> to vector<2x8x8xbf16>
    "tpu.trace_start"() <{level = 10 : i32, message = "bqk,bkd->bqd"}> : () -> ()
    %cst_98 = arith.constant dense<0.000000e+00> : vector<2x8x8xf32>
    %359 = tpu.matmul %358, %345, %cst_98 {dimension_numbers = #tpu.dot_dimension_numbers<[2], [1], [1], [2], [0, 0, 0, 1, 1, 2], [0], [0]>} : vector<2x8x8xbf16>, vector<2x8x8xbf16>, vector<2x8x8xf32> -> vector<2x8x8xf32>
    "tpu.trace_stop"() : () -> ()
    %360 = vector.extract_strided_slice %297 {offsets = [0, 24], sizes = [16, 8], strides = [1, 1]} : vector<16x32xbf16> to vector<16x8xbf16>
    %361 = vector.shape_cast %360 : vector<16x8xbf16> to vector<2x8x8xbf16>
    %362 = vector.extract_strided_slice %298 {offsets = [0, 24], sizes = [16, 8], strides = [1, 1]} : vector<16x32xbf16> to vector<16x8xbf16>
    %363 = vector.shape_cast %362 : vector<16x8xbf16> to vector<2x8x8xbf16>
    %364 = vector.extract_strided_slice %299 {offsets = [0, 24], sizes = [16, 8], strides = [1, 1]} : vector<16x32xbf16> to vector<16x8xbf16>
    %365 = vector.shape_cast %364 : vector<16x8xbf16> to vector<2x8x8xbf16>
    "tpu.trace_start"() <{level = 10 : i32, message = "bqd,bkd->bqk"}> : () -> ()
    %cst_99 = arith.constant dense<0.000000e+00> : vector<2x8x8xf32>
    %366 = tpu.matmul %361, %363, %cst_99 {dimension_numbers = #tpu.dot_dimension_numbers<[2], [2], [1], [1], [0, 0, 0, 1, 1, 1], [0], [0]>} : vector<2x8x8xbf16>, vector<2x8x8xbf16>, vector<2x8x8xf32> -> vector<2x8x8xf32>
    "tpu.trace_stop"() : () -> ()
    %367 = arith.addf %366, %294 : vector<2x8x8xf32>
    %cst_100 = arith.constant dense<0xFF800000> : vector<2x8xf32>
    %368 = vector.multi_reduction <maximumf>, %367, %cst_100 [2] : vector<2x8x8xf32> to vector<2x8xf32>
    %369 = vector.shape_cast %368 : vector<2x8xf32> to vector<2x8x1xf32>
    %370 = vector.broadcast %369 : vector<2x8x1xf32> to vector<2x8x8xf32>
    %371 = arith.subf %367, %370 : vector<2x8x8xf32>
    %372 = math.exp %371 : vector<2x8x8xf32>
    %cst_101 = arith.constant dense<0.000000e+00> : vector<2x8xf32>
    %373 = vector.multi_reduction <add>, %372, %cst_101 [2] : vector<2x8x8xf32> to vector<2x8xf32>
    %374 = vector.shape_cast %373 : vector<2x8xf32> to vector<2x8x1xf32>
    %375 = tpu.reciprocal %374 {approx = true} : vector<2x8x1xf32> -> vector<2x8x1xf32>
    %376 = vector.broadcast %375 : vector<2x8x1xf32> to vector<2x8x8xf32>
    %377 = arith.mulf %372, %376 : vector<2x8x8xf32>
    %378 = arith.truncf %377 : vector<2x8x8xf32> to vector<2x8x8xbf16>
    "tpu.trace_start"() <{level = 10 : i32, message = "bqk,bkd->bqd"}> : () -> ()
    %cst_102 = arith.constant dense<0.000000e+00> : vector<2x8x8xf32>
    %379 = tpu.matmul %378, %365, %cst_102 {dimension_numbers = #tpu.dot_dimension_numbers<[2], [1], [1], [2], [0, 0, 0, 1, 1, 2], [0], [0]>} : vector<2x8x8xbf16>, vector<2x8x8xbf16>, vector<2x8x8xf32> -> vector<2x8x8xf32>
    "tpu.trace_stop"() : () -> ()
    %380 = tpu.concatenate %319, %339, %359, %379 in 2 : vector<2x8x8xf32>, vector<2x8x8xf32>, vector<2x8x8xf32>, vector<2x8x8xf32> -> vector<2x8x32xf32>
    %381 = vector.shape_cast %380 : vector<2x8x32xf32> to vector<16x32xf32>
    %382 = arith.truncf %381 : vector<16x32xf32> to vector<16x32xbf16>
    %c368 = arith.constant 368 : index
    %c0_103 = arith.constant 0 : index
    %383 = vector.load %arg0[%c368, %c0_103] : memref<624x128xbf16, #tpu.memory_space<vmem>>, vector<32x32xbf16>
    %cst_104 = arith.constant dense<0.000000e+00> : vector<16x32xf32>
    %384 = tpu.matmul %382, %383, %cst_104 {dimension_numbers = #tpu.dot_dimension_numbers<[1], [0], [0], [1], [0, 0, 1, 1], [], []>} : vector<16x32xbf16>, vector<32x32xbf16>, vector<16x32xf32> -> vector<16x32xf32>
    %c20 = arith.constant 20 : index
    %c0_105 = arith.constant 0 : index
    %385 = vector.load %arg1[%c20, %c0_105] : memref<32x128xf32, #tpu.memory_space<vmem>>, vector<1x32xf32>
    %386 = vector.broadcast %385 : vector<1x32xf32> to vector<16x32xf32>
    %387 = arith.addf %384, %386 : vector<16x32xf32>
    %388 = arith.addf %259, %387 : vector<16x32xf32>
    %cst_106 = arith.constant dense<0.000000e+00> : vector<16xf32>
    %389 = vector.multi_reduction <add>, %388, %cst_106 [1] : vector<16x32xf32> to vector<16xf32>
    %390 = vector.shape_cast %389 : vector<16xf32> to vector<16x1xf32>
    %cst_107 = arith.constant 3.200000e+01 : f32
    %391 = vector.broadcast %cst_107 : f32 to vector<16x1xf32>
    %392 = arith.divf %390, %391 : vector<16x1xf32>
    %393 = arith.mulf %388, %388 : vector<16x32xf32>
    %cst_108 = arith.constant dense<0.000000e+00> : vector<16xf32>
    %394 = vector.multi_reduction <add>, %393, %cst_108 [1] : vector<16x32xf32> to vector<16xf32>
    %395 = vector.shape_cast %394 : vector<16xf32> to vector<16x1xf32>
    %cst_109 = arith.constant 3.200000e+01 : f32
    %396 = vector.broadcast %cst_109 : f32 to vector<16x1xf32>
    %397 = arith.divf %395, %396 : vector<16x1xf32>
    %398 = arith.mulf %392, %392 : vector<16x1xf32>
    %399 = arith.subf %397, %398 : vector<16x1xf32>
    %400 = vector.broadcast %392 : vector<16x1xf32> to vector<16x32xf32>
    %401 = arith.subf %388, %400 : vector<16x32xf32>
    %cst_110 = arith.constant 9.99999974E-6 : f32
    %402 = vector.broadcast %cst_110 : f32 to vector<16x1xf32>
    %403 = arith.addf %399, %402 : vector<16x1xf32>
    %404 = math.rsqrt %403 : vector<16x1xf32>
    %405 = vector.broadcast %404 : vector<16x1xf32> to vector<16x32xf32>
    %406 = arith.mulf %401, %405 : vector<16x32xf32>
    %c13 = arith.constant 13 : index
    %c0_111 = arith.constant 0 : index
    %407 = vector.load %arg1[%c13, %c0_111] : memref<32x128xf32, #tpu.memory_space<vmem>>, vector<1x32xf32>
    %408 = vector.broadcast %407 : vector<1x32xf32> to vector<16x32xf32>
    %409 = arith.mulf %406, %408 : vector<16x32xf32>
    %c14 = arith.constant 14 : index
    %c0_112 = arith.constant 0 : index
    %410 = vector.load %arg1[%c14, %c0_112] : memref<32x128xf32, #tpu.memory_space<vmem>>, vector<1x32xf32>
    %411 = vector.broadcast %410 : vector<1x32xf32> to vector<16x32xf32>
    %412 = arith.addf %409, %411 : vector<16x32xf32>
    %413 = arith.truncf %412 : vector<16x32xf32> to vector<16x32xbf16>
    %c400 = arith.constant 400 : index
    %c0_113 = arith.constant 0 : index
    %414 = vector.load %arg0[%c400, %c0_113] : memref<624x128xbf16, #tpu.memory_space<vmem>>, vector<32x32xbf16>
    %cst_114 = arith.constant dense<0.000000e+00> : vector<16x32xf32>
    %415 = tpu.matmul %413, %414, %cst_114 {dimension_numbers = #tpu.dot_dimension_numbers<[1], [0], [0], [1], [0, 0, 1, 1], [], []>} : vector<16x32xbf16>, vector<32x32xbf16>, vector<16x32xf32> -> vector<16x32xf32>
    %c21 = arith.constant 21 : index
    %c0_115 = arith.constant 0 : index
    %416 = vector.load %arg1[%c21, %c0_115] : memref<32x128xf32, #tpu.memory_space<vmem>>, vector<1x32xf32>
    %417 = vector.broadcast %416 : vector<1x32xf32> to vector<16x32xf32>
    %418 = arith.addf %415, %417 : vector<16x32xf32>
    %419 = arith.truncf %247 : vector<16x32xf32> to vector<16x32xbf16>
    %c432 = arith.constant 432 : index
    %c0_116 = arith.constant 0 : index
    %420 = vector.load %arg0[%c432, %c0_116] : memref<624x128xbf16, #tpu.memory_space<vmem>>, vector<32x64xbf16>
    %cst_117 = arith.constant dense<0.000000e+00> : vector<16x64xf32>
    %421 = tpu.matmul %419, %420, %cst_117 {dimension_numbers = #tpu.dot_dimension_numbers<[1], [0], [0], [1], [0, 0, 1, 1], [], []>} : vector<16x32xbf16>, vector<32x64xbf16>, vector<16x64xf32> -> vector<16x64xf32>
    %c22 = arith.constant 22 : index
    %c0_118 = arith.constant 0 : index
    %422 = vector.load %arg1[%c22, %c0_118] : memref<32x128xf32, #tpu.memory_space<vmem>>, vector<1x64xf32>
    %423 = vector.broadcast %422 : vector<1x64xf32> to vector<16x64xf32>
    %424 = arith.addf %421, %423 : vector<16x64xf32>
    %425 = vector.extract_strided_slice %424 {offsets = [0, 0], sizes = [16, 32], strides = [1, 1]} : vector<16x64xf32> to vector<16x32xf32>
    %426 = vector.extract_strided_slice %424 {offsets = [0, 32], sizes = [16, 32], strides = [1, 1]} : vector<16x64xf32> to vector<16x32xf32>
    %427 = vector.shape_cast %4 : vector<2x1x8xf32> to vector<2x1x8xf32>
    %428 = vector.broadcast %427 : vector<2x1x8xf32> to vector<2x8x8xf32>
    %cst_119 = arith.constant 0.353553385 : f32
    %429 = vector.broadcast %cst_119 : f32 to vector<16x32xf32>
    %430 = arith.mulf %418, %429 : vector<16x32xf32>
    %431 = arith.truncf %430 : vector<16x32xf32> to vector<16x32xbf16>
    %432 = arith.truncf %425 : vector<16x32xf32> to vector<16x32xbf16>
    %433 = arith.truncf %426 : vector<16x32xf32> to vector<16x32xbf16>
    %434 = vector.extract_strided_slice %431 {offsets = [0, 0], sizes = [16, 8], strides = [1, 1]} : vector<16x32xbf16> to vector<16x8xbf16>
    %435 = vector.shape_cast %434 : vector<16x8xbf16> to vector<2x8x8xbf16>
    %436 = vector.extract_strided_slice %432 {offsets = [0, 0], sizes = [16, 8], strides = [1, 1]} : vector<16x32xbf16> to vector<16x8xbf16>
    %437 = vector.shape_cast %436 : vector<16x8xbf16> to vector<2x8x8xbf16>
    %438 = vector.extract_strided_slice %433 {offsets = [0, 0], sizes = [16, 8], strides = [1, 1]} : vector<16x32xbf16> to vector<16x8xbf16>
    %439 = vector.shape_cast %438 : vector<16x8xbf16> to vector<2x8x8xbf16>
    "tpu.trace_start"() <{level = 10 : i32, message = "bqd,bkd->bqk"}> : () -> ()
    %cst_120 = arith.constant dense<0.000000e+00> : vector<2x8x8xf32>
    %440 = tpu.matmul %435, %437, %cst_120 {dimension_numbers = #tpu.dot_dimension_numbers<[2], [2], [1], [1], [0, 0, 0, 1, 1, 1], [0], [0]>} : vector<2x8x8xbf16>, vector<2x8x8xbf16>, vector<2x8x8xf32> -> vector<2x8x8xf32>
    "tpu.trace_stop"() : () -> ()
    %441 = arith.addf %440, %428 : vector<2x8x8xf32>
    %cst_121 = arith.constant dense<0xFF800000> : vector<2x8xf32>
    %442 = vector.multi_reduction <maximumf>, %441, %cst_121 [2] : vector<2x8x8xf32> to vector<2x8xf32>
    %443 = vector.shape_cast %442 : vector<2x8xf32> to vector<2x8x1xf32>
    %444 = vector.broadcast %443 : vector<2x8x1xf32> to vector<2x8x8xf32>
    %445 = arith.subf %441, %444 : vector<2x8x8xf32>
    %446 = math.exp %445 : vector<2x8x8xf32>
    %cst_122 = arith.constant dense<0.000000e+00> : vector<2x8xf32>
    %447 = vector.multi_reduction <add>, %446, %cst_122 [2] : vector<2x8x8xf32> to vector<2x8xf32>
    %448 = vector.shape_cast %447 : vector<2x8xf32> to vector<2x8x1xf32>
    %449 = tpu.reciprocal %448 {approx = true} : vector<2x8x1xf32> -> vector<2x8x1xf32>
    %450 = vector.broadcast %449 : vector<2x8x1xf32> to vector<2x8x8xf32>
    %451 = arith.mulf %446, %450 : vector<2x8x8xf32>
    %452 = arith.truncf %451 : vector<2x8x8xf32> to vector<2x8x8xbf16>
    "tpu.trace_start"() <{level = 10 : i32, message = "bqk,bkd->bqd"}> : () -> ()
    %cst_123 = arith.constant dense<0.000000e+00> : vector<2x8x8xf32>
    %453 = tpu.matmul %452, %439, %cst_123 {dimension_numbers = #tpu.dot_dimension_numbers<[2], [1], [1], [2], [0, 0, 0, 1, 1, 2], [0], [0]>} : vector<2x8x8xbf16>, vector<2x8x8xbf16>, vector<2x8x8xf32> -> vector<2x8x8xf32>
    "tpu.trace_stop"() : () -> ()
    %454 = vector.extract_strided_slice %431 {offsets = [0, 8], sizes = [16, 8], strides = [1, 1]} : vector<16x32xbf16> to vector<16x8xbf16>
    %455 = vector.shape_cast %454 : vector<16x8xbf16> to vector<2x8x8xbf16>
    %456 = vector.extract_strided_slice %432 {offsets = [0, 8], sizes = [16, 8], strides = [1, 1]} : vector<16x32xbf16> to vector<16x8xbf16>
    %457 = vector.shape_cast %456 : vector<16x8xbf16> to vector<2x8x8xbf16>
    %458 = vector.extract_strided_slice %433 {offsets = [0, 8], sizes = [16, 8], strides = [1, 1]} : vector<16x32xbf16> to vector<16x8xbf16>
    %459 = vector.shape_cast %458 : vector<16x8xbf16> to vector<2x8x8xbf16>
    "tpu.trace_start"() <{level = 10 : i32, message = "bqd,bkd->bqk"}> : () -> ()
    %cst_124 = arith.constant dense<0.000000e+00> : vector<2x8x8xf32>
    %460 = tpu.matmul %455, %457, %cst_124 {dimension_numbers = #tpu.dot_dimension_numbers<[2], [2], [1], [1], [0, 0, 0, 1, 1, 1], [0], [0]>} : vector<2x8x8xbf16>, vector<2x8x8xbf16>, vector<2x8x8xf32> -> vector<2x8x8xf32>
    "tpu.trace_stop"() : () -> ()
    %461 = arith.addf %460, %428 : vector<2x8x8xf32>
    %cst_125 = arith.constant dense<0xFF800000> : vector<2x8xf32>
    %462 = vector.multi_reduction <maximumf>, %461, %cst_125 [2] : vector<2x8x8xf32> to vector<2x8xf32>
    %463 = vector.shape_cast %462 : vector<2x8xf32> to vector<2x8x1xf32>
    %464 = vector.broadcast %463 : vector<2x8x1xf32> to vector<2x8x8xf32>
    %465 = arith.subf %461, %464 : vector<2x8x8xf32>
    %466 = math.exp %465 : vector<2x8x8xf32>
    %cst_126 = arith.constant dense<0.000000e+00> : vector<2x8xf32>
    %467 = vector.multi_reduction <add>, %466, %cst_126 [2] : vector<2x8x8xf32> to vector<2x8xf32>
    %468 = vector.shape_cast %467 : vector<2x8xf32> to vector<2x8x1xf32>
    %469 = tpu.reciprocal %468 {approx = true} : vector<2x8x1xf32> -> vector<2x8x1xf32>
    %470 = vector.broadcast %469 : vector<2x8x1xf32> to vector<2x8x8xf32>
    %471 = arith.mulf %466, %470 : vector<2x8x8xf32>
    %472 = arith.truncf %471 : vector<2x8x8xf32> to vector<2x8x8xbf16>
    "tpu.trace_start"() <{level = 10 : i32, message = "bqk,bkd->bqd"}> : () -> ()
    %cst_127 = arith.constant dense<0.000000e+00> : vector<2x8x8xf32>
    %473 = tpu.matmul %472, %459, %cst_127 {dimension_numbers = #tpu.dot_dimension_numbers<[2], [1], [1], [2], [0, 0, 0, 1, 1, 2], [0], [0]>} : vector<2x8x8xbf16>, vector<2x8x8xbf16>, vector<2x8x8xf32> -> vector<2x8x8xf32>
    "tpu.trace_stop"() : () -> ()
    %474 = vector.extract_strided_slice %431 {offsets = [0, 16], sizes = [16, 8], strides = [1, 1]} : vector<16x32xbf16> to vector<16x8xbf16>
    %475 = vector.shape_cast %474 : vector<16x8xbf16> to vector<2x8x8xbf16>
    %476 = vector.extract_strided_slice %432 {offsets = [0, 16], sizes = [16, 8], strides = [1, 1]} : vector<16x32xbf16> to vector<16x8xbf16>
    %477 = vector.shape_cast %476 : vector<16x8xbf16> to vector<2x8x8xbf16>
    %478 = vector.extract_strided_slice %433 {offsets = [0, 16], sizes = [16, 8], strides = [1, 1]} : vector<16x32xbf16> to vector<16x8xbf16>
    %479 = vector.shape_cast %478 : vector<16x8xbf16> to vector<2x8x8xbf16>
    "tpu.trace_start"() <{level = 10 : i32, message = "bqd,bkd->bqk"}> : () -> ()
    %cst_128 = arith.constant dense<0.000000e+00> : vector<2x8x8xf32>
    %480 = tpu.matmul %475, %477, %cst_128 {dimension_numbers = #tpu.dot_dimension_numbers<[2], [2], [1], [1], [0, 0, 0, 1, 1, 1], [0], [0]>} : vector<2x8x8xbf16>, vector<2x8x8xbf16>, vector<2x8x8xf32> -> vector<2x8x8xf32>
    "tpu.trace_stop"() : () -> ()
    %481 = arith.addf %480, %428 : vector<2x8x8xf32>
    %cst_129 = arith.constant dense<0xFF800000> : vector<2x8xf32>
    %482 = vector.multi_reduction <maximumf>, %481, %cst_129 [2] : vector<2x8x8xf32> to vector<2x8xf32>
    %483 = vector.shape_cast %482 : vector<2x8xf32> to vector<2x8x1xf32>
    %484 = vector.broadcast %483 : vector<2x8x1xf32> to vector<2x8x8xf32>
    %485 = arith.subf %481, %484 : vector<2x8x8xf32>
    %486 = math.exp %485 : vector<2x8x8xf32>
    %cst_130 = arith.constant dense<0.000000e+00> : vector<2x8xf32>
    %487 = vector.multi_reduction <add>, %486, %cst_130 [2] : vector<2x8x8xf32> to vector<2x8xf32>
    %488 = vector.shape_cast %487 : vector<2x8xf32> to vector<2x8x1xf32>
    %489 = tpu.reciprocal %488 {approx = true} : vector<2x8x1xf32> -> vector<2x8x1xf32>
    %490 = vector.broadcast %489 : vector<2x8x1xf32> to vector<2x8x8xf32>
    %491 = arith.mulf %486, %490 : vector<2x8x8xf32>
    %492 = arith.truncf %491 : vector<2x8x8xf32> to vector<2x8x8xbf16>
    "tpu.trace_start"() <{level = 10 : i32, message = "bqk,bkd->bqd"}> : () -> ()
    %cst_131 = arith.constant dense<0.000000e+00> : vector<2x8x8xf32>
    %493 = tpu.matmul %492, %479, %cst_131 {dimension_numbers = #tpu.dot_dimension_numbers<[2], [1], [1], [2], [0, 0, 0, 1, 1, 2], [0], [0]>} : vector<2x8x8xbf16>, vector<2x8x8xbf16>, vector<2x8x8xf32> -> vector<2x8x8xf32>
    "tpu.trace_stop"() : () -> ()
    %494 = vector.extract_strided_slice %431 {offsets = [0, 24], sizes = [16, 8], strides = [1, 1]} : vector<16x32xbf16> to vector<16x8xbf16>
    %495 = vector.shape_cast %494 : vector<16x8xbf16> to vector<2x8x8xbf16>
    %496 = vector.extract_strided_slice %432 {offsets = [0, 24], sizes = [16, 8], strides = [1, 1]} : vector<16x32xbf16> to vector<16x8xbf16>
    %497 = vector.shape_cast %496 : vector<16x8xbf16> to vector<2x8x8xbf16>
    %498 = vector.extract_strided_slice %433 {offsets = [0, 24], sizes = [16, 8], strides = [1, 1]} : vector<16x32xbf16> to vector<16x8xbf16>
    %499 = vector.shape_cast %498 : vector<16x8xbf16> to vector<2x8x8xbf16>
    "tpu.trace_start"() <{level = 10 : i32, message = "bqd,bkd->bqk"}> : () -> ()
    %cst_132 = arith.constant dense<0.000000e+00> : vector<2x8x8xf32>
    %500 = tpu.matmul %495, %497, %cst_132 {dimension_numbers = #tpu.dot_dimension_numbers<[2], [2], [1], [1], [0, 0, 0, 1, 1, 1], [0], [0]>} : vector<2x8x8xbf16>, vector<2x8x8xbf16>, vector<2x8x8xf32> -> vector<2x8x8xf32>
    "tpu.trace_stop"() : () -> ()
    %501 = arith.addf %500, %428 : vector<2x8x8xf32>
    %cst_133 = arith.constant dense<0xFF800000> : vector<2x8xf32>
    %502 = vector.multi_reduction <maximumf>, %501, %cst_133 [2] : vector<2x8x8xf32> to vector<2x8xf32>
    %503 = vector.shape_cast %502 : vector<2x8xf32> to vector<2x8x1xf32>
    %504 = vector.broadcast %503 : vector<2x8x1xf32> to vector<2x8x8xf32>
    %505 = arith.subf %501, %504 : vector<2x8x8xf32>
    %506 = math.exp %505 : vector<2x8x8xf32>
    %cst_134 = arith.constant dense<0.000000e+00> : vector<2x8xf32>
    %507 = vector.multi_reduction <add>, %506, %cst_134 [2] : vector<2x8x8xf32> to vector<2x8xf32>
    %508 = vector.shape_cast %507 : vector<2x8xf32> to vector<2x8x1xf32>
    %509 = tpu.reciprocal %508 {approx = true} : vector<2x8x1xf32> -> vector<2x8x1xf32>
    %510 = vector.broadcast %509 : vector<2x8x1xf32> to vector<2x8x8xf32>
    %511 = arith.mulf %506, %510 : vector<2x8x8xf32>
    %512 = arith.truncf %511 : vector<2x8x8xf32> to vector<2x8x8xbf16>
    "tpu.trace_start"() <{level = 10 : i32, message = "bqk,bkd->bqd"}> : () -> ()
    %cst_135 = arith.constant dense<0.000000e+00> : vector<2x8x8xf32>
    %513 = tpu.matmul %512, %499, %cst_135 {dimension_numbers = #tpu.dot_dimension_numbers<[2], [1], [1], [2], [0, 0, 0, 1, 1, 2], [0], [0]>} : vector<2x8x8xbf16>, vector<2x8x8xbf16>, vector<2x8x8xf32> -> vector<2x8x8xf32>
    "tpu.trace_stop"() : () -> ()
    %514 = tpu.concatenate %453, %473, %493, %513 in 2 : vector<2x8x8xf32>, vector<2x8x8xf32>, vector<2x8x8xf32>, vector<2x8x8xf32> -> vector<2x8x32xf32>
    %515 = vector.shape_cast %514 : vector<2x8x32xf32> to vector<16x32xf32>
    %516 = arith.truncf %515 : vector<16x32xf32> to vector<16x32xbf16>
    %c464 = arith.constant 464 : index
    %c0_136 = arith.constant 0 : index
    %517 = vector.load %arg0[%c464, %c0_136] : memref<624x128xbf16, #tpu.memory_space<vmem>>, vector<32x32xbf16>
    %cst_137 = arith.constant dense<0.000000e+00> : vector<16x32xf32>
    %518 = tpu.matmul %516, %517, %cst_137 {dimension_numbers = #tpu.dot_dimension_numbers<[1], [0], [0], [1], [0, 0, 1, 1], [], []>} : vector<16x32xbf16>, vector<32x32xbf16>, vector<16x32xf32> -> vector<16x32xf32>
    %c23 = arith.constant 23 : index
    %c0_138 = arith.constant 0 : index
    %519 = vector.load %arg1[%c23, %c0_138] : memref<32x128xf32, #tpu.memory_space<vmem>>, vector<1x32xf32>
    %520 = vector.broadcast %519 : vector<1x32xf32> to vector<16x32xf32>
    %521 = arith.addf %518, %520 : vector<16x32xf32>
    %522 = arith.addf %388, %521 : vector<16x32xf32>
    %cst_139 = arith.constant dense<0.000000e+00> : vector<16xf32>
    %523 = vector.multi_reduction <add>, %522, %cst_139 [1] : vector<16x32xf32> to vector<16xf32>
    %524 = vector.shape_cast %523 : vector<16xf32> to vector<16x1xf32>
    %cst_140 = arith.constant 3.200000e+01 : f32
    %525 = vector.broadcast %cst_140 : f32 to vector<16x1xf32>
    %526 = arith.divf %524, %525 : vector<16x1xf32>
    %527 = arith.mulf %522, %522 : vector<16x32xf32>
    %cst_141 = arith.constant dense<0.000000e+00> : vector<16xf32>
    %528 = vector.multi_reduction <add>, %527, %cst_141 [1] : vector<16x32xf32> to vector<16xf32>
    %529 = vector.shape_cast %528 : vector<16xf32> to vector<16x1xf32>
    %cst_142 = arith.constant 3.200000e+01 : f32
    %530 = vector.broadcast %cst_142 : f32 to vector<16x1xf32>
    %531 = arith.divf %529, %530 : vector<16x1xf32>
    %532 = arith.mulf %526, %526 : vector<16x1xf32>
    %533 = arith.subf %531, %532 : vector<16x1xf32>
    %534 = vector.broadcast %526 : vector<16x1xf32> to vector<16x32xf32>
    %535 = arith.subf %522, %534 : vector<16x32xf32>
    %cst_143 = arith.constant 9.99999974E-6 : f32
    %536 = vector.broadcast %cst_143 : f32 to vector<16x1xf32>
    %537 = arith.addf %533, %536 : vector<16x1xf32>
    %538 = math.rsqrt %537 : vector<16x1xf32>
    %539 = vector.broadcast %538 : vector<16x1xf32> to vector<16x32xf32>
    %540 = arith.mulf %535, %539 : vector<16x32xf32>
    %c15 = arith.constant 15 : index
    %c0_144 = arith.constant 0 : index
    %541 = vector.load %arg1[%c15, %c0_144] : memref<32x128xf32, #tpu.memory_space<vmem>>, vector<1x32xf32>
    %542 = vector.broadcast %541 : vector<1x32xf32> to vector<16x32xf32>
    %543 = arith.mulf %540, %542 : vector<16x32xf32>
    %c16_145 = arith.constant 16 : index
    %c0_146 = arith.constant 0 : index
    %544 = vector.load %arg1[%c16_145, %c0_146] : memref<32x128xf32, #tpu.memory_space<vmem>>, vector<1x32xf32>
    %545 = vector.broadcast %544 : vector<1x32xf32> to vector<16x32xf32>
    %546 = arith.addf %543, %545 : vector<16x32xf32>
    %547 = arith.truncf %546 : vector<16x32xf32> to vector<16x32xbf16>
    %c496 = arith.constant 496 : index
    %c0_147 = arith.constant 0 : index
    %548 = vector.load %arg0[%c496, %c0_147] : memref<624x128xbf16, #tpu.memory_space<vmem>>, vector<32x64xbf16>
    %cst_148 = arith.constant dense<0.000000e+00> : vector<16x64xf32>
    %549 = tpu.matmul %547, %548, %cst_148 {dimension_numbers = #tpu.dot_dimension_numbers<[1], [0], [0], [1], [0, 0, 1, 1], [], []>} : vector<16x32xbf16>, vector<32x64xbf16>, vector<16x64xf32> -> vector<16x64xf32>
    %c24 = arith.constant 24 : index
    %c0_149 = arith.constant 0 : index
    %550 = vector.load %arg1[%c24, %c0_149] : memref<32x128xf32, #tpu.memory_space<vmem>>, vector<1x64xf32>
    %551 = vector.broadcast %550 : vector<1x64xf32> to vector<16x64xf32>
    %552 = arith.addf %549, %551 : vector<16x64xf32>
    %553 = arith.mulf %552, %552 : vector<16x64xf32>
    %554 = arith.mulf %552, %553 : vector<16x64xf32>
    %cst_150 = arith.constant 4.471500e-02 : f32
    %555 = vector.broadcast %cst_150 : f32 to vector<16x64xf32>
    %556 = arith.mulf %555, %554 : vector<16x64xf32>
    %557 = arith.addf %552, %556 : vector<16x64xf32>
    %cst_151 = arith.constant 0.797884583 : f32
    %558 = vector.broadcast %cst_151 : f32 to vector<16x64xf32>
    %559 = arith.mulf %558, %557 : vector<16x64xf32>
    %560 = math.tanh %559 : vector<16x64xf32>
    %cst_152 = arith.constant 1.000000e+00 : f32
    %561 = vector.broadcast %cst_152 : f32 to vector<16x64xf32>
    %562 = arith.addf %561, %560 : vector<16x64xf32>
    %cst_153 = arith.constant 5.000000e-01 : f32
    %563 = vector.broadcast %cst_153 : f32 to vector<16x64xf32>
    %564 = arith.mulf %563, %562 : vector<16x64xf32>
    %565 = arith.mulf %552, %564 : vector<16x64xf32>
    %566 = arith.truncf %565 : vector<16x64xf32> to vector<16x64xbf16>
    %c528 = arith.constant 528 : index
    %c0_154 = arith.constant 0 : index
    %567 = vector.load %arg0[%c528, %c0_154] : memref<624x128xbf16, #tpu.memory_space<vmem>>, vector<64x32xbf16>
    %cst_155 = arith.constant dense<0.000000e+00> : vector<16x32xf32>
    %568 = tpu.matmul %566, %567, %cst_155 {dimension_numbers = #tpu.dot_dimension_numbers<[1], [0], [0], [1], [0, 0, 1, 1], [], []>} : vector<16x64xbf16>, vector<64x32xbf16>, vector<16x32xf32> -> vector<16x32xf32>
    %c25 = arith.constant 25 : index
    %c0_156 = arith.constant 0 : index
    %569 = vector.load %arg1[%c25, %c0_156] : memref<32x128xf32, #tpu.memory_space<vmem>>, vector<1x32xf32>
    %570 = vector.broadcast %569 : vector<1x32xf32> to vector<16x32xf32>
    %571 = arith.addf %568, %570 : vector<16x32xf32>
    %572 = arith.addf %522, %571 : vector<16x32xf32>
    %cst_157 = arith.constant dense<0.000000e+00> : vector<16xf32>
    %573 = vector.multi_reduction <add>, %572, %cst_157 [1] : vector<16x32xf32> to vector<16xf32>
    %574 = vector.shape_cast %573 : vector<16xf32> to vector<16x1xf32>
    %cst_158 = arith.constant 3.200000e+01 : f32
    %575 = vector.broadcast %cst_158 : f32 to vector<16x1xf32>
    %576 = arith.divf %574, %575 : vector<16x1xf32>
    %577 = arith.mulf %572, %572 : vector<16x32xf32>
    %cst_159 = arith.constant dense<0.000000e+00> : vector<16xf32>
    %578 = vector.multi_reduction <add>, %577, %cst_159 [1] : vector<16x32xf32> to vector<16xf32>
    %579 = vector.shape_cast %578 : vector<16xf32> to vector<16x1xf32>
    %cst_160 = arith.constant 3.200000e+01 : f32
    %580 = vector.broadcast %cst_160 : f32 to vector<16x1xf32>
    %581 = arith.divf %579, %580 : vector<16x1xf32>
    %582 = arith.mulf %576, %576 : vector<16x1xf32>
    %583 = arith.subf %581, %582 : vector<16x1xf32>
    %584 = vector.broadcast %576 : vector<16x1xf32> to vector<16x32xf32>
    %585 = arith.subf %572, %584 : vector<16x32xf32>
    %cst_161 = arith.constant 9.99999974E-6 : f32
    %586 = vector.broadcast %cst_161 : f32 to vector<16x1xf32>
    %587 = arith.addf %583, %586 : vector<16x1xf32>
    %588 = math.rsqrt %587 : vector<16x1xf32>
    %589 = vector.broadcast %588 : vector<16x1xf32> to vector<16x32xf32>
    %590 = arith.mulf %585, %589 : vector<16x32xf32>
    %c17 = arith.constant 17 : index
    %c0_162 = arith.constant 0 : index
    %591 = vector.load %arg1[%c17, %c0_162] : memref<32x128xf32, #tpu.memory_space<vmem>>, vector<1x32xf32>
    %592 = vector.broadcast %591 : vector<1x32xf32> to vector<16x32xf32>
    %593 = arith.mulf %590, %592 : vector<16x32xf32>
    %c18 = arith.constant 18 : index
    %c0_163 = arith.constant 0 : index
    %594 = vector.load %arg1[%c18, %c0_163] : memref<32x128xf32, #tpu.memory_space<vmem>>, vector<1x32xf32>
    %595 = vector.broadcast %594 : vector<1x32xf32> to vector<16x32xf32>
    %596 = arith.addf %593, %595 : vector<16x32xf32>
    %597 = arith.truncf %596 : vector<16x32xf32> to vector<16x32xbf16>
    %c592 = arith.constant 592 : index
    %c0_164 = arith.constant 0 : index
    %598 = vector.load %arg0[%c592, %c0_164] : memref<624x128xbf16, #tpu.memory_space<vmem>>, vector<32x128xbf16>
    %cst_165 = arith.constant dense<0.000000e+00> : vector<16x128xf32>
    %599 = tpu.matmul %597, %598, %cst_165 {dimension_numbers = #tpu.dot_dimension_numbers<[1], [0], [0], [1], [0, 0, 1, 1], [], []>} : vector<16x32xbf16>, vector<32x128xbf16>, vector<16x128xf32> -> vector<16x128xf32>
    %c26 = arith.constant 26 : index
    %c0_166 = arith.constant 0 : index
    %600 = vector.load %arg1[%c26, %c0_166] : memref<32x128xf32, #tpu.memory_space<vmem>>, vector<1x128xf32>
    %601 = vector.broadcast %600 : vector<1x128xf32> to vector<16x128xf32>
    %602 = arith.addf %599, %601 : vector<16x128xf32>
    %c0_167 = arith.constant 0 : index
    %c0_168 = arith.constant 0 : index
    %603 = vector.load %arg5[%c0_167, %c0_168] : memref<16x128xf32, #tpu.memory_space<vmem>>, vector<16x128xf32>
    tpu.vector_store %arg5[%c0_167, %c0_168], %602 {strides = array<i32>} : memref<16x128xf32, #tpu.memory_space<vmem>>, vector<16x128xf32>,
    return
  }
}

</mosaic_0001>

<llo_original>
// kernel: uniter_gpt_forward.1
$region0: #{uniter_gpt_forward.1}
  #allocation0 [shape = 'u32[]', space=smem, size = 0x4, offset = 0x4, fixed_abs, tag = 'smem constant byte address 0x4 - core index']
  #allocation1 [shape = 'u32[144,128]{1,0:T(1,128)}', space=vmem, size = 0x12000, scoped, tag = 'internal scratch']
  %s0 = inlined_call_operand.hbm [shape: bf16[624,128], index: 0, kind: input, shape index: {}]
  %s1 = inlined_call_operand.vmem [shape: f32[32,128], index: 1, kind: input, shape index: {}]
  %s2 = inlined_call_operand.vmem [shape: f32[16,16], index: 2, kind: input, shape index: {}]
  %s3 = inlined_call_operand.vmem [shape: f32[2,1,8], index: 3, kind: input, shape index: {}]
  %s4 = inlined_call_operand.vmem [shape: s32[32,1], index: 4, kind: input, shape index: {}]
  %s5 = inlined_call_operand.vmem [shape: f32[16,128], index: 5, kind: output, shape index: {}]
  %s6 = sld [smem:[#allocation0]]
  $region34: #{uniter_gpt_forward.1} parent=0
    _
  %s8 = ssub.s32 1, %s6
  %s9 = scalar_select 0, %s8, %s6
  $region1: #{uniter_gpt_forward.1} parent=0
    #allocation2 [shape = 'u8[159744]{0}', space=vmem, size = 0x27000, scoped, tag = 'input window, operand 0, single buffered']
    #allocation3 [shape = 's32[1]{0}', space=sflag, size = 0x4, scoped, tag = 'scoped memory for uniter_gpt_forward.1']
    %10 = vsyncpa [#allocation3], 0
    // Predicated region
    $region2: #{uniter_gpt_forward.1} parent=1 // pred_check
      _
    $region3: #{uniter_gpt_forward.1} parent=1 // pred_check_branch
      %12 = sbr.rel (0) target = $region5
    $region4: #{uniter_gpt_forward.1} parent=1 // pred_region
      %s14 = ssub.s32 4992, 4992
      %15 = vsyncadd [#allocation3], %s14
      %s16 = sshll.u32 [#allocation2], 4
      %s17 = int_to_ptr.vmem [resolvable:$true] %s16
      %22 = dma.hbm_to_vmem [thread:$0]  %s0, 4992, %s17, [#allocation3], 64, 64, 4
    $region5: #{uniter_gpt_forward.1} parent=1 // pred_fallthru
      _
    // Predicated region
    $region6: #{uniter_gpt_forward.1} parent=1 // pred_check
      _
    $region7: #{uniter_gpt_forward.1} parent=1 // pred_check_branch
      %24 = sbr.rel (0) target = $region9
    $region8: #{uniter_gpt_forward.1} parent=1 // pred_region
      _
    $region9: #{uniter_gpt_forward.1} parent=1 // pred_fallthru
      _
    // Predicated region
    $region10: #{uniter_gpt_forward.1} parent=1 // pred_check
      _
    $region11: #{uniter_gpt_forward.1} parent=1 // pred_check_branch
      %26 = sbr.rel (0) target = $region13
    $region12: #{uniter_gpt_forward.1} parent=1 // pred_region
      _
    $region13: #{uniter_gpt_forward.1} parent=1 // pred_fallthru
      _
    // Predicated region
    $region14: #{uniter_gpt_forward.1} parent=1 // pred_check
      _
    $region15: #{uniter_gpt_forward.1} parent=1 // pred_check_branch
      %28 = sbr.rel (0) target = $region17
    $region16: #{uniter_gpt_forward.1} parent=1 // pred_region
      _
    $region17: #{uniter_gpt_forward.1} parent=1 // pred_fallthru
      _
    // Predicated region
    $region18: #{uniter_gpt_forward.1} parent=1 // pred_check
      _
    $region19: #{uniter_gpt_forward.1} parent=1 // pred_check_branch
      %30 = sbr.rel (0) target = $region21
    $region20: #{uniter_gpt_forward.1} parent=1 // pred_region
      _
    $region21: #{uniter_gpt_forward.1} parent=1 // pred_fallthru
      _
    // Predicated region
    $region22: #{uniter_gpt_forward.1} parent=1 // pred_check
      _
    $region23: #{uniter_gpt_forward.1} parent=1 // pred_check_branch
      %32 = sbr.rel (0) target = $region25
    $region24: #{uniter_gpt_forward.1} parent=1 // pred_region
      %33 = dma.done [#allocation3], 4992
    $region25: #{uniter_gpt_forward.1} parent=1 // pred_fallthru
      _
    %v35 = vld [vmem:[%s3] sm:$0x1]
    %v36 = vld [vmem:[%s3 + $0x1] sm:$0x1]
    %v37 = vsub.f32 1.0, %v35
    %v38 = vsub.f32 1.0, %v36
    %v39 = vmul.f32 %v37, -1e+09
    %v40 = vmul.f32 %v38, -1e+09
    %v41 = vlaneseq
    %v42 = vshrl.u32 %v41, 7
    %v43 = vlaneseq
    %v44 = vand.u32 %v43, 127
    %vm45 = vcmp.le.s32.totalorder %v44, %v42
    %v46 = vsel %vm45, 0.0, -1e+09
    %v47 = vadd.s32 %v42, 8
    %v48 = vand.u32 %v42, 7
    %v49 = vand.u32 %v47, 7
    %vm50 = vcmp.lt.s32.totalorder %v48, 4
    %vm51 = vcmp.lt.s32.totalorder %v49, 4
    %v52 = vsel %vm50, 1, 0
    %v53 = vsel %vm51, 1, 0
    %v54 = vcvt.s32.f32 %v52
    %v55 = vcvt.s32.f32 %v53
    %v56 = vld [vmem:[%s4] sm:$0xff]
    %v57 = vld [vmem:[%s4 + $0x8] sm:$0xff]
    %58 = vset.pattern.permute.xlu0 0
    %59 = vperm.xlu0 %58, %v56
    %v60 = vpop.permute.xlu0 %59
    %61 = vset.pattern.permute.xlu0 0
    %62 = vperm.xlu0 %61, %v57
    %v63 = vpop.permute.xlu0 %62
    %vm64 = vcmp.eq.s32.totalorder %v44, %v60
    %vm65 = vcmp.eq.s32.totalorder %v44, %v63
    %v66 = vsel %vm64, 1, 0
    %v67 = vsel %vm65, 1, 0
    %v68 = vcvt.s32.f32 %v66
    %v69 = vcvt.s32.f32 %v67
    %v70 = vpack.c.bf16 %v69, %v68
    %v71 = vld [vmem:[#allocation2] sm:$0xf]
    %v72 = vld [vmem:[#allocation2 + $0x4] sm:$0xf]
    %v73 = vld [vmem:[#allocation2 + $0x8] sm:$0xf]
    %v74 = vld [vmem:[#allocation2 + $0xc] sm:$0xf]
    %v75 = vld [vmem:[#allocation2 + $0x10] sm:$0xf]
    %v76 = vld [vmem:[#allocation2 + $0x14] sm:$0xf]
    %v77 = vld [vmem:[#allocation2 + $0x18] sm:$0xf]
    %v78 = vld [vmem:[#allocation2 + $0x1c] sm:$0xf]
    %v87 = vunpack.c.l.b16 %v71
    %v88 = vunpack.c.l.b16 %v72
    %v89 = vunpack.c.l.b16 %v73
    %v90 = vunpack.c.l.b16 %v74
    %v91 = vunpack.c.l.b16 %v75
    %v92 = vunpack.c.l.b16 %v76
    %v93 = vunpack.c.l.b16 %v77
    %v94 = vunpack.c.l.b16 %v78
    %v95 = vpack.c.b16 %v88, %v87
    %v96 = vpack.c.b16 %v90, %v89
    %v97 = vpack.c.b16 %v92, %v91
    %v98 = vpack.c.b16 %v94, %v93
    %vm103 = vcmask 523264
    %v105 = vsel %vm103, %v70, 0
    %107 = vmatprep.subr.bf16.mxu0 0
    %108 = vmatpush1.bf16.msra.mxu0 0
    %109 = vmatprep.subr.bf16.mxu0 0
    %110 = vmatpush1.bf16.msra.mxu0 0
    %111 = vmatprep.subr.bf16.mxu0 0
    %112 = vmatpush1.bf16.msra.mxu0 0
    %113 = vmatprep.subr.bf16.mxu0 0
    %114 = vmatpush1.bf16.msra.mxu0 0
    %115 = vmatprep.subr.bf16.mxu0 0
    %116 = vmatpush1.bf16.msra.mxu0 %v98
    %117 = vmatprep.subr.bf16.mxu0 0
    %118 = vmatpush1.bf16.msra.mxu0 %v97
    %119 = vmatprep.subr.bf16.mxu0 0
    %120 = vmatpush1.bf16.msra.mxu0 %v96
    %121 = vmatprep.subr.bf16.mxu0 0
    %122 = vmatpush1.bf16.msra.mxu0 %v95
    %123 = vmatprep.subr.bf16.mxu0 0
    %124 = vmatpush2.bf16.msra.mxu0 0
    %125 = vmatprep.subr.bf16.mxu0 0
    %126 = vmatpush2.bf16.msra.mxu0 0
    %127 = vmatprep.subr.bf16.mxu0 0
    %128 = vmatpush2.bf16.msra.mxu0 0
    %129 = vmatprep.subr.bf16.mxu0 0
    %130 = vmatpush2.bf16.msra.mxu0 0
    %131 = vmatprep.subr.bf16.mxu0 0
    %132 = vmatpush2.bf16.msra.mxu0 0
    %133 = vmatprep.subr.bf16.mxu0 0
    %134 = vmatpush2.bf16.msra.mxu0 0
    %135 = vmatprep.subr.bf16.mxu0 0
    %136 = vmatpush2.bf16.msra.mxu0 0
    %137 = vmatprep.subr.bf16.mxu0 0
    %138 = vmatpush2.bf16.msra.mxu0 0
    %139 = vmatprep.mubr.bf16.mxu0 0
    %140 = vmatmul.mubr.bf16.gmra.mxu0 %v105
    %v141 = vpop.f32.mrf.mxu0
    %v142 = vadd.f32 0.0, %v141
    %v143 = vpop.f32.mrf.mxu0
    %v144 = vpop.f32.mrf.mxu0
    %v145 = vadd.f32 0.0, %v144
    %v146 = vpop.f32.mrf.mxu0
    %147 = vdwg.mxu0
    %v148 = vld [vmem:[%s2] sm:$0xff]
    %v149 = vld [vmem:[%s2 + $0x8] sm:$0xff]
    %v150 = vpack.c.bf16 %v149, %v148
    %v151 = vld [vmem:[#allocation2 + $0x20] sm:$0xf]
    %v152 = vld [vmem:[#allocation2 + $0x24] sm:$0xf]
    %v153 = vld [vmem:[%s1 + $0x8] sm:$0x1]
    %v154 = vlaneseq
    %v155 = vshrl.u32 %v154, 7
    %v156 = vsub.s32 0, %v155
    %v157 = vrot.slane %v153, %v156
    %v160 = vunpack.c.l.b16 %v151
    %v161 = vunpack.c.l.b16 %v152
    %v162 = vpack.c.b16 %v161, %v160
    %vm164 = vcmask 130048
    %v166 = vsel %vm164, %v150, 0
    %168 = vmatprep.subr.bf16.mxu0 0
    %169 = vmatpush1.bf16.msra.mxu0 0
    %170 = vmatprep.subr.bf16.mxu0 0
    %171 = vmatpush1.bf16.msra.mxu0 0
    %172 = vmatprep.subr.bf16.mxu0 0
    %173 = vmatpush1.bf16.msra.mxu0 0
    %174 = vmatprep.subr.bf16.mxu0 0
    %175 = vmatpush1.bf16.msra.mxu0 0
    %176 = vmatprep.subr.bf16.mxu0 0
    %177 = vmatpush1.bf16.msra.mxu0 0
    %178 = vmatprep.subr.bf16.mxu0 0
    %179 = vmatpush1.bf16.msra.mxu0 0
    %180 = vmatprep.subr.bf16.mxu0 0
    %181 = vmatpush1.bf16.msra.mxu0 0
    %182 = vmatprep.subr.bf16.mxu0 0
    %183 = vmatpush1.bf16.msra.mxu0 %v162
    %184 = vmatprep.subr.bf16.mxu0 0
    %185 = vmatpush2.bf16.msra.mxu0 0
    %186 = vmatprep.subr.bf16.mxu0 0
    %187 = vmatpush2.bf16.msra.mxu0 0
    %188 = vmatprep.subr.bf16.mxu0 0
    %189 = vmatpush2.bf16.msra.mxu0 0
    %190 = vmatprep.subr.bf16.mxu0 0
    %191 = vmatpush2.bf16.msra.mxu0 0
    %192 = vmatprep.subr.bf16.mxu0 0
    %193 = vmatpush2.bf16.msra.mxu0 0
    %194 = vmatprep.subr.bf16.mxu0 0
    %195 = vmatpush2.bf16.msra.mxu0 0
    %196 = vmatprep.subr.bf16.mxu0 0
    %197 = vmatpush2.bf16.msra.mxu0 0
    %198 = vmatprep.subr.bf16.mxu0 0
    %199 = vmatpush2.bf16.msra.mxu0 0
    %200 = vmatprep.mubr.bf16.mxu0 0
    %201 = vmatmul.mubr.bf16.gmra.mxu0 %v166
    %v202 = vpop.f32.mrf.mxu0
    %v203 = vadd.f32 %v157, %v202
    %v204 = vpop.f32.mrf.mxu0
    %v205 = vpop.f32.mrf.mxu0
    %v206 = vadd.f32 %v157, %v205
    %v207 = vpop.f32.mrf.mxu0
    %208 = vdwg.mxu0
    %v209 = vmul.f32 %v54, %v142
    %v210 = vmul.f32 %v55, %v145
    %v211 = vsub.f32 1.0, %v54
    %v212 = vsub.f32 1.0, %v55
    %v213 = vmul.f32 %v211, %v203
    %v214 = vmul.f32 %v212, %v206
    %v215 = vadd.f32 %v209, %v213
    %v216 = vadd.f32 %v210, %v214
    %v217 = vld [vmem:[#allocation2 + $0x28] sm:$0xf]
    %v218 = vld [vmem:[#allocation2 + $0x2c] sm:$0xf]
    %v219 = vunpack.c.l.bf16 %v217
    %v220 = vunpack.c.l.bf16 %v218
    %v221 = vadd.f32 %v215, %v219
    %v222 = vadd.f32 %v216, %v220
    %vm223 = vcmask 261120
    %v224 = vsel %vm223, %v221, 0.0
    %225 = vadd.xlane.f32.xlu0 %v224
    %v226 = vpop.xlane.xlu0 %225
    %v227 = vsel %vm223, %v222, 0.0
    %228 = vadd.xlane.f32.xlu0 %v227
    %v229 = vpop.xlane.xlu0 %228
    %v230 = vrcp.pop 32.0
    %v231 = vmul.f32 %v226, %v230
    %v232 = vmul.f32 %v229, %v230
    %v233 = vmul.f32 %v221, %v221
    %v234 = vmul.f32 %v222, %v222
    %v235 = vsel %vm223, %v233, 0.0
    %236 = vadd.xlane.f32.xlu0 %v235
    %v237 = vpop.xlane.xlu0 %236
    %v238 = vsel %vm223, %v234, 0.0
    %239 = vadd.xlane.f32.xlu0 %v238
    %v240 = vpop.xlane.xlu0 %239
    %v241 = vmul.f32 %v237, %v230
    %v242 = vmul.f32 %v240, %v230
    %v243 = vmul.f32 %v231, %v231
    %v244 = vmul.f32 %v232, %v232
    %v245 = vsub.f32 %v241, %v243
    %v246 = vsub.f32 %v242, %v244
    %v247 = vsub.f32 %v221, %v231
    %v248 = vsub.f32 %v222, %v232
    %v249 = vadd.f32 %v245, 1e-05
    %v250 = vadd.f32 %v246, 1e-05
    %v251 = vrsqrt.pop %v249
    %v252 = vrsqrt.pop %v250
    %v253 = vmul.f32 %v247, %v251
    %v254 = vmul.f32 %v248, %v252
    %v255 = vld [vmem:[%s1] sm:$0x1]
    %v256 = vlaneseq
    %v257 = vshrl.u32 %v256, 7
    %v258 = vsub.s32 0, %v257
    %v259 = vrot.slane %v255, %v258
    %v260 = vmul.f32 %v253, %v259
    %v261 = vmul.f32 %v254, %v259
    %v262 = vld [vmem:[%s1 + $0x1] sm:$0x1]
    %v263 = vlaneseq
    %v264 = vshrl.u32 %v263, 7
    %v265 = vsub.s32 0, %v264
    %v266 = vrot.slane %v262, %v265
    %v267 = vadd.f32 %v260, %v266
    %v268 = vadd.f32 %v261, %v266
    %v269 = vpack.c.bf16 %v268, %v267
    %v270 = vld [vmem:[#allocation2 + $0x30] sm:$0xf]
    %v271 = vld [vmem:[#allocation2 + $0x34] sm:$0xf]
    %v272 = vld [vmem:[#allocation2 + $0x38] sm:$0xf]
    %v273 = vld [vmem:[#allocation2 + $0x3c] sm:$0xf]
    %v274 = vld [vmem:[%s1 + $0x6] sm:$0x1]
    %v275 = vlaneseq
    %v276 = vshrl.u32 %v275, 7
    %v277 = vsub.s32 0, %v276
    %v278 = vrot.slane %v274, %v277
    %v283 = vunpack.c.l.b16 %v270
    %v284 = vunpack.c.l.b16 %v271
    %v285 = vunpack.c.l.b16 %v272
    %v286 = vunpack.c.l.b16 %v273
    %v287 = vpack.c.b16 %v284, %v283
    %v288 = vpack.c.b16 %v286, %v285
    %v292 = vsel %vm223, %v269, 0
    %294 = vmatprep.subr.bf16.mxu0 0
    %295 = vmatpush1.bf16.msra.mxu0 0
    %296 = vmatprep.subr.bf16.mxu0 0
    %297 = vmatpush1.bf16.msra.mxu0 0
    %298 = vmatprep.subr.bf16.mxu0 0
    %299 = vmatpush1.bf16.msra.mxu0 0
    %300 = vmatprep.subr.bf16.mxu0 0
    %301 = vmatpush1.bf16.msra.mxu0 0
    %302 = vmatprep.subr.bf16.mxu0 0
    %303 = vmatpush1.bf16.msra.mxu0 0
    %304 = vmatprep.subr.bf16.mxu0 0
    %305 = vmatpush1.bf16.msra.mxu0 0
    %306 = vmatprep.subr.bf16.mxu0 0
    %307 = vmatpush1.bf16.msra.mxu0 %v288
    %308 = vmatprep.subr.bf16.mxu0 0
    %309 = vmatpush1.bf16.msra.mxu0 %v287
    %310 = vmatprep.subr.bf16.mxu0 0
    %311 = vmatpush2.bf16.msra.mxu0 0
    %312 = vmatprep.subr.bf16.mxu0 0
    %313 = vmatpush2.bf16.msra.mxu0 0
    %314 = vmatprep.subr.bf16.mxu0 0
    %315 = vmatpush2.bf16.msra.mxu0 0
    %316 = vmatprep.subr.bf16.mxu0 0
    %317 = vmatpush2.bf16.msra.mxu0 0
    %318 = vmatprep.subr.bf16.mxu0 0
    %319 = vmatpush2.bf16.msra.mxu0 0
    %320 = vmatprep.subr.bf16.mxu0 0
    %321 = vmatpush2.bf16.msra.mxu0 0
    %322 = vmatprep.subr.bf16.mxu0 0
    %323 = vmatpush2.bf16.msra.mxu0 0
    %324 = vmatprep.subr.bf16.mxu0 0
    %325 = vmatpush2.bf16.msra.mxu0 0
    %326 = vmatprep.mubr.bf16.mxu0 0
    %327 = vmatmul.mubr.bf16.gmra.mxu0 %v292
    %v328 = vpop.f32.mrf.mxu0
    %v329 = vadd.f32 %v278, %v328
    %v330 = vpop.f32.mrf.mxu0
    %v331 = vpop.f32.mrf.mxu0
    %v332 = vadd.f32 %v278, %v331
    %v333 = vpop.f32.mrf.mxu0
    %334 = vdwg.mxu0
    %v337 = vlaneseq
    %v338 = vshrl.u32 %v337, 7
    %v339 = vsub.s32 0, %v338
    %v340 = vrot.slane %v39, %v339
    %v341 = vlaneseq
    %v342 = vshrl.u32 %v341, 7
    %v343 = vsub.s32 0, %v342
    %v344 = vrot.slane %v40, %v343
    %v347 = vmul.f32 %v329, 0.35355338
    %v348 = vmul.f32 %v332, 0.35355338
    %v349 = vpack.c.bf16 %v348, %v347
    %v350 = vpack.c.bf16 %v332, %v329
    %v352 = vunpack.c.l.b16 %v349
    %v353 = vunpack.c.h.b16 %v349
    %v354 = vpack.c.b16 %v352, %v352
    %v355 = vpack.c.b16 %v353, %v353
    %v357 = vunpack.c.l.b16 %v350
    %v358 = vunpack.c.h.b16 %v350
    %v359 = vpack.c.b16 %v357, %v357
    %360 = vrot.lane.b32.xlu0 %v359, 96
    %v361 = vpop.permute.xlu0 %360
    %vm362 = vcmask 64512
    %v364 = vsel %vm362, %v354, 0
    %v367 = vsel %vm362, %v361, 0
    %369 = vmatprep.subr.bf16.mxu0 0
    %370 = vmatpush1.bf16.xpose.msra.mxu0 0
    %371 = vmatprep.subr.bf16.mxu0 0
    %372 = vmatpush1.bf16.xpose.msra.mxu0 0
    %373 = vmatprep.subr.bf16.mxu0 0
    %374 = vmatpush1.bf16.xpose.msra.mxu0 0
    %375 = vmatprep.subr.bf16.mxu0 0
    %376 = vmatpush1.bf16.xpose.msra.mxu0 0
    %377 = vmatprep.subr.bf16.mxu0 0
    %378 = vmatpush1.bf16.xpose.msra.mxu0 0
    %379 = vmatprep.subr.bf16.mxu0 0
    %380 = vmatpush1.bf16.xpose.msra.mxu0 0
    %381 = vmatprep.subr.bf16.mxu0 0
    %382 = vmatpush1.bf16.xpose.msra.mxu0 0
    %383 = vmatprep.subr.bf16.mxu0 0
    %384 = vmatpush1.bf16.xpose.msra.mxu0 %v367
    %385 = vmatprep.subr.bf16.mxu0 0
    %386 = vmatpush2.bf16.xpose.msra.mxu0 0
    %387 = vmatprep.subr.bf16.mxu0 0
    %388 = vmatpush2.bf16.xpose.msra.mxu0 0
    %389 = vmatprep.subr.bf16.mxu0 0
    %390 = vmatpush2.bf16.xpose.msra.mxu0 0
    %391 = vmatprep.subr.bf16.mxu0 0
    %392 = vmatpush2.bf16.xpose.msra.mxu0 0
    %393 = vmatprep.subr.bf16.mxu0 0
    %394 = vmatpush2.bf16.xpose.msra.mxu0 0
    %395 = vmatprep.subr.bf16.mxu0 0
    %396 = vmatpush2.bf16.xpose.msra.mxu0 0
    %397 = vmatprep.subr.bf16.mxu0 0
    %398 = vmatpush2.bf16.xpose.msra.mxu0 0
    %399 = vmatprep.subr.bf16.mxu0 0
    %400 = vmatpush2.bf16.xpose.msra.mxu0 0
    %401 = vmatprep.mubr.bf16.mxu0 0
    %402 = vmatmul.mubr.bf16.gmra.mxu0 %v364
    %v403 = vpop.f32.mrf.mxu0
    %v404 = vadd.f32 %v340, %v403
    %v405 = vpop.f32.mrf.mxu0
    %v406 = vpop.f32.mrf.mxu0
    %v407 = vpop.f32.mrf.mxu0
    %408 = vdwg.mxu0
    %v409 = vpack.c.b16 %v358, %v358
    %410 = vrot.lane.b32.xlu0 %v409, 96
    %v411 = vpop.permute.xlu0 %410
    %v413 = vsel %vm362, %v355, 0
    %v416 = vsel %vm362, %v411, 0
    %418 = vmatprep.subr.bf16.mxu0 0
    %419 = vmatpush1.bf16.xpose.msra.mxu0 0
    %420 = vmatprep.subr.bf16.mxu0 0
    %421 = vmatpush1.bf16.xpose.msra.mxu0 0
    %422 = vmatprep.subr.bf16.mxu0 0
    %423 = vmatpush1.bf16.xpose.msra.mxu0 0
    %424 = vmatprep.subr.bf16.mxu0 0
    %425 = vmatpush1.bf16.xpose.msra.mxu0 0
    %426 = vmatprep.subr.bf16.mxu0 0
    %427 = vmatpush1.bf16.xpose.msra.mxu0 0
    %428 = vmatprep.subr.bf16.mxu0 0
    %429 = vmatpush1.bf16.xpose.msra.mxu0 0
    %430 = vmatprep.subr.bf16.mxu0 0
    %431 = vmatpush1.bf16.xpose.msra.mxu0 0
    %432 = vmatprep.subr.bf16.mxu0 0
    %433 = vmatpush1.bf16.xpose.msra.mxu0 %v416
    %434 = vmatprep.subr.bf16.mxu0 0
    %435 = vmatpush2.bf16.xpose.msra.mxu0 0
    %436 = vmatprep.subr.bf16.mxu0 0
    %437 = vmatpush2.bf16.xpose.msra.mxu0 0
    %438 = vmatprep.subr.bf16.mxu0 0
    %439 = vmatpush2.bf16.xpose.msra.mxu0 0
    %440 = vmatprep.subr.bf16.mxu0 0
    %441 = vmatpush2.bf16.xpose.msra.mxu0 0
    %442 = vmatprep.subr.bf16.mxu0 0
    %443 = vmatpush2.bf16.xpose.msra.mxu0 0
    %444 = vmatprep.subr.bf16.mxu0 0
    %445 = vmatpush2.bf16.xpose.msra.mxu0 0
    %446 = vmatprep.subr.bf16.mxu0 0
    %447 = vmatpush2.bf16.xpose.msra.mxu0 0
    %448 = vmatprep.subr.bf16.mxu0 0
    %449 = vmatpush2.bf16.xpose.msra.mxu0 0
    %450 = vmatprep.mubr.bf16.mxu0 0
    %451 = vmatmul.mubr.bf16.gmra.mxu0 %v413
    %v452 = vpop.f32.mrf.mxu0
    %v453 = vadd.f32 %v344, %v452
    %v454 = vpop.f32.mrf.mxu0
    %v455 = vpop.f32.mrf.mxu0
    %v456 = vpop.f32.mrf.mxu0
    %457 = vdwg.mxu0
    %v458 = vsel %vm362, %v404, -inf
    %459 = vmax.xlane.f32.xlu0 %v458
    %v460 = vpop.xlane.xlu0 %459
    %v461 = vsel %vm362, %v453, -inf
    %462 = vmax.xlane.f32.xlu0 %v461
    %v463 = vpop.xlane.xlu0 %462
    %v464 = vsub.f32 %v404, %v460
    %v465 = vsub.f32 %v453, %v463
    %v466 = vmul.f32 %v464, 1.442695
    %v467 = vpow.pop %v466
    %v468 = vmul.f32 %v465, 1.442695
    %v469 = vpow.pop %v468
    %v470 = vsel %vm362, %v467, 0.0
    %471 = vadd.xlane.f32.xlu0 %v470
    %v472 = vpop.xlane.xlu0 %471
    %v473 = vsel %vm362, %v469, 0.0
    %474 = vadd.xlane.f32.xlu0 %v473
    %v475 = vpop.xlane.xlu0 %474
    %v476 = vrcp.pop %v472
    %v477 = vrcp.pop %v475
    %v478 = vmul.f32 %v467, %v476
    %v479 = vmul.f32 %v469, %v477
    %v480 = vpack.c.bf16 %v478, %v478
    %v481 = vpack.c.bf16 %v479, %v479
    %482 = vrot.lane.b32.xlu0 %v359, 64
    %v483 = vpop.permute.xlu0 %482
    %v485 = vsel %vm362, %v480, 0
    %vm487 = vcmask 1043456
    %v489 = vsel %vm487, %v483, 0
    %491 = vmatprep.subr.bf16.mxu0 0
    %492 = vmatpush1.bf16.msra.mxu0 0
    %493 = vmatprep.subr.bf16.mxu0 0
    %494 = vmatpush1.bf16.msra.mxu0 0
    %495 = vmatprep.subr.bf16.mxu0 0
    %496 = vmatpush1.bf16.msra.mxu0 0
    %497 = vmatprep.subr.bf16.mxu0 0
    %498 = vmatpush1.bf16.msra.mxu0 0
    %499 = vmatprep.subr.bf16.mxu0 0
    %500 = vmatpush1.bf16.msra.mxu0 0
    %501 = vmatprep.subr.bf16.mxu0 0
    %502 = vmatpush1.bf16.msra.mxu0 0
    %503 = vmatprep.subr.bf16.mxu0 0
    %504 = vmatpush1.bf16.msra.mxu0 0
    %505 = vmatprep.subr.bf16.mxu0 0
    %506 = vmatpush1.bf16.msra.mxu0 %v489
    %507 = vmatprep.subr.bf16.mxu0 0
    %508 = vmatpush2.bf16.msra.mxu0 0
    %509 = vmatprep.subr.bf16.mxu0 0
    %510 = vmatpush2.bf16.msra.mxu0 0
    %511 = vmatprep.subr.bf16.mxu0 0
    %512 = vmatpush2.bf16.msra.mxu0 0
    %513 = vmatprep.subr.bf16.mxu0 0
    %514 = vmatpush2.bf16.msra.mxu0 0
    %515 = vmatprep.subr.bf16.mxu0 0
    %516 = vmatpush2.bf16.msra.mxu0 0
    %517 = vmatprep.subr.bf16.mxu0 0
    %518 = vmatpush2.bf16.msra.mxu0 0
    %519 = vmatprep.subr.bf16.mxu0 0
    %520 = vmatpush2.bf16.msra.mxu0 0
    %521 = vmatprep.subr.bf16.mxu0 0
    %522 = vmatpush2.bf16.msra.mxu0 0
    %523 = vmatprep.mubr.bf16.mxu0 0
    %524 = vmatmul.mubr.bf16.gmra.mxu0 %v485
    %v525 = vpop.f32.mrf.mxu0
    %v526 = vadd.f32 0.0, %v525
    %v527 = vpop.f32.mrf.mxu0
    %v528 = vpop.f32.mrf.mxu0
    %v529 = vpop.f32.mrf.mxu0
    %530 = vdwg.mxu0
    %531 = vrot.lane.b32.xlu0 %v409, 64
    %v532 = vpop.permute.xlu0 %531
    %v534 = vsel %vm362, %v481, 0
    %v537 = vsel %vm487, %v532, 0
    %539 = vmatprep.subr.bf16.mxu0 0
    %540 = vmatpush1.bf16.msra.mxu0 0
    %541 = vmatprep.subr.bf16.mxu0 0
    %542 = vmatpush1.bf16.msra.mxu0 0
    %543 = vmatprep.subr.bf16.mxu0 0
    %544 = vmatpush1.bf16.msra.mxu0 0
    %545 = vmatprep.subr.bf16.mxu0 0
    %546 = vmatpush1.bf16.msra.mxu0 0
    %547 = vmatprep.subr.bf16.mxu0 0
    %548 = vmatpush1.bf16.msra.mxu0 0
    %549 = vmatprep.subr.bf16.mxu0 0
    %550 = vmatpush1.bf16.msra.mxu0 0
    %551 = vmatprep.subr.bf16.mxu0 0
    %552 = vmatpush1.bf16.msra.mxu0 0
    %553 = vmatprep.subr.bf16.mxu0 0
    %554 = vmatpush1.bf16.msra.mxu0 %v537
    %555 = vmatprep.subr.bf16.mxu0 0
    %556 = vmatpush2.bf16.msra.mxu0 0
    %557 = vmatprep.subr.bf16.mxu0 0
    %558 = vmatpush2.bf16.msra.mxu0 0
    %559 = vmatprep.subr.bf16.mxu0 0
    %560 = vmatpush2.bf16.msra.mxu0 0
    %561 = vmatprep.subr.bf16.mxu0 0
    %562 = vmatpush2.bf16.msra.mxu0 0
    %563 = vmatprep.subr.bf16.mxu0 0
    %564 = vmatpush2.bf16.msra.mxu0 0
    %565 = vmatprep.subr.bf16.mxu0 0
    %566 = vmatpush2.bf16.msra.mxu0 0
    %567 = vmatprep.subr.bf16.mxu0 0
    %568 = vmatpush2.bf16.msra.mxu0 0
    %569 = vmatprep.subr.bf16.mxu0 0
    %570 = vmatpush2.bf16.msra.mxu0 0
    %571 = vmatprep.mubr.bf16.mxu0 0
    %572 = vmatmul.mubr.bf16.gmra.mxu0 %v534
    %v573 = vpop.f32.mrf.mxu0
    %v574 = vadd.f32 0.0, %v573
    %v575 = vpop.f32.mrf.mxu0
    %v576 = vpop.f32.mrf.mxu0
    %v577 = vpop.f32.mrf.mxu0
    %578 = vdwg.mxu0
    %579 = vrot.lane.b32.xlu0 %v354, 120
    %v580 = vpop.permute.xlu0 %579
    %581 = vrot.lane.b32.xlu0 %v359, 88
    %v582 = vpop.permute.xlu0 %581
    %v584 = vsel %vm362, %v580, 0
    %v587 = vsel %vm362, %v582, 0
    %589 = vmatprep.subr.bf16.mxu0 0
    %590 = vmatpush1.bf16.xpose.msra.mxu0 0
    %591 = vmatprep.subr.bf16.mxu0 0
    %592 = vmatpush1.bf16.xpose.msra.mxu0 0
    %593 = vmatprep.subr.bf16.mxu0 0
    %594 = vmatpush1.bf16.xpose.msra.mxu0 0
    %595 = vmatprep.subr.bf16.mxu0 0
    %596 = vmatpush1.bf16.xpose.msra.mxu0 0
    %597 = vmatprep.subr.bf16.mxu0 0
    %598 = vmatpush1.bf16.xpose.msra.mxu0 0
    %599 = vmatprep.subr.bf16.mxu0 0
    %600 = vmatpush1.bf16.xpose.msra.mxu0 0
    %601 = vmatprep.subr.bf16.mxu0 0
    %602 = vmatpush1.bf16.xpose.msra.mxu0 0
    %603 = vmatprep.subr.bf16.mxu0 0
    %604 = vmatpush1.bf16.xpose.msra.mxu0 %v587
    %605 = vmatprep.subr.bf16.mxu0 0
    %606 = vmatpush2.bf16.xpose.msra.mxu0 0
    %607 = vmatprep.subr.bf16.mxu0 0
    %608 = vmatpush2.bf16.xpose.msra.mxu0 0
    %609 = vmatprep.subr.bf16.mxu0 0
    %610 = vmatpush2.bf16.xpose.msra.mxu0 0
    %611 = vmatprep.subr.bf16.mxu0 0
    %612 = vmatpush2.bf16.xpose.msra.mxu0 0
    %613 = vmatprep.subr.bf16.mxu0 0
    %614 = vmatpush2.bf16.xpose.msra.mxu0 0
    %615 = vmatprep.subr.bf16.mxu0 0
    %616 = vmatpush2.bf16.xpose.msra.mxu0 0
    %617 = vmatprep.subr.bf16.mxu0 0
    %618 = vmatpush2.bf16.xpose.msra.mxu0 0
    %619 = vmatprep.subr.bf16.mxu0 0
    %620 = vmatpush2.bf16.xpose.msra.mxu0 0
    %621 = vmatprep.mubr.bf16.mxu0 0
    %622 = vmatmul.mubr.bf16.gmra.mxu0 %v584
    %v623 = vpop.f32.mrf.mxu0
    %v624 = vadd.f32 %v340, %v623
    %v625 = vpop.f32.mrf.mxu0
    %v626 = vpop.f32.mrf.mxu0
    %v627 = vpop.f32.mrf.mxu0
    %628 = vdwg.mxu0
    %629 = vrot.lane.b32.xlu0 %v355, 120
    %v630 = vpop.permute.xlu0 %629
    %631 = vrot.lane.b32.xlu0 %v409, 88
    %v632 = vpop.permute.xlu0 %631
    %v634 = vsel %vm362, %v630, 0
    %v637 = vsel %vm362, %v632, 0
    %639 = vmatprep.subr.bf16.mxu0 0
    %640 = vmatpush1.bf16.xpose.msra.mxu0 0
    %641 = vmatprep.subr.bf16.mxu0 0
    %642 = vmatpush1.bf16.xpose.msra.mxu0 0
    %643 = vmatprep.subr.bf16.mxu0 0
    %644 = vmatpush1.bf16.xpose.msra.mxu0 0
    %645 = vmatprep.subr.bf16.mxu0 0
    %646 = vmatpush1.bf16.xpose.msra.mxu0 0
    %647 = vmatprep.subr.bf16.mxu0 0
    %648 = vmatpush1.bf16.xpose.msra.mxu0 0
    %649 = vmatprep.subr.bf16.mxu0 0
    %650 = vmatpush1.bf16.xpose.msra.mxu0 0
    %651 = vmatprep.subr.bf16.mxu0 0
    %652 = vmatpush1.bf16.xpose.msra.mxu0 0
    %653 = vmatprep.subr.bf16.mxu0 0
    %654 = vmatpush1.bf16.xpose.msra.mxu0 %v637
    %655 = vmatprep.subr.bf16.mxu0 0
    %656 = vmatpush2.bf16.xpose.msra.mxu0 0
    %657 = vmatprep.subr.bf16.mxu0 0
    %658 = vmatpush2.bf16.xpose.msra.mxu0 0
    %659 = vmatprep.subr.bf16.mxu0 0
    %660 = vmatpush2.bf16.xpose.msra.mxu0 0
    %661 = vmatprep.subr.bf16.mxu0 0
    %662 = vmatpush2.bf16.xpose.msra.mxu0 0
    %663 = vmatprep.subr.bf16.mxu0 0
    %664 = vmatpush2.bf16.xpose.msra.mxu0 0
    %665 = vmatprep.subr.bf16.mxu0 0
    %666 = vmatpush2.bf16.xpose.msra.mxu0 0
    %667 = vmatprep.subr.bf16.mxu0 0
    %668 = vmatpush2.bf16.xpose.msra.mxu0 0
    %669 = vmatprep.subr.bf16.mxu0 0
    %670 = vmatpush2.bf16.xpose.msra.mxu0 0
    %671 = vmatprep.mubr.bf16.mxu0 0
    %672 = vmatmul.mubr.bf16.gmra.mxu0 %v634
    %v673 = vpop.f32.mrf.mxu0
    %v674 = vadd.f32 %v344, %v673
    %v675 = vpop.f32.mrf.mxu0
    %v676 = vpop.f32.mrf.mxu0
    %v677 = vpop.f32.mrf.mxu0
    %678 = vdwg.mxu0
    %v679 = vsel %vm362, %v624, -inf
    %680 = vmax.xlane.f32.xlu0 %v679
    %v681 = vpop.xlane.xlu0 %680
    %v682 = vsel %vm362, %v674, -inf
    %683 = vmax.xlane.f32.xlu0 %v682
    %v684 = vpop.xlane.xlu0 %683
    %v685 = vsub.f32 %v624, %v681
    %v686 = vsub.f32 %v674, %v684
    %v687 = vmul.f32 %v685, 1.442695
    %v688 = vpow.pop %v687
    %v689 = vmul.f32 %v686, 1.442695
    %v690 = vpow.pop %v689
    %v691 = vsel %vm362, %v688, 0.0
    %692 = vadd.xlane.f32.xlu0 %v691
    %v693 = vpop.xlane.xlu0 %692
    %v694 = vsel %vm362, %v690, 0.0
    %695 = vadd.xlane.f32.xlu0 %v694
    %v696 = vpop.xlane.xlu0 %695
    %v697 = vrcp.pop %v693
    %v698 = vrcp.pop %v696
    %v699 = vmul.f32 %v688, %v697
    %v700 = vmul.f32 %v690, %v698
    %v701 = vpack.c.bf16 %v699, %v699
    %v702 = vpack.c.bf16 %v700, %v700
    %703 = vrot.lane.b32.xlu0 %v359, 56
    %v704 = vpop.permute.xlu0 %703
    %v706 = vsel %vm362, %v701, 0
    %v709 = vsel %vm487, %v704, 0
    %711 = vmatprep.subr.bf16.mxu0 0
    %712 = vmatpush1.bf16.msra.mxu0 0
    %713 = vmatprep.subr.bf16.mxu0 0
    %714 = vmatpush1.bf16.msra.mxu0 0
    %715 = vmatprep.subr.bf16.mxu0 0
    %716 = vmatpush1.bf16.msra.mxu0 0
    %717 = vmatprep.subr.bf16.mxu0 0
    %718 = vmatpush1.bf16.msra.mxu0 0
    %719 = vmatprep.subr.bf16.mxu0 0
    %720 = vmatpush1.bf16.msra.mxu0 0
    %721 = vmatprep.subr.bf16.mxu0 0
    %722 = vmatpush1.bf16.msra.mxu0 0
    %723 = vmatprep.subr.bf16.mxu0 0
    %724 = vmatpush1.bf16.msra.mxu0 0
    %725 = vmatprep.subr.bf16.mxu0 0
    %726 = vmatpush1.bf16.msra.mxu0 %v709
    %727 = vmatprep.subr.bf16.mxu0 0
    %728 = vmatpush2.bf16.msra.mxu0 0
    %729 = vmatprep.subr.bf16.mxu0 0
    %730 = vmatpush2.bf16.msra.mxu0 0
    %731 = vmatprep.subr.bf16.mxu0 0
    %732 = vmatpush2.bf16.msra.mxu0 0
    %733 = vmatprep.subr.bf16.mxu0 0
    %734 = vmatpush2.bf16.msra.mxu0 0
    %735 = vmatprep.subr.bf16.mxu0 0
    %736 = vmatpush2.bf16.msra.mxu0 0
    %737 = vmatprep.subr.bf16.mxu0 0
    %738 = vmatpush2.bf16.msra.mxu0 0
    %739 = vmatprep.subr.bf16.mxu0 0
    %740 = vmatpush2.bf16.msra.mxu0 0
    %741 = vmatprep.subr.bf16.mxu0 0
    %742 = vmatpush2.bf16.msra.mxu0 0
    %743 = vmatprep.mubr.bf16.mxu0 0
    %744 = vmatmul.mubr.bf16.gmra.mxu0 %v706
    %v745 = vpop.f32.mrf.mxu0
    %v746 = vadd.f32 0.0, %v745
    %v747 = vpop.f32.mrf.mxu0
    %v748 = vpop.f32.mrf.mxu0
    %v749 = vpop.f32.mrf.mxu0
    %750 = vdwg.mxu0
    %751 = vrot.lane.b32.xlu0 %v409, 56
    %v752 = vpop.permute.xlu0 %751
    %v754 = vsel %vm362, %v702, 0
    %v757 = vsel %vm487, %v752, 0
    %759 = vmatprep.subr.bf16.mxu0 0
    %760 = vmatpush1.bf16.msra.mxu0 0
    %761 = vmatprep.subr.bf16.mxu0 0
    %762 = vmatpush1.bf16.msra.mxu0 0
    %763 = vmatprep.subr.bf16.mxu0 0
    %764 = vmatpush1.bf16.msra.mxu0 0
    %765 = vmatprep.subr.bf16.mxu0 0
    %766 = vmatpush1.bf16.msra.mxu0 0
    %767 = vmatprep.subr.bf16.mxu0 0
    %768 = vmatpush1.bf16.msra.mxu0 0
    %769 = vmatprep.subr.bf16.mxu0 0
    %770 = vmatpush1.bf16.msra.mxu0 0
    %771 = vmatprep.subr.bf16.mxu0 0
    %772 = vmatpush1.bf16.msra.mxu0 0
    %773 = vmatprep.subr.bf16.mxu0 0
    %774 = vmatpush1.bf16.msra.mxu0 %v757
    %775 = vmatprep.subr.bf16.mxu0 0
    %776 = vmatpush2.bf16.msra.mxu0 0
    %777 = vmatprep.subr.bf16.mxu0 0
    %778 = vmatpush2.bf16.msra.mxu0 0
    %779 = vmatprep.subr.bf16.mxu0 0
    %780 = vmatpush2.bf16.msra.mxu0 0
    %781 = vmatprep.subr.bf16.mxu0 0
    %782 = vmatpush2.bf16.msra.mxu0 0
    %783 = vmatprep.subr.bf16.mxu0 0
    %784 = vmatpush2.bf16.msra.mxu0 0
    %785 = vmatprep.subr.bf16.mxu0 0
    %786 = vmatpush2.bf16.msra.mxu0 0
    %787 = vmatprep.subr.bf16.mxu0 0
    %788 = vmatpush2.bf16.msra.mxu0 0
    %789 = vmatprep.subr.bf16.mxu0 0
    %790 = vmatpush2.bf16.msra.mxu0 0
    %791 = vmatprep.mubr.bf16.mxu0 0
    %792 = vmatmul.mubr.bf16.gmra.mxu0 %v754
    %v793 = vpop.f32.mrf.mxu0
    %v794 = vadd.f32 0.0, %v793
    %v795 = vpop.f32.mrf.mxu0
    %v796 = vpop.f32.mrf.mxu0
    %v797 = vpop.f32.mrf.mxu0
    %798 = vdwg.mxu0
    %799 = vrot.lane.b32.xlu0 %v354, 112
    %v800 = vpop.permute.xlu0 %799
    %801 = vrot.lane.b32.xlu0 %v359, 80
    %v802 = vpop.permute.xlu0 %801
    %v804 = vsel %vm362, %v800, 0
    %v807 = vsel %vm362, %v802, 0
    %809 = vmatprep.subr.bf16.mxu0 0
    %810 = vmatpush1.bf16.xpose.msra.mxu0 0
    %811 = vmatprep.subr.bf16.mxu0 0
    %812 = vmatpush1.bf16.xpose.msra.mxu0 0
    %813 = vmatprep.subr.bf16.mxu0 0
    %814 = vmatpush1.bf16.xpose.msra.mxu0 0
    %815 = vmatprep.subr.bf16.mxu0 0
    %816 = vmatpush1.bf16.xpose.msra.mxu0 0
    %817 = vmatprep.subr.bf16.mxu0 0
    %818 = vmatpush1.bf16.xpose.msra.mxu0 0
    %819 = vmatprep.subr.bf16.mxu0 0
    %820 = vmatpush1.bf16.xpose.msra.mxu0 0
    %821 = vmatprep.subr.bf16.mxu0 0
    %822 = vmatpush1.bf16.xpose.msra.mxu0 0
    %823 = vmatprep.subr.bf16.mxu0 0
    %824 = vmatpush1.bf16.xpose.msra.mxu0 %v807
    %825 = vmatprep.subr.bf16.mxu0 0
    %826 = vmatpush2.bf16.xpose.msra.mxu0 0
    %827 = vmatprep.subr.bf16.mxu0 0
    %828 = vmatpush2.bf16.xpose.msra.mxu0 0
    %829 = vmatprep.subr.bf16.mxu0 0
    %830 = vmatpush2.bf16.xpose.msra.mxu0 0
    %831 = vmatprep.subr.bf16.mxu0 0
    %832 = vmatpush2.bf16.xpose.msra.mxu0 0
    %833 = vmatprep.subr.bf16.mxu0 0
    %834 = vmatpush2.bf16.xpose.msra.mxu0 0
    %835 = vmatprep.subr.bf16.mxu0 0
    %836 = vmatpush2.bf16.xpose.msra.mxu0 0
    %837 = vmatprep.subr.bf16.mxu0 0
    %838 = vmatpush2.bf16.xpose.msra.mxu0 0
    %839 = vmatprep.subr.bf16.mxu0 0
    %840 = vmatpush2.bf16.xpose.msra.mxu0 0
    %841 = vmatprep.mubr.bf16.mxu0 0
    %842 = vmatmul.mubr.bf16.gmra.mxu0 %v804
    %v843 = vpop.f32.mrf.mxu0
    %v844 = vadd.f32 %v340, %v843
    %v845 = vpop.f32.mrf.mxu0
    %v846 = vpop.f32.mrf.mxu0
    %v847 = vpop.f32.mrf.mxu0
    %848 = vdwg.mxu0
    %849 = vrot.lane.b32.xlu0 %v355, 112
    %v850 = vpop.permute.xlu0 %849
    %851 = vrot.lane.b32.xlu0 %v409, 80
    %v852 = vpop.permute.xlu0 %851
    %v854 = vsel %vm362, %v850, 0
    %v857 = vsel %vm362, %v852, 0
    %859 = vmatprep.subr.bf16.mxu0 0
    %860 = vmatpush1.bf16.xpose.msra.mxu0 0
    %861 = vmatprep.subr.bf16.mxu0 0
    %862 = vmatpush1.bf16.xpose.msra.mxu0 0
    %863 = vmatprep.subr.bf16.mxu0 0
    %864 = vmatpush1.bf16.xpose.msra.mxu0 0
    %865 = vmatprep.subr.bf16.mxu0 0
    %866 = vmatpush1.bf16.xpose.msra.mxu0 0
    %867 = vmatprep.subr.bf16.mxu0 0
    %868 = vmatpush1.bf16.xpose.msra.mxu0 0
    %869 = vmatprep.subr.bf16.mxu0 0
    %870 = vmatpush1.bf16.xpose.msra.mxu0 0
    %871 = vmatprep.subr.bf16.mxu0 0
    %872 = vmatpush1.bf16.xpose.msra.mxu0 0
    %873 = vmatprep.subr.bf16.mxu0 0
    %874 = vmatpush1.bf16.xpose.msra.mxu0 %v857
    %875 = vmatprep.subr.bf16.mxu0 0
    %876 = vmatpush2.bf16.xpose.msra.mxu0 0
    %877 = vmatprep.subr.bf16.mxu0 0
    %878 = vmatpush2.bf16.xpose.msra.mxu0 0
    %879 = vmatprep.subr.bf16.mxu0 0
    %880 = vmatpush2.bf16.xpose.msra.mxu0 0
    %881 = vmatprep.subr.bf16.mxu0 0
    %882 = vmatpush2.bf16.xpose.msra.mxu0 0
    %883 = vmatprep.subr.bf16.mxu0 0
    %884 = vmatpush2.bf16.xpose.msra.mxu0 0
    %885 = vmatprep.subr.bf16.mxu0 0
    %886 = vmatpush2.bf16.xpose.msra.mxu0 0
    %887 = vmatprep.subr.bf16.mxu0 0
    %888 = vmatpush2.bf16.xpose.msra.mxu0 0
    %889 = vmatprep.subr.bf16.mxu0 0
    %890 = vmatpush2.bf16.xpose.msra.mxu0 0
    %891 = vmatprep.mubr.bf16.mxu0 0
    %892 = vmatmul.mubr.bf16.gmra.mxu0 %v854
    %v893 = vpop.f32.mrf.mxu0
    %v894 = vadd.f32 %v344, %v893
    %v895 = vpop.f32.mrf.mxu0
    %v896 = vpop.f32.mrf.mxu0
    %v897 = vpop.f32.mrf.mxu0
    %898 = vdwg.mxu0
    %v899 = vsel %vm362, %v844, -inf
    %900 = vmax.xlane.f32.xlu0 %v899
    %v901 = vpop.xlane.xlu0 %900
    %v902 = vsel %vm362, %v894, -inf
    %903 = vmax.xlane.f32.xlu0 %v902
    %v904 = vpop.xlane.xlu0 %903
    %v905 = vsub.f32 %v844, %v901
    %v906 = vsub.f32 %v894, %v904
    %v907 = vmul.f32 %v905, 1.442695
    %v908 = vpow.pop %v907
    %v909 = vmul.f32 %v906, 1.442695
    %v910 = vpow.pop %v909
    %v911 = vsel %vm362, %v908, 0.0
    %912 = vadd.xlane.f32.xlu0 %v911
    %v913 = vpop.xlane.xlu0 %912
    %v914 = vsel %vm362, %v910, 0.0
    %915 = vadd.xlane.f32.xlu0 %v914
    %v916 = vpop.xlane.xlu0 %915
    %v917 = vrcp.pop %v913
    %v918 = vrcp.pop %v916
    %v919 = vmul.f32 %v908, %v917
    %v920 = vmul.f32 %v910, %v918
    %v921 = vpack.c.bf16 %v919, %v919
    %v922 = vpack.c.bf16 %v920, %v920
    %923 = vrot.lane.b32.xlu0 %v359, 48
    %v924 = vpop.permute.xlu0 %923
    %v926 = vsel %vm362, %v921, 0
    %v929 = vsel %vm487, %v924, 0
    %931 = vmatprep.subr.bf16.mxu0 0
    %932 = vmatpush1.bf16.msra.mxu0 0
    %933 = vmatprep.subr.bf16.mxu0 0
    %934 = vmatpush1.bf16.msra.mxu0 0
    %935 = vmatprep.subr.bf16.mxu0 0
    %936 = vmatpush1.bf16.msra.mxu0 0
    %937 = vmatprep.subr.bf16.mxu0 0
    %938 = vmatpush1.bf16.msra.mxu0 0
    %939 = vmatprep.subr.bf16.mxu0 0
    %940 = vmatpush1.bf16.msra.mxu0 0
    %941 = vmatprep.subr.bf16.mxu0 0
    %942 = vmatpush1.bf16.msra.mxu0 0
    %943 = vmatprep.subr.bf16.mxu0 0
    %944 = vmatpush1.bf16.msra.mxu0 0
    %945 = vmatprep.subr.bf16.mxu0 0
    %946 = vmatpush1.bf16.msra.mxu0 %v929
    %947 = vmatprep.subr.bf16.mxu0 0
    %948 = vmatpush2.bf16.msra.mxu0 0
    %949 = vmatprep.subr.bf16.mxu0 0
    %950 = vmatpush2.bf16.msra.mxu0 0
    %951 = vmatprep.subr.bf16.mxu0 0
    %952 = vmatpush2.bf16.msra.mxu0 0
    %953 = vmatprep.subr.bf16.mxu0 0
    %954 = vmatpush2.bf16.msra.mxu0 0
    %955 = vmatprep.subr.bf16.mxu0 0
    %956 = vmatpush2.bf16.msra.mxu0 0
    %957 = vmatprep.subr.bf16.mxu0 0
    %958 = vmatpush2.bf16.msra.mxu0 0
    %959 = vmatprep.subr.bf16.mxu0 0
    %960 = vmatpush2.bf16.msra.mxu0 0
    %961 = vmatprep.subr.bf16.mxu0 0
    %962 = vmatpush2.bf16.msra.mxu0 0
    %963 = vmatprep.mubr.bf16.mxu0 0
    %964 = vmatmul.mubr.bf16.gmra.mxu0 %v926
    %v965 = vpop.f32.mrf.mxu0
    %v966 = vadd.f32 0.0, %v965
    %v967 = vpop.f32.mrf.mxu0
    %v968 = vpop.f32.mrf.mxu0
    %v969 = vpop.f32.mrf.mxu0
    %970 = vdwg.mxu0
    %971 = vrot.lane.b32.xlu0 %v409, 48
    %v972 = vpop.permute.xlu0 %971
    %v974 = vsel %vm362, %v922, 0
    %v977 = vsel %vm487, %v972, 0
    %979 = vmatprep.subr.bf16.mxu0 0
    %980 = vmatpush1.bf16.msra.mxu0 0
    %981 = vmatprep.subr.bf16.mxu0 0
    %982 = vmatpush1.bf16.msra.mxu0 0
    %983 = vmatprep.subr.bf16.mxu0 0
    %984 = vmatpush1.bf16.msra.mxu0 0
    %985 = vmatprep.subr.bf16.mxu0 0
    %986 = vmatpush1.bf16.msra.mxu0 0
    %987 = vmatprep.subr.bf16.mxu0 0
    %988 = vmatpush1.bf16.msra.mxu0 0
    %989 = vmatprep.subr.bf16.mxu0 0
    %990 = vmatpush1.bf16.msra.mxu0 0
    %991 = vmatprep.subr.bf16.mxu0 0
    %992 = vmatpush1.bf16.msra.mxu0 0
    %993 = vmatprep.subr.bf16.mxu0 0
    %994 = vmatpush1.bf16.msra.mxu0 %v977
    %995 = vmatprep.subr.bf16.mxu0 0
    %996 = vmatpush2.bf16.msra.mxu0 0
    %997 = vmatprep.subr.bf16.mxu0 0
    %998 = vmatpush2.bf16.msra.mxu0 0
    %999 = vmatprep.subr.bf16.mxu0 0
    %1000 = vmatpush2.bf16.msra.mxu0 0
    %1001 = vmatprep.subr.bf16.mxu0 0
    %1002 = vmatpush2.bf16.msra.mxu0 0
    %1003 = vmatprep.subr.bf16.mxu0 0
    %1004 = vmatpush2.bf16.msra.mxu0 0
    %1005 = vmatprep.subr.bf16.mxu0 0
    %1006 = vmatpush2.bf16.msra.mxu0 0
    %1007 = vmatprep.subr.bf16.mxu0 0
    %1008 = vmatpush2.bf16.msra.mxu0 0
    %1009 = vmatprep.subr.bf16.mxu0 0
    %1010 = vmatpush2.bf16.msra.mxu0 0
    %1011 = vmatprep.mubr.bf16.mxu0 0
    %1012 = vmatmul.mubr.bf16.gmra.mxu0 %v974
    %v1013 = vpop.f32.mrf.mxu0
    %v1014 = vadd.f32 0.0, %v1013
    %v1015 = vpop.f32.mrf.mxu0
    %v1016 = vpop.f32.mrf.mxu0
    %v1017 = vpop.f32.mrf.mxu0
    %1018 = vdwg.mxu0
    %1019 = vrot.lane.b32.xlu0 %v354, 104
    %v1020 = vpop.permute.xlu0 %1019
    %1021 = vrot.lane.b32.xlu0 %v359, 72
    %v1022 = vpop.permute.xlu0 %1021
    %v1024 = vsel %vm362, %v1020, 0
    %v1027 = vsel %vm362, %v1022, 0
    %1029 = vmatprep.subr.bf16.mxu0 0
    %1030 = vmatpush1.bf16.xpose.msra.mxu0 0
    %1031 = vmatprep.subr.bf16.mxu0 0
    %1032 = vmatpush1.bf16.xpose.msra.mxu0 0
    %1033 = vmatprep.subr.bf16.mxu0 0
    %1034 = vmatpush1.bf16.xpose.msra.mxu0 0
    %1035 = vmatprep.subr.bf16.mxu0 0
    %1036 = vmatpush1.bf16.xpose.msra.mxu0 0
    %1037 = vmatprep.subr.bf16.mxu0 0
    %1038 = vmatpush1.bf16.xpose.msra.mxu0 0
    %1039 = vmatprep.subr.bf16.mxu0 0
    %1040 = vmatpush1.bf16.xpose.msra.mxu0 0
    %1041 = vmatprep.subr.bf16.mxu0 0
    %1042 = vmatpush1.bf16.xpose.msra.mxu0 0
    %1043 = vmatprep.subr.bf16.mxu0 0
    %1044 = vmatpush1.bf16.xpose.msra.mxu0 %v1027
    %1045 = vmatprep.subr.bf16.mxu0 0
    %1046 = vmatpush2.bf16.xpose.msra.mxu0 0
    %1047 = vmatprep.subr.bf16.mxu0 0
    %1048 = vmatpush2.bf16.xpose.msra.mxu0 0
    %1049 = vmatprep.subr.bf16.mxu0 0
    %1050 = vmatpush2.bf16.xpose.msra.mxu0 0
    %1051 = vmatprep.subr.bf16.mxu0 0
    %1052 = vmatpush2.bf16.xpose.msra.mxu0 0
    %1053 = vmatprep.subr.bf16.mxu0 0
    %1054 = vmatpush2.bf16.xpose.msra.mxu0 0
    %1055 = vmatprep.subr.bf16.mxu0 0
    %1056 = vmatpush2.bf16.xpose.msra.mxu0 0
    %1057 = vmatprep.subr.bf16.mxu0 0
    %1058 = vmatpush2.bf16.xpose.msra.mxu0 0
    %1059 = vmatprep.subr.bf16.mxu0 0
    %1060 = vmatpush2.bf16.xpose.msra.mxu0 0
    %1061 = vmatprep.mubr.bf16.mxu0 0
    %1062 = vmatmul.mubr.bf16.gmra.mxu0 %v1024
    %v1063 = vpop.f32.mrf.mxu0
    %v1064 = vadd.f32 %v340, %v1063
    %v1065 = vpop.f32.mrf.mxu0
    %v1066 = vpop.f32.mrf.mxu0
    %v1067 = vpop.f32.mrf.mxu0
    %1068 = vdwg.mxu0
    %1069 = vrot.lane.b32.xlu0 %v355, 104
    %v1070 = vpop.permute.xlu0 %1069
    %1071 = vrot.lane.b32.xlu0 %v409, 72
    %v1072 = vpop.permute.xlu0 %1071
    %v1074 = vsel %vm362, %v1070, 0
    %v1077 = vsel %vm362, %v1072, 0
    %1079 = vmatprep.subr.bf16.mxu0 0
    %1080 = vmatpush1.bf16.xpose.msra.mxu0 0
    %1081 = vmatprep.subr.bf16.mxu0 0
    %1082 = vmatpush1.bf16.xpose.msra.mxu0 0
    %1083 = vmatprep.subr.bf16.mxu0 0
    %1084 = vmatpush1.bf16.xpose.msra.mxu0 0
    %1085 = vmatprep.subr.bf16.mxu0 0
    %1086 = vmatpush1.bf16.xpose.msra.mxu0 0
    %1087 = vmatprep.subr.bf16.mxu0 0
    %1088 = vmatpush1.bf16.xpose.msra.mxu0 0
    %1089 = vmatprep.subr.bf16.mxu0 0
    %1090 = vmatpush1.bf16.xpose.msra.mxu0 0
    %1091 = vmatprep.subr.bf16.mxu0 0
    %1092 = vmatpush1.bf16.xpose.msra.mxu0 0
    %1093 = vmatprep.subr.bf16.mxu0 0
    %1094 = vmatpush1.bf16.xpose.msra.mxu0 %v1077
    %1095 = vmatprep.subr.bf16.mxu0 0
    %1096 = vmatpush2.bf16.xpose.msra.mxu0 0
    %1097 = vmatprep.subr.bf16.mxu0 0
    %1098 = vmatpush2.bf16.xpose.msra.mxu0 0
    %1099 = vmatprep.subr.bf16.mxu0 0
    %1100 = vmatpush2.bf16.xpose.msra.mxu0 0
    %1101 = vmatprep.subr.bf16.mxu0 0
    %1102 = vmatpush2.bf16.xpose.msra.mxu0 0
    %1103 = vmatprep.subr.bf16.mxu0 0
    %1104 = vmatpush2.bf16.xpose.msra.mxu0 0
    %1105 = vmatprep.subr.bf16.mxu0 0
    %1106 = vmatpush2.bf16.xpose.msra.mxu0 0
    %1107 = vmatprep.subr.bf16.mxu0 0
    %1108 = vmatpush2.bf16.xpose.msra.mxu0 0
    %1109 = vmatprep.subr.bf16.mxu0 0
    %1110 = vmatpush2.bf16.xpose.msra.mxu0 0
    %1111 = vmatprep.mubr.bf16.mxu0 0
    %1112 = vmatmul.mubr.bf16.gmra.mxu0 %v1074
    %v1113 = vpop.f32.mrf.mxu0
    %v1114 = vadd.f32 %v344, %v1113
    %v1115 = vpop.f32.mrf.mxu0
    %v1116 = vpop.f32.mrf.mxu0
    %v1117 = vpop.f32.mrf.mxu0
    %1118 = vdwg.mxu0
    %v1119 = vsel %vm362, %v1064, -inf
    %1120 = vmax.xlane.f32.xlu0 %v1119
    %v1121 = vpop.xlane.xlu0 %1120
    %v1122 = vsel %vm362, %v1114, -inf
    %1123 = vmax.xlane.f32.xlu0 %v1122
    %v1124 = vpop.xlane.xlu0 %1123
    %v1125 = vsub.f32 %v1064, %v1121
    %v1126 = vsub.f32 %v1114, %v1124
    %v1127 = vmul.f32 %v1125, 1.442695
    %v1128 = vpow.pop %v1127
    %v1129 = vmul.f32 %v1126, 1.442695
    %v1130 = vpow.pop %v1129
    %v1131 = vsel %vm362, %v1128, 0.0
    %1132 = vadd.xlane.f32.xlu0 %v1131
    %v1133 = vpop.xlane.xlu0 %1132
    %v1134 = vsel %vm362, %v1130, 0.0
    %1135 = vadd.xlane.f32.xlu0 %v1134
    %v1136 = vpop.xlane.xlu0 %1135
    %v1137 = vrcp.pop %v1133
    %v1138 = vrcp.pop %v1136
    %v1139 = vmul.f32 %v1128, %v1137
    %v1140 = vmul.f32 %v1130, %v1138
    %v1141 = vpack.c.bf16 %v1139, %v1139
    %v1142 = vpack.c.bf16 %v1140, %v1140
    %1143 = vrot.lane.b32.xlu0 %v359, 40
    %v1144 = vpop.permute.xlu0 %1143
    %v1146 = vsel %vm362, %v1141, 0
    %v1149 = vsel %vm487, %v1144, 0
    %1151 = vmatprep.subr.bf16.mxu0 0
    %1152 = vmatpush1.bf16.msra.mxu0 0
    %1153 = vmatprep.subr.bf16.mxu0 0
    %1154 = vmatpush1.bf16.msra.mxu0 0
    %1155 = vmatprep.subr.bf16.mxu0 0
    %1156 = vmatpush1.bf16.msra.mxu0 0
    %1157 = vmatprep.subr.bf16.mxu0 0
    %1158 = vmatpush1.bf16.msra.mxu0 0
    %1159 = vmatprep.subr.bf16.mxu0 0
    %1160 = vmatpush1.bf16.msra.mxu0 0
    %1161 = vmatprep.subr.bf16.mxu0 0
    %1162 = vmatpush1.bf16.msra.mxu0 0
    %1163 = vmatprep.subr.bf16.mxu0 0
    %1164 = vmatpush1.bf16.msra.mxu0 0
    %1165 = vmatprep.subr.bf16.mxu0 0
    %1166 = vmatpush1.bf16.msra.mxu0 %v1149
    %1167 = vmatprep.subr.bf16.mxu0 0
    %1168 = vmatpush2.bf16.msra.mxu0 0
    %1169 = vmatprep.subr.bf16.mxu0 0
    %1170 = vmatpush2.bf16.msra.mxu0 0
    %1171 = vmatprep.subr.bf16.mxu0 0
    %1172 = vmatpush2.bf16.msra.mxu0 0
    %1173 = vmatprep.subr.bf16.mxu0 0
    %1174 = vmatpush2.bf16.msra.mxu0 0
    %1175 = vmatprep.subr.bf16.mxu0 0
    %1176 = vmatpush2.bf16.msra.mxu0 0
    %1177 = vmatprep.subr.bf16.mxu0 0
    %1178 = vmatpush2.bf16.msra.mxu0 0
    %1179 = vmatprep.subr.bf16.mxu0 0
    %1180 = vmatpush2.bf16.msra.mxu0 0
    %1181 = vmatprep.subr.bf16.mxu0 0
    %1182 = vmatpush2.bf16.msra.mxu0 0
    %1183 = vmatprep.mubr.bf16.mxu0 0
    %1184 = vmatmul.mubr.bf16.gmra.mxu0 %v1146
    %v1185 = vpop.f32.mrf.mxu0
    %v1186 = vadd.f32 0.0, %v1185
    %v1187 = vpop.f32.mrf.mxu0
    %v1188 = vpop.f32.mrf.mxu0
    %v1189 = vpop.f32.mrf.mxu0
    %1190 = vdwg.mxu0
    %1191 = vrot.lane.b32.xlu0 %v409, 40
    %v1192 = vpop.permute.xlu0 %1191
    %v1194 = vsel %vm362, %v1142, 0
    %v1197 = vsel %vm487, %v1192, 0
    %1199 = vmatprep.subr.bf16.mxu0 0
    %1200 = vmatpush1.bf16.msra.mxu0 0
    %1201 = vmatprep.subr.bf16.mxu0 0
    %1202 = vmatpush1.bf16.msra.mxu0 0
    %1203 = vmatprep.subr.bf16.mxu0 0
    %1204 = vmatpush1.bf16.msra.mxu0 0
    %1205 = vmatprep.subr.bf16.mxu0 0
    %1206 = vmatpush1.bf16.msra.mxu0 0
    %1207 = vmatprep.subr.bf16.mxu0 0
    %1208 = vmatpush1.bf16.msra.mxu0 0
    %1209 = vmatprep.subr.bf16.mxu0 0
    %1210 = vmatpush1.bf16.msra.mxu0 0
    %1211 = vmatprep.subr.bf16.mxu0 0
    %1212 = vmatpush1.bf16.msra.mxu0 0
    %1213 = vmatprep.subr.bf16.mxu0 0
    %1214 = vmatpush1.bf16.msra.mxu0 %v1197
    %1215 = vmatprep.subr.bf16.mxu0 0
    %1216 = vmatpush2.bf16.msra.mxu0 0
    %1217 = vmatprep.subr.bf16.mxu0 0
    %1218 = vmatpush2.bf16.msra.mxu0 0
    %1219 = vmatprep.subr.bf16.mxu0 0
    %1220 = vmatpush2.bf16.msra.mxu0 0
    %1221 = vmatprep.subr.bf16.mxu0 0
    %1222 = vmatpush2.bf16.msra.mxu0 0
    %1223 = vmatprep.subr.bf16.mxu0 0
    %1224 = vmatpush2.bf16.msra.mxu0 0
    %1225 = vmatprep.subr.bf16.mxu0 0
    %1226 = vmatpush2.bf16.msra.mxu0 0
    %1227 = vmatprep.subr.bf16.mxu0 0
    %1228 = vmatpush2.bf16.msra.mxu0 0
    %1229 = vmatprep.subr.bf16.mxu0 0
    %1230 = vmatpush2.bf16.msra.mxu0 0
    %1231 = vmatprep.mubr.bf16.mxu0 0
    %1232 = vmatmul.mubr.bf16.gmra.mxu0 %v1194
    %v1233 = vpop.f32.mrf.mxu0
    %v1234 = vadd.f32 0.0, %v1233
    %v1235 = vpop.f32.mrf.mxu0
    %v1236 = vpop.f32.mrf.mxu0
    %v1237 = vpop.f32.mrf.mxu0
    %1238 = vdwg.mxu0
    %1241 = vrot.lane.b32.xlu0 %v746, 8
    %v1242 = vpop.permute.xlu0 %1241
    %1243 = vrot.lane.b32.xlu0 %v794, 8
    %v1244 = vpop.permute.xlu0 %1243
    %1249 = vrot.lane.b32.xlu0 %v966, 16
    %v1250 = vpop.permute.xlu0 %1249
    %1251 = vrot.lane.b32.xlu0 %v1014, 16
    %v1252 = vpop.permute.xlu0 %1251
    %1257 = vrot.lane.b32.xlu0 %v1186, 24
    %v1258 = vpop.permute.xlu0 %1257
    %1259 = vrot.lane.b32.xlu0 %v1234, 24
    %v1260 = vpop.permute.xlu0 %1259
    %v1263 = vsel %vm362, %v526, %v1242
    %v1264 = vsel %vm362, %v574, %v1244
    %v1265 = vsel %vm164, %v1263, %v1250
    %v1266 = vsel %vm164, %v1264, %v1252
    %vm1267 = vcmask 195584
    %v1268 = vsel %vm1267, %v1265, %v1258
    %v1269 = vsel %vm1267, %v1266, %v1260
    %v1270 = vpack.c.bf16 %v1269, %v1268
    %v1271 = vld [vmem:[#allocation2 + $0x40] sm:$0xf]
    %v1272 = vld [vmem:[#allocation2 + $0x44] sm:$0xf]
    %v1273 = vld [vmem:[#allocation2 + $0x48] sm:$0xf]
    %v1274 = vld [vmem:[#allocation2 + $0x4c] sm:$0xf]
    %v1275 = vld [vmem:[%s1 + $0x7] sm:$0x1]
    %v1276 = vlaneseq
    %v1277 = vshrl.u32 %v1276, 7
    %v1278 = vsub.s32 0, %v1277
    %v1279 = vrot.slane %v1275, %v1278
    %v1284 = vunpack.c.l.b16 %v1271
    %v1285 = vunpack.c.l.b16 %v1272
    %v1286 = vunpack.c.l.b16 %v1273
    %v1287 = vunpack.c.l.b16 %v1274
    %v1288 = vpack.c.b16 %v1285, %v1284
    %v1289 = vpack.c.b16 %v1287, %v1286
    %v1293 = vsel %vm223, %v1270, 0
    %1295 = vmatprep.subr.bf16.mxu0 0
    %1296 = vmatpush1.bf16.msra.mxu0 0
    %1297 = vmatprep.subr.bf16.mxu0 0
    %1298 = vmatpush1.bf16.msra.mxu0 0
    %1299 = vmatprep.subr.bf16.mxu0 0
    %1300 = vmatpush1.bf16.msra.mxu0 0
    %1301 = vmatprep.subr.bf16.mxu0 0
    %1302 = vmatpush1.bf16.msra.mxu0 0
    %1303 = vmatprep.subr.bf16.mxu0 0
    %1304 = vmatpush1.bf16.msra.mxu0 0
    %1305 = vmatprep.subr.bf16.mxu0 0
    %1306 = vmatpush1.bf16.msra.mxu0 0
    %1307 = vmatprep.subr.bf16.mxu0 0
    %1308 = vmatpush1.bf16.msra.mxu0 %v1289
    %1309 = vmatprep.subr.bf16.mxu0 0
    %1310 = vmatpush1.bf16.msra.mxu0 %v1288
    %1311 = vmatprep.subr.bf16.mxu0 0
    %1312 = vmatpush2.bf16.msra.mxu0 0
    %1313 = vmatprep.subr.bf16.mxu0 0
    %1314 = vmatpush2.bf16.msra.mxu0 0
    %1315 = vmatprep.subr.bf16.mxu0 0
    %1316 = vmatpush2.bf16.msra.mxu0 0
    %1317 = vmatprep.subr.bf16.mxu0 0
    %1318 = vmatpush2.bf16.msra.mxu0 0
    %1319 = vmatprep.subr.bf16.mxu0 0
    %1320 = vmatpush2.bf16.msra.mxu0 0
    %1321 = vmatprep.subr.bf16.mxu0 0
    %1322 = vmatpush2.bf16.msra.mxu0 0
    %1323 = vmatprep.subr.bf16.mxu0 0
    %1324 = vmatpush2.bf16.msra.mxu0 0
    %1325 = vmatprep.subr.bf16.mxu0 0
    %1326 = vmatpush2.bf16.msra.mxu0 0
    %1327 = vmatprep.mubr.bf16.mxu0 0
    %1328 = vmatmul.mubr.bf16.gmra.mxu0 %v1293
    %v1329 = vpop.f32.mrf.mxu0
    %v1330 = vadd.f32 %v1279, %v1329
    %v1331 = vpop.f32.mrf.mxu0
    %v1332 = vpop.f32.mrf.mxu0
    %v1333 = vadd.f32 %v1279, %v1332
    %v1334 = vpop.f32.mrf.mxu0
    %1335 = vdwg.mxu0
    %v1336 = vadd.f32 %v221, %v1330
    %v1337 = vadd.f32 %v222, %v1333
    %v1338 = vsel %vm223, %v1336, 0.0
    %1339 = vadd.xlane.f32.xlu0 %v1338
    %v1340 = vpop.xlane.xlu0 %1339
    %v1341 = vsel %vm223, %v1337, 0.0
    %1342 = vadd.xlane.f32.xlu0 %v1341
    %v1343 = vpop.xlane.xlu0 %1342
    %v1344 = vmul.f32 %v1340, %v230
    %v1345 = vmul.f32 %v1343, %v230
    %v1346 = vmul.f32 %v1336, %v1336
    %v1347 = vmul.f32 %v1337, %v1337
    %v1348 = vsel %vm223, %v1346, 0.0
    %1349 = vadd.xlane.f32.xlu0 %v1348
    %v1350 = vpop.xlane.xlu0 %1349
    %v1351 = vsel %vm223, %v1347, 0.0
    %1352 = vadd.xlane.f32.xlu0 %v1351
    %v1353 = vpop.xlane.xlu0 %1352
    %v1354 = vmul.f32 %v1350, %v230
    %v1355 = vmul.f32 %v1353, %v230
    %v1356 = vmul.f32 %v1344, %v1344
    %v1357 = vmul.f32 %v1345, %v1345
    %v1358 = vsub.f32 %v1354, %v1356
    %v1359 = vsub.f32 %v1355, %v1357
    %v1360 = vsub.f32 %v1336, %v1344
    %v1361 = vsub.f32 %v1337, %v1345
    %v1362 = vadd.f32 %v1358, 1e-05
    %v1363 = vadd.f32 %v1359, 1e-05
    %v1364 = vrsqrt.pop %v1362
    %v1365 = vrsqrt.pop %v1363
    %v1366 = vmul.f32 %v1360, %v1364
    %v1367 = vmul.f32 %v1361, %v1365
    %v1368 = vld [vmem:[%s1 + $0x2] sm:$0x1]
    %v1369 = vlaneseq
    %v1370 = vshrl.u32 %v1369, 7
    %v1371 = vsub.s32 0, %v1370
    %v1372 = vrot.slane %v1368, %v1371
    %v1373 = vmul.f32 %v1366, %v1372
    %v1374 = vmul.f32 %v1367, %v1372
    %v1375 = vld [vmem:[%s1 + $0x3] sm:$0x1]
    %v1376 = vlaneseq
    %v1377 = vshrl.u32 %v1376, 7
    %v1378 = vsub.s32 0, %v1377
    %v1379 = vrot.slane %v1375, %v1378
    %v1380 = vadd.f32 %v1373, %v1379
    %v1381 = vadd.f32 %v1374, %v1379
    %v1382 = vpack.c.bf16 %v1381, %v1380
    %v1383 = vld [vmem:[#allocation2 + $0x50] sm:$0xf]
    %v1384 = vld [vmem:[#allocation2 + $0x54] sm:$0xf]
    %v1385 = vld [vmem:[#allocation2 + $0x58] sm:$0xf]
    %v1386 = vld [vmem:[#allocation2 + $0x5c] sm:$0xf]
    %v1387 = vld [vmem:[%s1 + $0x9] sm:$0x1]
    %v1388 = vlaneseq
    %v1389 = vshrl.u32 %v1388, 7
    %v1390 = vsub.s32 0, %v1389
    %v1391 = vrot.slane %v1387, %v1390
    %v1396 = vunpack.c.l.b16 %v1383
    %v1397 = vunpack.c.l.b16 %v1384
    %v1398 = vunpack.c.l.b16 %v1385
    %v1399 = vunpack.c.l.b16 %v1386
    %v1400 = vpack.c.b16 %v1397, %v1396
    %v1401 = vpack.c.b16 %v1399, %v1398
    %v1405 = vsel %vm223, %v1382, 0
    %1407 = vmatprep.subr.bf16.mxu0 0
    %1408 = vmatpush1.bf16.msra.mxu0 0
    %1409 = vmatprep.subr.bf16.mxu0 0
    %1410 = vmatpush1.bf16.msra.mxu0 0
    %1411 = vmatprep.subr.bf16.mxu0 0
    %1412 = vmatpush1.bf16.msra.mxu0 0
    %1413 = vmatprep.subr.bf16.mxu0 0
    %1414 = vmatpush1.bf16.msra.mxu0 0
    %1415 = vmatprep.subr.bf16.mxu0 0
    %1416 = vmatpush1.bf16.msra.mxu0 0
    %1417 = vmatprep.subr.bf16.mxu0 0
    %1418 = vmatpush1.bf16.msra.mxu0 0
    %1419 = vmatprep.subr.bf16.mxu0 0
    %1420 = vmatpush1.bf16.msra.mxu0 %v1401
    %1421 = vmatprep.subr.bf16.mxu0 0
    %1422 = vmatpush1.bf16.msra.mxu0 %v1400
    %1423 = vmatprep.subr.bf16.mxu0 0
    %1424 = vmatpush2.bf16.msra.mxu0 0
    %1425 = vmatprep.subr.bf16.mxu0 0
    %1426 = vmatpush2.bf16.msra.mxu0 0
    %1427 = vmatprep.subr.bf16.mxu0 0
    %1428 = vmatpush2.bf16.msra.mxu0 0
    %1429 = vmatprep.subr.bf16.mxu0 0
    %1430 = vmatpush2.bf16.msra.mxu0 0
    %1431 = vmatprep.subr.bf16.mxu0 0
    %1432 = vmatpush2.bf16.msra.mxu0 0
    %1433 = vmatprep.subr.bf16.mxu0 0
    %1434 = vmatpush2.bf16.msra.mxu0 0
    %1435 = vmatprep.subr.bf16.mxu0 0
    %1436 = vmatpush2.bf16.msra.mxu0 0
    %1437 = vmatprep.subr.bf16.mxu0 0
    %1438 = vmatpush2.bf16.msra.mxu0 0
    %1439 = vmatprep.mubr.bf16.mxu0 0
    %1440 = vmatmul.mubr.bf16.gmra.mxu0 %v1405
    %v1441 = vpop.f32.mrf.mxu0
    %v1442 = vadd.f32 %v1391, %v1441
    %v1443 = vpop.f32.mrf.mxu0
    %v1444 = vpop.f32.mrf.mxu0
    %v1445 = vadd.f32 %v1391, %v1444
    %v1446 = vpop.f32.mrf.mxu0
    %1447 = vdwg.mxu0
    %v1448 = vmul.f32 %v1442, %v1442
    %v1449 = vmul.f32 %v1445, %v1445
    %v1450 = vmul.f32 %v1442, %v1448
    %v1451 = vmul.f32 %v1445, %v1449
    %v1452 = vmul.f32 %v1450, 0.044715
    %v1453 = vmul.f32 %v1451, 0.044715
    %v1454 = vadd.f32 %v1442, %v1452
    %v1455 = vadd.f32 %v1445, %v1453
    %v1456 = vmul.f32 %v1454, 0.7978846
    %v1457 = vmul.f32 %v1455, 0.7978846
    %v1458 = vtanh.pop %v1456
    %v1459 = vtanh.pop %v1457
    %v1460 = vadd.f32 %v1458, 1.0
    %v1461 = vadd.f32 %v1459, 1.0
    %v1462 = vmul.f32 %v1460, 0.5
    %v1463 = vmul.f32 %v1461, 0.5
    %v1464 = vmul.f32 %v1442, %v1462
    %v1465 = vmul.f32 %v1445, %v1463
    %v1466 = vpack.c.bf16 %v1465, %v1464
    %v1467 = vld [vmem:[#allocation2 + $0x60] sm:$0xf]
    %v1468 = vld [vmem:[#allocation2 + $0x64] sm:$0xf]
    %v1469 = vld [vmem:[#allocation2 + $0x68] sm:$0xf]
    %v1470 = vld [vmem:[#allocation2 + $0x6c] sm:$0xf]
    %v1471 = vld [vmem:[#allocation2 + $0x70] sm:$0xf]
    %v1472 = vld [vmem:[#allocation2 + $0x74] sm:$0xf]
    %v1473 = vld [vmem:[#allocation2 + $0x78] sm:$0xf]
    %v1474 = vld [vmem:[#allocation2 + $0x7c] sm:$0xf]
    %v1475 = vld [vmem:[%s1 + $0xa] sm:$0x1]
    %v1476 = vlaneseq
    %v1477 = vshrl.u32 %v1476, 7
    %v1478 = vsub.s32 0, %v1477
    %v1479 = vrot.slane %v1475, %v1478
    %v1488 = vunpack.c.l.b16 %v1467
    %v1489 = vunpack.c.l.b16 %v1468
    %v1490 = vunpack.c.l.b16 %v1469
    %v1491 = vunpack.c.l.b16 %v1470
    %v1492 = vunpack.c.l.b16 %v1471
    %v1493 = vunpack.c.l.b16 %v1472
    %v1494 = vunpack.c.l.b16 %v1473
    %v1495 = vunpack.c.l.b16 %v1474
    %v1496 = vpack.c.b16 %v1489, %v1488
    %v1497 = vpack.c.b16 %v1491, %v1490
    %v1498 = vpack.c.b16 %v1493, %v1492
    %v1499 = vpack.c.b16 %v1495, %v1494
    %v1505 = vsel %vm103, %v1466, 0
    %1507 = vmatprep.subr.bf16.mxu0 0
    %1508 = vmatpush1.bf16.msra.mxu0 0
    %1509 = vmatprep.subr.bf16.mxu0 0
    %1510 = vmatpush1.bf16.msra.mxu0 0
    %1511 = vmatprep.subr.bf16.mxu0 0
    %1512 = vmatpush1.bf16.msra.mxu0 0
    %1513 = vmatprep.subr.bf16.mxu0 0
    %1514 = vmatpush1.bf16.msra.mxu0 0
    %1515 = vmatprep.subr.bf16.mxu0 0
    %1516 = vmatpush1.bf16.msra.mxu0 %v1499
    %1517 = vmatprep.subr.bf16.mxu0 0
    %1518 = vmatpush1.bf16.msra.mxu0 %v1498
    %1519 = vmatprep.subr.bf16.mxu0 0
    %1520 = vmatpush1.bf16.msra.mxu0 %v1497
    %1521 = vmatprep.subr.bf16.mxu0 0
    %1522 = vmatpush1.bf16.msra.mxu0 %v1496
    %1523 = vmatprep.subr.bf16.mxu0 0
    %1524 = vmatpush2.bf16.msra.mxu0 0
    %1525 = vmatprep.subr.bf16.mxu0 0
    %1526 = vmatpush2.bf16.msra.mxu0 0
    %1527 = vmatprep.subr.bf16.mxu0 0
    %1528 = vmatpush2.bf16.msra.mxu0 0
    %1529 = vmatprep.subr.bf16.mxu0 0
    %1530 = vmatpush2.bf16.msra.mxu0 0
    %1531 = vmatprep.subr.bf16.mxu0 0
    %1532 = vmatpush2.bf16.msra.mxu0 0
    %1533 = vmatprep.subr.bf16.mxu0 0
    %1534 = vmatpush2.bf16.msra.mxu0 0
    %1535 = vmatprep.subr.bf16.mxu0 0
    %1536 = vmatpush2.bf16.msra.mxu0 0
    %1537 = vmatprep.subr.bf16.mxu0 0
    %1538 = vmatpush2.bf16.msra.mxu0 0
    %1539 = vmatprep.mubr.bf16.mxu0 0
    %1540 = vmatmul.mubr.bf16.gmra.mxu0 %v1505
    %v1541 = vpop.f32.mrf.mxu0
    %v1542 = vadd.f32 %v1479, %v1541
    %v1543 = vpop.f32.mrf.mxu0
    %v1544 = vpop.f32.mrf.mxu0
    %v1545 = vadd.f32 %v1479, %v1544
    %v1546 = vpop.f32.mrf.mxu0
    %1547 = vdwg.mxu0
    %v1548 = vadd.f32 %v1336, %v1542
    %v1549 = vadd.f32 %v1337, %v1545
    %v1550 = vsel %vm223, %v1548, 0.0
    %1551 = vadd.xlane.f32.xlu0 %v1550
    %v1552 = vpop.xlane.xlu0 %1551
    %v1553 = vsel %vm223, %v1549, 0.0
    %1554 = vadd.xlane.f32.xlu0 %v1553
    %v1555 = vpop.xlane.xlu0 %1554
    %v1556 = vmul.f32 %v1552, %v230
    %v1557 = vmul.f32 %v1555, %v230
    %v1558 = vmul.f32 %v1548, %v1548
    %v1559 = vmul.f32 %v1549, %v1549
    %v1560 = vsel %vm223, %v1558, 0.0
    %1561 = vadd.xlane.f32.xlu0 %v1560
    %v1562 = vpop.xlane.xlu0 %1561
    %v1563 = vsel %vm223, %v1559, 0.0
    %1564 = vadd.xlane.f32.xlu0 %v1563
    %v1565 = vpop.xlane.xlu0 %1564
    %v1566 = vmul.f32 %v1562, %v230
    %v1567 = vmul.f32 %v1565, %v230
    %v1568 = vmul.f32 %v1556, %v1556
    %v1569 = vmul.f32 %v1557, %v1557
    %v1570 = vsub.f32 %v1566, %v1568
    %v1571 = vsub.f32 %v1567, %v1569
    %v1572 = vsub.f32 %v1548, %v1556
    %v1573 = vsub.f32 %v1549, %v1557
    %v1574 = vadd.f32 %v1570, 1e-05
    %v1575 = vadd.f32 %v1571, 1e-05
    %v1576 = vrsqrt.pop %v1574
    %v1577 = vrsqrt.pop %v1575
    %v1578 = vmul.f32 %v1572, %v1576
    %v1579 = vmul.f32 %v1573, %v1577
    %v1580 = vld [vmem:[%s1 + $0x4] sm:$0x1]
    %v1581 = vlaneseq
    %v1582 = vshrl.u32 %v1581, 7
    %v1583 = vsub.s32 0, %v1582
    %v1584 = vrot.slane %v1580, %v1583
    %v1585 = vmul.f32 %v1578, %v1584
    %v1586 = vmul.f32 %v1579, %v1584
    %v1587 = vld [vmem:[%s1 + $0x5] sm:$0x1]
    %v1588 = vlaneseq
    %v1589 = vshrl.u32 %v1588, 7
    %v1590 = vsub.s32 0, %v1589
    %v1591 = vrot.slane %v1587, %v1590
    %v1592 = vadd.f32 %v1585, %v1591
    %v1593 = vadd.f32 %v1586, %v1591
    %v1594 = vld [vmem:[%s4 + $0x10] sm:$0xff]
    %v1595 = vld [vmem:[%s4 + $0x18] sm:$0xff]
    %1596 = vset.pattern.permute.xlu0 0
    %1597 = vperm.xlu0 %1596, %v1594
    %v1598 = vpop.permute.xlu0 %1597
    %1599 = vset.pattern.permute.xlu0 0
    %1600 = vperm.xlu0 %1599, %v1595
    %v1601 = vpop.permute.xlu0 %1600
    %vm1602 = vcmp.eq.s32.totalorder %v44, %v1598
    %vm1603 = vcmp.eq.s32.totalorder %v44, %v1601
    %v1604 = vsel %vm1602, 1, 0
    %v1605 = vsel %vm1603, 1, 0
    %v1606 = vcvt.s32.f32 %v1604
    %v1607 = vcvt.s32.f32 %v1605
    %v1608 = vpack.c.bf16 %v1607, %v1606
    %v1609 = vld [vmem:[#allocation2 + $0x80] sm:$0xf]
    %v1610 = vld [vmem:[#allocation2 + $0x84] sm:$0xf]
    %v1611 = vld [vmem:[#allocation2 + $0x88] sm:$0xf]
    %v1612 = vld [vmem:[#allocation2 + $0x8c] sm:$0xf]
    %v1613 = vld [vmem:[#allocation2 + $0x90] sm:$0xf]
    %v1614 = vld [vmem:[#allocation2 + $0x94] sm:$0xf]
    %v1615 = vld [vmem:[#allocation2 + $0x98] sm:$0xf]
    %v1616 = vld [vmem:[#allocation2 + $0x9c] sm:$0xf]
    %v1617 = vld [vmem:[#allocation2 + $0xa0] sm:$0xf]
    %v1618 = vld [vmem:[#allocation2 + $0xa4] sm:$0xf]
    %v1619 = vunpack.c.l.bf16 %v1617
    %v1620 = vunpack.c.l.bf16 %v1618
    %v1629 = vunpack.c.l.b16 %v1609
    %v1630 = vunpack.c.l.b16 %v1610
    %v1631 = vunpack.c.l.b16 %v1611
    %v1632 = vunpack.c.l.b16 %v1612
    %v1633 = vunpack.c.l.b16 %v1613
    %v1634 = vunpack.c.l.b16 %v1614
    %v1635 = vunpack.c.l.b16 %v1615
    %v1636 = vunpack.c.l.b16 %v1616
    %v1637 = vpack.c.b16 %v1630, %v1629
    %v1638 = vpack.c.b16 %v1632, %v1631
    %v1639 = vpack.c.b16 %v1634, %v1633
    %v1640 = vpack.c.b16 %v1636, %v1635
    %v1646 = vsel %vm103, %v1608, 0
    %1648 = vmatprep.subr.bf16.mxu0 0
    %1649 = vmatpush1.bf16.msra.mxu0 0
    %1650 = vmatprep.subr.bf16.mxu0 0
    %1651 = vmatpush1.bf16.msra.mxu0 0
    %1652 = vmatprep.subr.bf16.mxu0 0
    %1653 = vmatpush1.bf16.msra.mxu0 0
    %1654 = vmatprep.subr.bf16.mxu0 0
    %1655 = vmatpush1.bf16.msra.mxu0 0
    %1656 = vmatprep.subr.bf16.mxu0 0
    %1657 = vmatpush1.bf16.msra.mxu0 %v1640
    %1658 = vmatprep.subr.bf16.mxu0 0
    %1659 = vmatpush1.bf16.msra.mxu0 %v1639
    %1660 = vmatprep.subr.bf16.mxu0 0
    %1661 = vmatpush1.bf16.msra.mxu0 %v1638
    %1662 = vmatprep.subr.bf16.mxu0 0
    %1663 = vmatpush1.bf16.msra.mxu0 %v1637
    %1664 = vmatprep.subr.bf16.mxu0 0
    %1665 = vmatpush2.bf16.msra.mxu0 0
    %1666 = vmatprep.subr.bf16.mxu0 0
    %1667 = vmatpush2.bf16.msra.mxu0 0
    %1668 = vmatprep.subr.bf16.mxu0 0
    %1669 = vmatpush2.bf16.msra.mxu0 0
    %1670 = vmatprep.subr.bf16.mxu0 0
    %1671 = vmatpush2.bf16.msra.mxu0 0
    %1672 = vmatprep.subr.bf16.mxu0 0
    %1673 = vmatpush2.bf16.msra.mxu0 0
    %1674 = vmatprep.subr.bf16.mxu0 0
    %1675 = vmatpush2.bf16.msra.mxu0 0
    %1676 = vmatprep.subr.bf16.mxu0 0
    %1677 = vmatpush2.bf16.msra.mxu0 0
    %1678 = vmatprep.subr.bf16.mxu0 0
    %1679 = vmatpush2.bf16.msra.mxu0 0
    %1680 = vmatprep.mubr.bf16.mxu0 0
    %1681 = vmatmul.mubr.bf16.gmra.mxu0 %v1646
    %v1682 = vpop.f32.mrf.mxu0
    %v1683 = vadd.f32 %v1619, %v1682
    %v1684 = vpop.f32.mrf.mxu0
    %v1685 = vpop.f32.mrf.mxu0
    %v1686 = vadd.f32 %v1620, %v1685
    %v1687 = vpop.f32.mrf.mxu0
    %1688 = vdwg.mxu0
    %v1689 = vsel %vm223, %v1683, 0.0
    %1690 = vadd.xlane.f32.xlu0 %v1689
    %v1691 = vpop.xlane.xlu0 %1690
    %v1692 = vsel %vm223, %v1686, 0.0
    %1693 = vadd.xlane.f32.xlu0 %v1692
    %v1694 = vpop.xlane.xlu0 %1693
    %v1695 = vmul.f32 %v1691, %v230
    %v1696 = vmul.f32 %v1694, %v230
    %v1697 = vmul.f32 %v1683, %v1683
    %v1698 = vmul.f32 %v1686, %v1686
    %v1699 = vsel %vm223, %v1697, 0.0
    %1700 = vadd.xlane.f32.xlu0 %v1699
    %v1701 = vpop.xlane.xlu0 %1700
    %v1702 = vsel %vm223, %v1698, 0.0
    %1703 = vadd.xlane.f32.xlu0 %v1702
    %v1704 = vpop.xlane.xlu0 %1703
    %v1705 = vmul.f32 %v1701, %v230
    %v1706 = vmul.f32 %v1704, %v230
    %v1707 = vmul.f32 %v1695, %v1695
    %v1708 = vmul.f32 %v1696, %v1696
    %v1709 = vsub.f32 %v1705, %v1707
    %v1710 = vsub.f32 %v1706, %v1708
    %v1711 = vsub.f32 %v1683, %v1695
    %v1712 = vsub.f32 %v1686, %v1696
    %v1713 = vadd.f32 %v1709, 1e-05
    %v1714 = vadd.f32 %v1710, 1e-05
    %v1715 = vrsqrt.pop %v1713
    %v1716 = vrsqrt.pop %v1714
    %v1717 = vmul.f32 %v1711, %v1715
    %v1718 = vmul.f32 %v1712, %v1716
    %v1719 = vld [vmem:[%s1 + $0xb] sm:$0x1]
    %v1720 = vlaneseq
    %v1721 = vshrl.u32 %v1720, 7
    %v1722 = vsub.s32 0, %v1721
    %v1723 = vrot.slane %v1719, %v1722
    %v1724 = vmul.f32 %v1717, %v1723
    %v1725 = vmul.f32 %v1718, %v1723
    %v1726 = vld [vmem:[%s1 + $0xc] sm:$0x1]
    %v1727 = vlaneseq
    %v1728 = vshrl.u32 %v1727, 7
    %v1729 = vsub.s32 0, %v1728
    %v1730 = vrot.slane %v1726, %v1729
    %v1731 = vadd.f32 %v1724, %v1730
    %v1732 = vadd.f32 %v1725, %v1730
    %v1733 = vpack.c.bf16 %v1732, %v1731
    %v1734 = vld [vmem:[#allocation2 + $0xa8] sm:$0xf]
    %v1735 = vld [vmem:[#allocation2 + $0xac] sm:$0xf]
    %v1736 = vld [vmem:[#allocation2 + $0xb0] sm:$0xf]
    %v1737 = vld [vmem:[#allocation2 + $0xb4] sm:$0xf]
    %v1738 = vld [vmem:[%s1 + $0x13] sm:$0x1]
    %v1739 = vlaneseq
    %v1740 = vshrl.u32 %v1739, 7
    %v1741 = vsub.s32 0, %v1740
    %v1742 = vrot.slane %v1738, %v1741
    %v1747 = vunpack.c.l.b16 %v1734
    %v1748 = vunpack.c.l.b16 %v1735
    %v1749 = vunpack.c.l.b16 %v1736
    %v1750 = vunpack.c.l.b16 %v1737
    %v1751 = vpack.c.b16 %v1748, %v1747
    %v1752 = vpack.c.b16 %v1750, %v1749
    %v1756 = vsel %vm223, %v1733, 0
    %1758 = vmatprep.subr.bf16.mxu0 0
    %1759 = vmatpush1.bf16.msra.mxu0 0
    %1760 = vmatprep.subr.bf16.mxu0 0
    %1761 = vmatpush1.bf16.msra.mxu0 0
    %1762 = vmatprep.subr.bf16.mxu0 0
    %1763 = vmatpush1.bf16.msra.mxu0 0
    %1764 = vmatprep.subr.bf16.mxu0 0
    %1765 = vmatpush1.bf16.msra.mxu0 0
    %1766 = vmatprep.subr.bf16.mxu0 0
    %1767 = vmatpush1.bf16.msra.mxu0 0
    %1768 = vmatprep.subr.bf16.mxu0 0
    %1769 = vmatpush1.bf16.msra.mxu0 0
    %1770 = vmatprep.subr.bf16.mxu0 0
    %1771 = vmatpush1.bf16.msra.mxu0 %v1752
    %1772 = vmatprep.subr.bf16.mxu0 0
    %1773 = vmatpush1.bf16.msra.mxu0 %v1751
    %1774 = vmatprep.subr.bf16.mxu0 0
    %1775 = vmatpush2.bf16.msra.mxu0 0
    %1776 = vmatprep.subr.bf16.mxu0 0
    %1777 = vmatpush2.bf16.msra.mxu0 0
    %1778 = vmatprep.subr.bf16.mxu0 0
    %1779 = vmatpush2.bf16.msra.mxu0 0
    %1780 = vmatprep.subr.bf16.mxu0 0
    %1781 = vmatpush2.bf16.msra.mxu0 0
    %1782 = vmatprep.subr.bf16.mxu0 0
    %1783 = vmatpush2.bf16.msra.mxu0 0
    %1784 = vmatprep.subr.bf16.mxu0 0
    %1785 = vmatpush2.bf16.msra.mxu0 0
    %1786 = vmatprep.subr.bf16.mxu0 0
    %1787 = vmatpush2.bf16.msra.mxu0 0
    %1788 = vmatprep.subr.bf16.mxu0 0
    %1789 = vmatpush2.bf16.msra.mxu0 0
    %1790 = vmatprep.mubr.bf16.mxu0 0
    %1791 = vmatmul.mubr.bf16.gmra.mxu0 %v1756
    %v1792 = vpop.f32.mrf.mxu0
    %v1793 = vadd.f32 %v1742, %v1792
    %v1794 = vpop.f32.mrf.mxu0
    %v1795 = vpop.f32.mrf.mxu0
    %v1796 = vadd.f32 %v1742, %v1795
    %v1797 = vpop.f32.mrf.mxu0
    %1798 = vdwg.mxu0
    %v1799 = vmul.f32 %v1793, 0.35355338
    %v1800 = vmul.f32 %v1796, 0.35355338
    %v1801 = vpack.c.bf16 %v1800, %v1799
    %v1802 = vpack.c.bf16 %v1796, %v1793
    %v1804 = vunpack.c.l.b16 %v1801
    %v1805 = vunpack.c.h.b16 %v1801
    %v1806 = vpack.c.b16 %v1804, %v1804
    %v1807 = vpack.c.b16 %v1805, %v1805
    %v1809 = vunpack.c.l.b16 %v1802
    %v1810 = vunpack.c.h.b16 %v1802
    %v1811 = vpack.c.b16 %v1809, %v1809
    %1812 = vrot.lane.b32.xlu0 %v1811, 96
    %v1813 = vpop.permute.xlu0 %1812
    %v1815 = vsel %vm362, %v1806, 0
    %v1818 = vsel %vm362, %v1813, 0
    %1820 = vmatprep.subr.bf16.mxu0 0
    %1821 = vmatpush1.bf16.xpose.msra.mxu0 0
    %1822 = vmatprep.subr.bf16.mxu0 0
    %1823 = vmatpush1.bf16.xpose.msra.mxu0 0
    %1824 = vmatprep.subr.bf16.mxu0 0
    %1825 = vmatpush1.bf16.xpose.msra.mxu0 0
    %1826 = vmatprep.subr.bf16.mxu0 0
    %1827 = vmatpush1.bf16.xpose.msra.mxu0 0
    %1828 = vmatprep.subr.bf16.mxu0 0
    %1829 = vmatpush1.bf16.xpose.msra.mxu0 0
    %1830 = vmatprep.subr.bf16.mxu0 0
    %1831 = vmatpush1.bf16.xpose.msra.mxu0 0
    %1832 = vmatprep.subr.bf16.mxu0 0
    %1833 = vmatpush1.bf16.xpose.msra.mxu0 0
    %1834 = vmatprep.subr.bf16.mxu0 0
    %1835 = vmatpush1.bf16.xpose.msra.mxu0 %v1818
    %1836 = vmatprep.subr.bf16.mxu0 0
    %1837 = vmatpush2.bf16.xpose.msra.mxu0 0
    %1838 = vmatprep.subr.bf16.mxu0 0
    %1839 = vmatpush2.bf16.xpose.msra.mxu0 0
    %1840 = vmatprep.subr.bf16.mxu0 0
    %1841 = vmatpush2.bf16.xpose.msra.mxu0 0
    %1842 = vmatprep.subr.bf16.mxu0 0
    %1843 = vmatpush2.bf16.xpose.msra.mxu0 0
    %1844 = vmatprep.subr.bf16.mxu0 0
    %1845 = vmatpush2.bf16.xpose.msra.mxu0 0
    %1846 = vmatprep.subr.bf16.mxu0 0
    %1847 = vmatpush2.bf16.xpose.msra.mxu0 0
    %1848 = vmatprep.subr.bf16.mxu0 0
    %1849 = vmatpush2.bf16.xpose.msra.mxu0 0
    %1850 = vmatprep.subr.bf16.mxu0 0
    %1851 = vmatpush2.bf16.xpose.msra.mxu0 0
    %1852 = vmatprep.mubr.bf16.mxu0 0
    %1853 = vmatmul.mubr.bf16.gmra.mxu0 %v1815
    %v1854 = vpop.f32.mrf.mxu0
    %v1855 = vadd.f32 %v46, %v1854
    %v1856 = vpop.f32.mrf.mxu0
    %v1857 = vpop.f32.mrf.mxu0
    %v1858 = vpop.f32.mrf.mxu0
    %1859 = vdwg.mxu0
    %v1860 = vpack.c.b16 %v1810, %v1810
    %1861 = vrot.lane.b32.xlu0 %v1860, 96
    %v1862 = vpop.permute.xlu0 %1861
    %v1864 = vsel %vm362, %v1807, 0
    %v1867 = vsel %vm362, %v1862, 0
    %1869 = vmatprep.subr.bf16.mxu0 0
    %1870 = vmatpush1.bf16.xpose.msra.mxu0 0
    %1871 = vmatprep.subr.bf16.mxu0 0
    %1872 = vmatpush1.bf16.xpose.msra.mxu0 0
    %1873 = vmatprep.subr.bf16.mxu0 0
    %1874 = vmatpush1.bf16.xpose.msra.mxu0 0
    %1875 = vmatprep.subr.bf16.mxu0 0
    %1876 = vmatpush1.bf16.xpose.msra.mxu0 0
    %1877 = vmatprep.subr.bf16.mxu0 0
    %1878 = vmatpush1.bf16.xpose.msra.mxu0 0
    %1879 = vmatprep.subr.bf16.mxu0 0
    %1880 = vmatpush1.bf16.xpose.msra.mxu0 0
    %1881 = vmatprep.subr.bf16.mxu0 0
    %1882 = vmatpush1.bf16.xpose.msra.mxu0 0
    %1883 = vmatprep.subr.bf16.mxu0 0
    %1884 = vmatpush1.bf16.xpose.msra.mxu0 %v1867
    %1885 = vmatprep.subr.bf16.mxu0 0
    %1886 = vmatpush2.bf16.xpose.msra.mxu0 0
    %1887 = vmatprep.subr.bf16.mxu0 0
    %1888 = vmatpush2.bf16.xpose.msra.mxu0 0
    %1889 = vmatprep.subr.bf16.mxu0 0
    %1890 = vmatpush2.bf16.xpose.msra.mxu0 0
    %1891 = vmatprep.subr.bf16.mxu0 0
    %1892 = vmatpush2.bf16.xpose.msra.mxu0 0
    %1893 = vmatprep.subr.bf16.mxu0 0
    %1894 = vmatpush2.bf16.xpose.msra.mxu0 0
    %1895 = vmatprep.subr.bf16.mxu0 0
    %1896 = vmatpush2.bf16.xpose.msra.mxu0 0
    %1897 = vmatprep.subr.bf16.mxu0 0
    %1898 = vmatpush2.bf16.xpose.msra.mxu0 0
    %1899 = vmatprep.subr.bf16.mxu0 0
    %1900 = vmatpush2.bf16.xpose.msra.mxu0 0
    %1901 = vmatprep.mubr.bf16.mxu0 0
    %1902 = vmatmul.mubr.bf16.gmra.mxu0 %v1864
    %v1903 = vpop.f32.mrf.mxu0
    %v1904 = vadd.f32 %v46, %v1903
    %v1905 = vpop.f32.mrf.mxu0
    %v1906 = vpop.f32.mrf.mxu0
    %v1907 = vpop.f32.mrf.mxu0
    %1908 = vdwg.mxu0
    %v1909 = vsel %vm362, %v1855, -inf
    %1910 = vmax.xlane.f32.xlu0 %v1909
    %v1911 = vpop.xlane.xlu0 %1910
    %v1912 = vsel %vm362, %v1904, -inf
    %1913 = vmax.xlane.f32.xlu0 %v1912
    %v1914 = vpop.xlane.xlu0 %1913
    %v1915 = vsub.f32 %v1855, %v1911
    %v1916 = vsub.f32 %v1904, %v1914
    %v1917 = vmul.f32 %v1915, 1.442695
    %v1918 = vpow.pop %v1917
    %v1919 = vmul.f32 %v1916, 1.442695
    %v1920 = vpow.pop %v1919
    %v1921 = vsel %vm362, %v1918, 0.0
    %1922 = vadd.xlane.f32.xlu0 %v1921
    %v1923 = vpop.xlane.xlu0 %1922
    %v1924 = vsel %vm362, %v1920, 0.0
    %1925 = vadd.xlane.f32.xlu0 %v1924
    %v1926 = vpop.xlane.xlu0 %1925
    %v1927 = vrcp.pop %v1923
    %v1928 = vrcp.pop %v1926
    %v1929 = vmul.f32 %v1918, %v1927
    %v1930 = vmul.f32 %v1920, %v1928
    %v1931 = vpack.c.bf16 %v1929, %v1929
    %v1932 = vpack.c.bf16 %v1930, %v1930
    %1933 = vrot.lane.b32.xlu0 %v1811, 64
    %v1934 = vpop.permute.xlu0 %1933
    %v1936 = vsel %vm362, %v1931, 0
    %v1939 = vsel %vm487, %v1934, 0
    %1941 = vmatprep.subr.bf16.mxu0 0
    %1942 = vmatpush1.bf16.msra.mxu0 0
    %1943 = vmatprep.subr.bf16.mxu0 0
    %1944 = vmatpush1.bf16.msra.mxu0 0
    %1945 = vmatprep.subr.bf16.mxu0 0
    %1946 = vmatpush1.bf16.msra.mxu0 0
    %1947 = vmatprep.subr.bf16.mxu0 0
    %1948 = vmatpush1.bf16.msra.mxu0 0
    %1949 = vmatprep.subr.bf16.mxu0 0
    %1950 = vmatpush1.bf16.msra.mxu0 0
    %1951 = vmatprep.subr.bf16.mxu0 0
    %1952 = vmatpush1.bf16.msra.mxu0 0
    %1953 = vmatprep.subr.bf16.mxu0 0
    %1954 = vmatpush1.bf16.msra.mxu0 0
    %1955 = vmatprep.subr.bf16.mxu0 0
    %1956 = vmatpush1.bf16.msra.mxu0 %v1939
    %1957 = vmatprep.subr.bf16.mxu0 0
    %1958 = vmatpush2.bf16.msra.mxu0 0
    %1959 = vmatprep.subr.bf16.mxu0 0
    %1960 = vmatpush2.bf16.msra.mxu0 0
    %1961 = vmatprep.subr.bf16.mxu0 0
    %1962 = vmatpush2.bf16.msra.mxu0 0
    %1963 = vmatprep.subr.bf16.mxu0 0
    %1964 = vmatpush2.bf16.msra.mxu0 0
    %1965 = vmatprep.subr.bf16.mxu0 0
    %1966 = vmatpush2.bf16.msra.mxu0 0
    %1967 = vmatprep.subr.bf16.mxu0 0
    %1968 = vmatpush2.bf16.msra.mxu0 0
    %1969 = vmatprep.subr.bf16.mxu0 0
    %1970 = vmatpush2.bf16.msra.mxu0 0
    %1971 = vmatprep.subr.bf16.mxu0 0
    %1972 = vmatpush2.bf16.msra.mxu0 0
    %1973 = vmatprep.mubr.bf16.mxu0 0
    %1974 = vmatmul.mubr.bf16.gmra.mxu0 %v1936
    %v1975 = vpop.f32.mrf.mxu0
    %v1976 = vadd.f32 0.0, %v1975
    %v1977 = vpop.f32.mrf.mxu0
    %v1978 = vpop.f32.mrf.mxu0
    %v1979 = vpop.f32.mrf.mxu0
    %1980 = vdwg.mxu0
    %1981 = vrot.lane.b32.xlu0 %v1860, 64
    %v1982 = vpop.permute.xlu0 %1981
    %v1984 = vsel %vm362, %v1932, 0
    %v1987 = vsel %vm487, %v1982, 0
    %1989 = vmatprep.subr.bf16.mxu0 0
    %1990 = vmatpush1.bf16.msra.mxu0 0
    %1991 = vmatprep.subr.bf16.mxu0 0
    %1992 = vmatpush1.bf16.msra.mxu0 0
    %1993 = vmatprep.subr.bf16.mxu0 0
    %1994 = vmatpush1.bf16.msra.mxu0 0
    %1995 = vmatprep.subr.bf16.mxu0 0
    %1996 = vmatpush1.bf16.msra.mxu0 0
    %1997 = vmatprep.subr.bf16.mxu0 0
    %1998 = vmatpush1.bf16.msra.mxu0 0
    %1999 = vmatprep.subr.bf16.mxu0 0
    %2000 = vmatpush1.bf16.msra.mxu0 0
    %2001 = vmatprep.subr.bf16.mxu0 0
    %2002 = vmatpush1.bf16.msra.mxu0 0
    %2003 = vmatprep.subr.bf16.mxu0 0
    %2004 = vmatpush1.bf16.msra.mxu0 %v1987
    %2005 = vmatprep.subr.bf16.mxu0 0
    %2006 = vmatpush2.bf16.msra.mxu0 0
    %2007 = vmatprep.subr.bf16.mxu0 0
    %2008 = vmatpush2.bf16.msra.mxu0 0
    %2009 = vmatprep.subr.bf16.mxu0 0
    %2010 = vmatpush2.bf16.msra.mxu0 0
    %2011 = vmatprep.subr.bf16.mxu0 0
    %2012 = vmatpush2.bf16.msra.mxu0 0
    %2013 = vmatprep.subr.bf16.mxu0 0
    %2014 = vmatpush2.bf16.msra.mxu0 0
    %2015 = vmatprep.subr.bf16.mxu0 0
    %2016 = vmatpush2.bf16.msra.mxu0 0
    %2017 = vmatprep.subr.bf16.mxu0 0
    %2018 = vmatpush2.bf16.msra.mxu0 0
    %2019 = vmatprep.subr.bf16.mxu0 0
    %2020 = vmatpush2.bf16.msra.mxu0 0
    %2021 = vmatprep.mubr.bf16.mxu0 0
    %2022 = vmatmul.mubr.bf16.gmra.mxu0 %v1984
    %v2023 = vpop.f32.mrf.mxu0
    %v2024 = vadd.f32 0.0, %v2023
    %v2025 = vpop.f32.mrf.mxu0
    %v2026 = vpop.f32.mrf.mxu0
    %v2027 = vpop.f32.mrf.mxu0
    %2028 = vdwg.mxu0
    %2029 = vrot.lane.b32.xlu0 %v1806, 120
    %v2030 = vpop.permute.xlu0 %2029
    %2031 = vrot.lane.b32.xlu0 %v1811, 88
    %v2032 = vpop.permute.xlu0 %2031
    %v2034 = vsel %vm362, %v2030, 0
    %v2037 = vsel %vm362, %v2032, 0
    %2039 = vmatprep.subr.bf16.mxu0 0
    %2040 = vmatpush1.bf16.xpose.msra.mxu0 0
    %2041 = vmatprep.subr.bf16.mxu0 0
    %2042 = vmatpush1.bf16.xpose.msra.mxu0 0
    %2043 = vmatprep.subr.bf16.mxu0 0
    %2044 = vmatpush1.bf16.xpose.msra.mxu0 0
    %2045 = vmatprep.subr.bf16.mxu0 0
    %2046 = vmatpush1.bf16.xpose.msra.mxu0 0
    %2047 = vmatprep.subr.bf16.mxu0 0
    %2048 = vmatpush1.bf16.xpose.msra.mxu0 0
    %2049 = vmatprep.subr.bf16.mxu0 0
    %2050 = vmatpush1.bf16.xpose.msra.mxu0 0
    %2051 = vmatprep.subr.bf16.mxu0 0
    %2052 = vmatpush1.bf16.xpose.msra.mxu0 0
    %2053 = vmatprep.subr.bf16.mxu0 0
    %2054 = vmatpush1.bf16.xpose.msra.mxu0 %v2037
    %2055 = vmatprep.subr.bf16.mxu0 0
    %2056 = vmatpush2.bf16.xpose.msra.mxu0 0
    %2057 = vmatprep.subr.bf16.mxu0 0
    %2058 = vmatpush2.bf16.xpose.msra.mxu0 0
    %2059 = vmatprep.subr.bf16.mxu0 0
    %2060 = vmatpush2.bf16.xpose.msra.mxu0 0
    %2061 = vmatprep.subr.bf16.mxu0 0
    %2062 = vmatpush2.bf16.xpose.msra.mxu0 0
    %2063 = vmatprep.subr.bf16.mxu0 0
    %2064 = vmatpush2.bf16.xpose.msra.mxu0 0
    %2065 = vmatprep.subr.bf16.mxu0 0
    %2066 = vmatpush2.bf16.xpose.msra.mxu0 0
    %2067 = vmatprep.subr.bf16.mxu0 0
    %2068 = vmatpush2.bf16.xpose.msra.mxu0 0
    %2069 = vmatprep.subr.bf16.mxu0 0
    %2070 = vmatpush2.bf16.xpose.msra.mxu0 0
    %2071 = vmatprep.mubr.bf16.mxu0 0
    %2072 = vmatmul.mubr.bf16.gmra.mxu0 %v2034
    %v2073 = vpop.f32.mrf.mxu0
    %v2074 = vadd.f32 %v46, %v2073
    %v2075 = vpop.f32.mrf.mxu0
    %v2076 = vpop.f32.mrf.mxu0
    %v2077 = vpop.f32.mrf.mxu0
    %2078 = vdwg.mxu0
    %2079 = vrot.lane.b32.xlu0 %v1807, 120
    %v2080 = vpop.permute.xlu0 %2079
    %2081 = vrot.lane.b32.xlu0 %v1860, 88
    %v2082 = vpop.permute.xlu0 %2081
    %v2084 = vsel %vm362, %v2080, 0
    %v2087 = vsel %vm362, %v2082, 0
    %2089 = vmatprep.subr.bf16.mxu0 0
    %2090 = vmatpush1.bf16.xpose.msra.mxu0 0
    %2091 = vmatprep.subr.bf16.mxu0 0
    %2092 = vmatpush1.bf16.xpose.msra.mxu0 0
    %2093 = vmatprep.subr.bf16.mxu0 0
    %2094 = vmatpush1.bf16.xpose.msra.mxu0 0
    %2095 = vmatprep.subr.bf16.mxu0 0
    %2096 = vmatpush1.bf16.xpose.msra.mxu0 0
    %2097 = vmatprep.subr.bf16.mxu0 0
    %2098 = vmatpush1.bf16.xpose.msra.mxu0 0
    %2099 = vmatprep.subr.bf16.mxu0 0
    %2100 = vmatpush1.bf16.xpose.msra.mxu0 0
    %2101 = vmatprep.subr.bf16.mxu0 0
    %2102 = vmatpush1.bf16.xpose.msra.mxu0 0
    %2103 = vmatprep.subr.bf16.mxu0 0
    %2104 = vmatpush1.bf16.xpose.msra.mxu0 %v2087
    %2105 = vmatprep.subr.bf16.mxu0 0
    %2106 = vmatpush2.bf16.xpose.msra.mxu0 0
    %2107 = vmatprep.subr.bf16.mxu0 0
    %2108 = vmatpush2.bf16.xpose.msra.mxu0 0
    %2109 = vmatprep.subr.bf16.mxu0 0
    %2110 = vmatpush2.bf16.xpose.msra.mxu0 0
    %2111 = vmatprep.subr.bf16.mxu0 0
    %2112 = vmatpush2.bf16.xpose.msra.mxu0 0
    %2113 = vmatprep.subr.bf16.mxu0 0
    %2114 = vmatpush2.bf16.xpose.msra.mxu0 0
    %2115 = vmatprep.subr.bf16.mxu0 0
    %2116 = vmatpush2.bf16.xpose.msra.mxu0 0
    %2117 = vmatprep.subr.bf16.mxu0 0
    %2118 = vmatpush2.bf16.xpose.msra.mxu0 0
    %2119 = vmatprep.subr.bf16.mxu0 0
    %2120 = vmatpush2.bf16.xpose.msra.mxu0 0
    %2121 = vmatprep.mubr.bf16.mxu0 0
    %2122 = vmatmul.mubr.bf16.gmra.mxu0 %v2084
    %v2123 = vpop.f32.mrf.mxu0
    %v2124 = vadd.f32 %v46, %v2123
    %v2125 = vpop.f32.mrf.mxu0
    %v2126 = vpop.f32.mrf.mxu0
    %v2127 = vpop.f32.mrf.mxu0
    %2128 = vdwg.mxu0
    %v2129 = vsel %vm362, %v2074, -inf
    %2130 = vmax.xlane.f32.xlu0 %v2129
    %v2131 = vpop.xlane.xlu0 %2130
    %v2132 = vsel %vm362, %v2124, -inf
    %2133 = vmax.xlane.f32.xlu0 %v2132
    %v2134 = vpop.xlane.xlu0 %2133
    %v2135 = vsub.f32 %v2074, %v2131
    %v2136 = vsub.f32 %v2124, %v2134
    %v2137 = vmul.f32 %v2135, 1.442695
    %v2138 = vpow.pop %v2137
    %v2139 = vmul.f32 %v2136, 1.442695
    %v2140 = vpow.pop %v2139
    %v2141 = vsel %vm362, %v2138, 0.0
    %2142 = vadd.xlane.f32.xlu0 %v2141
    %v2143 = vpop.xlane.xlu0 %2142
    %v2144 = vsel %vm362, %v2140, 0.0
    %2145 = vadd.xlane.f32.xlu0 %v2144
    %v2146 = vpop.xlane.xlu0 %2145
    %v2147 = vrcp.pop %v2143
    %v2148 = vrcp.pop %v2146
    %v2149 = vmul.f32 %v2138, %v2147
    %v2150 = vmul.f32 %v2140, %v2148
    %v2151 = vpack.c.bf16 %v2149, %v2149
    %v2152 = vpack.c.bf16 %v2150, %v2150
    %2153 = vrot.lane.b32.xlu0 %v1811, 56
    %v2154 = vpop.permute.xlu0 %2153
    %v2156 = vsel %vm362, %v2151, 0
    %v2159 = vsel %vm487, %v2154, 0
    %2161 = vmatprep.subr.bf16.mxu0 0
    %2162 = vmatpush1.bf16.msra.mxu0 0
    %2163 = vmatprep.subr.bf16.mxu0 0
    %2164 = vmatpush1.bf16.msra.mxu0 0
    %2165 = vmatprep.subr.bf16.mxu0 0
    %2166 = vmatpush1.bf16.msra.mxu0 0
    %2167 = vmatprep.subr.bf16.mxu0 0
    %2168 = vmatpush1.bf16.msra.mxu0 0
    %2169 = vmatprep.subr.bf16.mxu0 0
    %2170 = vmatpush1.bf16.msra.mxu0 0
    %2171 = vmatprep.subr.bf16.mxu0 0
    %2172 = vmatpush1.bf16.msra.mxu0 0
    %2173 = vmatprep.subr.bf16.mxu0 0
    %2174 = vmatpush1.bf16.msra.mxu0 0
    %2175 = vmatprep.subr.bf16.mxu0 0
    %2176 = vmatpush1.bf16.msra.mxu0 %v2159
    %2177 = vmatprep.subr.bf16.mxu0 0
    %2178 = vmatpush2.bf16.msra.mxu0 0
    %2179 = vmatprep.subr.bf16.mxu0 0
    %2180 = vmatpush2.bf16.msra.mxu0 0
    %2181 = vmatprep.subr.bf16.mxu0 0
    %2182 = vmatpush2.bf16.msra.mxu0 0
    %2183 = vmatprep.subr.bf16.mxu0 0
    %2184 = vmatpush2.bf16.msra.mxu0 0
    %2185 = vmatprep.subr.bf16.mxu0 0
    %2186 = vmatpush2.bf16.msra.mxu0 0
    %2187 = vmatprep.subr.bf16.mxu0 0
    %2188 = vmatpush2.bf16.msra.mxu0 0
    %2189 = vmatprep.subr.bf16.mxu0 0
    %2190 = vmatpush2.bf16.msra.mxu0 0
    %2191 = vmatprep.subr.bf16.mxu0 0
    %2192 = vmatpush2.bf16.msra.mxu0 0
    %2193 = vmatprep.mubr.bf16.mxu0 0
    %2194 = vmatmul.mubr.bf16.gmra.mxu0 %v2156
    %v2195 = vpop.f32.mrf.mxu0
    %v2196 = vadd.f32 0.0, %v2195
    %v2197 = vpop.f32.mrf.mxu0
    %v2198 = vpop.f32.mrf.mxu0
    %v2199 = vpop.f32.mrf.mxu0
    %2200 = vdwg.mxu0
    %2201 = vrot.lane.b32.xlu0 %v1860, 56
    %v2202 = vpop.permute.xlu0 %2201
    %v2204 = vsel %vm362, %v2152, 0
    %v2207 = vsel %vm487, %v2202, 0
    %2209 = vmatprep.subr.bf16.mxu0 0
    %2210 = vmatpush1.bf16.msra.mxu0 0
    %2211 = vmatprep.subr.bf16.mxu0 0
    %2212 = vmatpush1.bf16.msra.mxu0 0
    %2213 = vmatprep.subr.bf16.mxu0 0
    %2214 = vmatpush1.bf16.msra.mxu0 0
    %2215 = vmatprep.subr.bf16.mxu0 0
    %2216 = vmatpush1.bf16.msra.mxu0 0
    %2217 = vmatprep.subr.bf16.mxu0 0
    %2218 = vmatpush1.bf16.msra.mxu0 0
    %2219 = vmatprep.subr.bf16.mxu0 0
    %2220 = vmatpush1.bf16.msra.mxu0 0
    %2221 = vmatprep.subr.bf16.mxu0 0
    %2222 = vmatpush1.bf16.msra.mxu0 0
    %2223 = vmatprep.subr.bf16.mxu0 0
    %2224 = vmatpush1.bf16.msra.mxu0 %v2207
    %2225 = vmatprep.subr.bf16.mxu0 0
    %2226 = vmatpush2.bf16.msra.mxu0 0
    %2227 = vmatprep.subr.bf16.mxu0 0
    %2228 = vmatpush2.bf16.msra.mxu0 0
    %2229 = vmatprep.subr.bf16.mxu0 0
    %2230 = vmatpush2.bf16.msra.mxu0 0
    %2231 = vmatprep.subr.bf16.mxu0 0
    %2232 = vmatpush2.bf16.msra.mxu0 0
    %2233 = vmatprep.subr.bf16.mxu0 0
    %2234 = vmatpush2.bf16.msra.mxu0 0
    %2235 = vmatprep.subr.bf16.mxu0 0
    %2236 = vmatpush2.bf16.msra.mxu0 0
    %2237 = vmatprep.subr.bf16.mxu0 0
    %2238 = vmatpush2.bf16.msra.mxu0 0
    %2239 = vmatprep.subr.bf16.mxu0 0
    %2240 = vmatpush2.bf16.msra.mxu0 0
    %2241 = vmatprep.mubr.bf16.mxu0 0
    %2242 = vmatmul.mubr.bf16.gmra.mxu0 %v2204
    %v2243 = vpop.f32.mrf.mxu0
    %v2244 = vadd.f32 0.0, %v2243
    %v2245 = vpop.f32.mrf.mxu0
    %v2246 = vpop.f32.mrf.mxu0
    %v2247 = vpop.f32.mrf.mxu0
    %2248 = vdwg.mxu0
    %2249 = vrot.lane.b32.xlu0 %v1806, 112
    %v2250 = vpop.permute.xlu0 %2249
    %2251 = vrot.lane.b32.xlu0 %v1811, 80
    %v2252 = vpop.permute.xlu0 %2251
    %v2254 = vsel %vm362, %v2250, 0
    %v2257 = vsel %vm362, %v2252, 0
    %2259 = vmatprep.subr.bf16.mxu0 0
    %2260 = vmatpush1.bf16.xpose.msra.mxu0 0
    %2261 = vmatprep.subr.bf16.mxu0 0
    %2262 = vmatpush1.bf16.xpose.msra.mxu0 0
    %2263 = vmatprep.subr.bf16.mxu0 0
    %2264 = vmatpush1.bf16.xpose.msra.mxu0 0
    %2265 = vmatprep.subr.bf16.mxu0 0
    %2266 = vmatpush1.bf16.xpose.msra.mxu0 0
    %2267 = vmatprep.subr.bf16.mxu0 0
    %2268 = vmatpush1.bf16.xpose.msra.mxu0 0
    %2269 = vmatprep.subr.bf16.mxu0 0
    %2270 = vmatpush1.bf16.xpose.msra.mxu0 0
    %2271 = vmatprep.subr.bf16.mxu0 0
    %2272 = vmatpush1.bf16.xpose.msra.mxu0 0
    %2273 = vmatprep.subr.bf16.mxu0 0
    %2274 = vmatpush1.bf16.xpose.msra.mxu0 %v2257
    %2275 = vmatprep.subr.bf16.mxu0 0
    %2276 = vmatpush2.bf16.xpose.msra.mxu0 0
    %2277 = vmatprep.subr.bf16.mxu0 0
    %2278 = vmatpush2.bf16.xpose.msra.mxu0 0
    %2279 = vmatprep.subr.bf16.mxu0 0
    %2280 = vmatpush2.bf16.xpose.msra.mxu0 0
    %2281 = vmatprep.subr.bf16.mxu0 0
    %2282 = vmatpush2.bf16.xpose.msra.mxu0 0
    %2283 = vmatprep.subr.bf16.mxu0 0
    %2284 = vmatpush2.bf16.xpose.msra.mxu0 0
    %2285 = vmatprep.subr.bf16.mxu0 0
    %2286 = vmatpush2.bf16.xpose.msra.mxu0 0
    %2287 = vmatprep.subr.bf16.mxu0 0
    %2288 = vmatpush2.bf16.xpose.msra.mxu0 0
    %2289 = vmatprep.subr.bf16.mxu0 0
    %2290 = vmatpush2.bf16.xpose.msra.mxu0 0
    %2291 = vmatprep.mubr.bf16.mxu0 0
    %2292 = vmatmul.mubr.bf16.gmra.mxu0 %v2254
    %v2293 = vpop.f32.mrf.mxu0
    %v2294 = vadd.f32 %v46, %v2293
    %v2295 = vpop.f32.mrf.mxu0
    %v2296 = vpop.f32.mrf.mxu0
    %v2297 = vpop.f32.mrf.mxu0
    %2298 = vdwg.mxu0
    %2299 = vrot.lane.b32.xlu0 %v1807, 112
    %v2300 = vpop.permute.xlu0 %2299
    %2301 = vrot.lane.b32.xlu0 %v1860, 80
    %v2302 = vpop.permute.xlu0 %2301
    %v2304 = vsel %vm362, %v2300, 0
    %v2307 = vsel %vm362, %v2302, 0
    %2309 = vmatprep.subr.bf16.mxu0 0
    %2310 = vmatpush1.bf16.xpose.msra.mxu0 0
    %2311 = vmatprep.subr.bf16.mxu0 0
    %2312 = vmatpush1.bf16.xpose.msra.mxu0 0
    %2313 = vmatprep.subr.bf16.mxu0 0
    %2314 = vmatpush1.bf16.xpose.msra.mxu0 0
    %2315 = vmatprep.subr.bf16.mxu0 0
    %2316 = vmatpush1.bf16.xpose.msra.mxu0 0
    %2317 = vmatprep.subr.bf16.mxu0 0
    %2318 = vmatpush1.bf16.xpose.msra.mxu0 0
    %2319 = vmatprep.subr.bf16.mxu0 0
    %2320 = vmatpush1.bf16.xpose.msra.mxu0 0
    %2321 = vmatprep.subr.bf16.mxu0 0
    %2322 = vmatpush1.bf16.xpose.msra.mxu0 0
    %2323 = vmatprep.subr.bf16.mxu0 0
    %2324 = vmatpush1.bf16.xpose.msra.mxu0 %v2307
    %2325 = vmatprep.subr.bf16.mxu0 0
    %2326 = vmatpush2.bf16.xpose.msra.mxu0 0
    %2327 = vmatprep.subr.bf16.mxu0 0
    %2328 = vmatpush2.bf16.xpose.msra.mxu0 0
    %2329 = vmatprep.subr.bf16.mxu0 0
    %2330 = vmatpush2.bf16.xpose.msra.mxu0 0
    %2331 = vmatprep.subr.bf16.mxu0 0
    %2332 = vmatpush2.bf16.xpose.msra.mxu0 0
    %2333 = vmatprep.subr.bf16.mxu0 0
    %2334 = vmatpush2.bf16.xpose.msra.mxu0 0
    %2335 = vmatprep.subr.bf16.mxu0 0
    %2336 = vmatpush2.bf16.xpose.msra.mxu0 0
    %2337 = vmatprep.subr.bf16.mxu0 0
    %2338 = vmatpush2.bf16.xpose.msra.mxu0 0
    %2339 = vmatprep.subr.bf16.mxu0 0
    %2340 = vmatpush2.bf16.xpose.msra.mxu0 0
    %2341 = vmatprep.mubr.bf16.mxu0 0
    %2342 = vmatmul.mubr.bf16.gmra.mxu0 %v2304
    %v2343 = vpop.f32.mrf.mxu0
    %v2344 = vadd.f32 %v46, %v2343
    %v2345 = vpop.f32.mrf.mxu0
    %v2346 = vpop.f32.mrf.mxu0
    %v2347 = vpop.f32.mrf.mxu0
    %2348 = vdwg.mxu0
    %v2349 = vsel %vm362, %v2294, -inf
    %2350 = vmax.xlane.f32.xlu0 %v2349
    %v2351 = vpop.xlane.xlu0 %2350
    %v2352 = vsel %vm362, %v2344, -inf
    %2353 = vmax.xlane.f32.xlu0 %v2352
    %v2354 = vpop.xlane.xlu0 %2353
    %v2355 = vsub.f32 %v2294, %v2351
    %v2356 = vsub.f32 %v2344, %v2354
    %v2357 = vmul.f32 %v2355, 1.442695
    %v2358 = vpow.pop %v2357
    %v2359 = vmul.f32 %v2356, 1.442695
    %v2360 = vpow.pop %v2359
    %v2361 = vsel %vm362, %v2358, 0.0
    %2362 = vadd.xlane.f32.xlu0 %v2361
    %v2363 = vpop.xlane.xlu0 %2362
    %v2364 = vsel %vm362, %v2360, 0.0
    %2365 = vadd.xlane.f32.xlu0 %v2364
    %v2366 = vpop.xlane.xlu0 %2365
    %v2367 = vrcp.pop %v2363
    %v2368 = vrcp.pop %v2366
    %v2369 = vmul.f32 %v2358, %v2367
    %v2370 = vmul.f32 %v2360, %v2368
    %v2371 = vpack.c.bf16 %v2369, %v2369
    %v2372 = vpack.c.bf16 %v2370, %v2370
    %2373 = vrot.lane.b32.xlu0 %v1811, 48
    %v2374 = vpop.permute.xlu0 %2373
    %v2376 = vsel %vm362, %v2371, 0
    %v2379 = vsel %vm487, %v2374, 0
    %2381 = vmatprep.subr.bf16.mxu0 0
    %2382 = vmatpush1.bf16.msra.mxu0 0
    %2383 = vmatprep.subr.bf16.mxu0 0
    %2384 = vmatpush1.bf16.msra.mxu0 0
    %2385 = vmatprep.subr.bf16.mxu0 0
    %2386 = vmatpush1.bf16.msra.mxu0 0
    %2387 = vmatprep.subr.bf16.mxu0 0
    %2388 = vmatpush1.bf16.msra.mxu0 0
    %2389 = vmatprep.subr.bf16.mxu0 0
    %2390 = vmatpush1.bf16.msra.mxu0 0
    %2391 = vmatprep.subr.bf16.mxu0 0
    %2392 = vmatpush1.bf16.msra.mxu0 0
    %2393 = vmatprep.subr.bf16.mxu0 0
    %2394 = vmatpush1.bf16.msra.mxu0 0
    %2395 = vmatprep.subr.bf16.mxu0 0
    %2396 = vmatpush1.bf16.msra.mxu0 %v2379
    %2397 = vmatprep.subr.bf16.mxu0 0
    %2398 = vmatpush2.bf16.msra.mxu0 0
    %2399 = vmatprep.subr.bf16.mxu0 0
    %2400 = vmatpush2.bf16.msra.mxu0 0
    %2401 = vmatprep.subr.bf16.mxu0 0
    %2402 = vmatpush2.bf16.msra.mxu0 0
    %2403 = vmatprep.subr.bf16.mxu0 0
    %2404 = vmatpush2.bf16.msra.mxu0 0
    %2405 = vmatprep.subr.bf16.mxu0 0
    %2406 = vmatpush2.bf16.msra.mxu0 0
    %2407 = vmatprep.subr.bf16.mxu0 0
    %2408 = vmatpush2.bf16.msra.mxu0 0
    %2409 = vmatprep.subr.bf16.mxu0 0
    %2410 = vmatpush2.bf16.msra.mxu0 0
    %2411 = vmatprep.subr.bf16.mxu0 0
    %2412 = vmatpush2.bf16.msra.mxu0 0
    %2413 = vmatprep.mubr.bf16.mxu0 0
    %2414 = vmatmul.mubr.bf16.gmra.mxu0 %v2376
    %v2415 = vpop.f32.mrf.mxu0
    %v2416 = vadd.f32 0.0, %v2415
    %v2417 = vpop.f32.mrf.mxu0
    %v2418 = vpop.f32.mrf.mxu0
    %v2419 = vpop.f32.mrf.mxu0
    %2420 = vdwg.mxu0
    %2421 = vrot.lane.b32.xlu0 %v1860, 48
    %v2422 = vpop.permute.xlu0 %2421
    %v2424 = vsel %vm362, %v2372, 0
    %v2427 = vsel %vm487, %v2422, 0
    %2429 = vmatprep.subr.bf16.mxu0 0
    %2430 = vmatpush1.bf16.msra.mxu0 0
    %2431 = vmatprep.subr.bf16.mxu0 0
    %2432 = vmatpush1.bf16.msra.mxu0 0
    %2433 = vmatprep.subr.bf16.mxu0 0
    %2434 = vmatpush1.bf16.msra.mxu0 0
    %2435 = vmatprep.subr.bf16.mxu0 0
    %2436 = vmatpush1.bf16.msra.mxu0 0
    %2437 = vmatprep.subr.bf16.mxu0 0
    %2438 = vmatpush1.bf16.msra.mxu0 0
    %2439 = vmatprep.subr.bf16.mxu0 0
    %2440 = vmatpush1.bf16.msra.mxu0 0
    %2441 = vmatprep.subr.bf16.mxu0 0
    %2442 = vmatpush1.bf16.msra.mxu0 0
    %2443 = vmatprep.subr.bf16.mxu0 0
    %2444 = vmatpush1.bf16.msra.mxu0 %v2427
    %2445 = vmatprep.subr.bf16.mxu0 0
    %2446 = vmatpush2.bf16.msra.mxu0 0
    %2447 = vmatprep.subr.bf16.mxu0 0
    %2448 = vmatpush2.bf16.msra.mxu0 0
    %2449 = vmatprep.subr.bf16.mxu0 0
    %2450 = vmatpush2.bf16.msra.mxu0 0
    %2451 = vmatprep.subr.bf16.mxu0 0
    %2452 = vmatpush2.bf16.msra.mxu0 0
    %2453 = vmatprep.subr.bf16.mxu0 0
    %2454 = vmatpush2.bf16.msra.mxu0 0
    %2455 = vmatprep.subr.bf16.mxu0 0
    %2456 = vmatpush2.bf16.msra.mxu0 0
    %2457 = vmatprep.subr.bf16.mxu0 0
    %2458 = vmatpush2.bf16.msra.mxu0 0
    %2459 = vmatprep.subr.bf16.mxu0 0
    %2460 = vmatpush2.bf16.msra.mxu0 0
    %2461 = vmatprep.mubr.bf16.mxu0 0
    %2462 = vmatmul.mubr.bf16.gmra.mxu0 %v2424
    %v2463 = vpop.f32.mrf.mxu0
    %v2464 = vadd.f32 0.0, %v2463
    %v2465 = vpop.f32.mrf.mxu0
    %v2466 = vpop.f32.mrf.mxu0
    %v2467 = vpop.f32.mrf.mxu0
    %2468 = vdwg.mxu0
    %2469 = vrot.lane.b32.xlu0 %v1806, 104
    %v2470 = vpop.permute.xlu0 %2469
    %2471 = vrot.lane.b32.xlu0 %v1811, 72
    %v2472 = vpop.permute.xlu0 %2471
    %v2474 = vsel %vm362, %v2470, 0
    %v2477 = vsel %vm362, %v2472, 0
    %2479 = vmatprep.subr.bf16.mxu0 0
    %2480 = vmatpush1.bf16.xpose.msra.mxu0 0
    %2481 = vmatprep.subr.bf16.mxu0 0
    %2482 = vmatpush1.bf16.xpose.msra.mxu0 0
    %2483 = vmatprep.subr.bf16.mxu0 0
    %2484 = vmatpush1.bf16.xpose.msra.mxu0 0
    %2485 = vmatprep.subr.bf16.mxu0 0
    %2486 = vmatpush1.bf16.xpose.msra.mxu0 0
    %2487 = vmatprep.subr.bf16.mxu0 0
    %2488 = vmatpush1.bf16.xpose.msra.mxu0 0
    %2489 = vmatprep.subr.bf16.mxu0 0
    %2490 = vmatpush1.bf16.xpose.msra.mxu0 0
    %2491 = vmatprep.subr.bf16.mxu0 0
    %2492 = vmatpush1.bf16.xpose.msra.mxu0 0
    %2493 = vmatprep.subr.bf16.mxu0 0
    %2494 = vmatpush1.bf16.xpose.msra.mxu0 %v2477
    %2495 = vmatprep.subr.bf16.mxu0 0
    %2496 = vmatpush2.bf16.xpose.msra.mxu0 0
    %2497 = vmatprep.subr.bf16.mxu0 0
    %2498 = vmatpush2.bf16.xpose.msra.mxu0 0
    %2499 = vmatprep.subr.bf16.mxu0 0
    %2500 = vmatpush2.bf16.xpose.msra.mxu0 0
    %2501 = vmatprep.subr.bf16.mxu0 0
    %2502 = vmatpush2.bf16.xpose.msra.mxu0 0
    %2503 = vmatprep.subr.bf16.mxu0 0
    %2504 = vmatpush2.bf16.xpose.msra.mxu0 0
    %2505 = vmatprep.subr.bf16.mxu0 0
    %2506 = vmatpush2.bf16.xpose.msra.mxu0 0
    %2507 = vmatprep.subr.bf16.mxu0 0
    %2508 = vmatpush2.bf16.xpose.msra.mxu0 0
    %2509 = vmatprep.subr.bf16.mxu0 0
    %2510 = vmatpush2.bf16.xpose.msra.mxu0 0
    %2511 = vmatprep.mubr.bf16.mxu0 0
    %2512 = vmatmul.mubr.bf16.gmra.mxu0 %v2474
    %v2513 = vpop.f32.mrf.mxu0
    %v2514 = vadd.f32 %v46, %v2513
    %v2515 = vpop.f32.mrf.mxu0
    %v2516 = vpop.f32.mrf.mxu0
    %v2517 = vpop.f32.mrf.mxu0
    %2518 = vdwg.mxu0
    %2519 = vrot.lane.b32.xlu0 %v1807, 104
    %v2520 = vpop.permute.xlu0 %2519
    %2521 = vrot.lane.b32.xlu0 %v1860, 72
    %v2522 = vpop.permute.xlu0 %2521
    %v2524 = vsel %vm362, %v2520, 0
    %v2527 = vsel %vm362, %v2522, 0
    %2529 = vmatprep.subr.bf16.mxu0 0
    %2530 = vmatpush1.bf16.xpose.msra.mxu0 0
    %2531 = vmatprep.subr.bf16.mxu0 0
    %2532 = vmatpush1.bf16.xpose.msra.mxu0 0
    %2533 = vmatprep.subr.bf16.mxu0 0
    %2534 = vmatpush1.bf16.xpose.msra.mxu0 0
    %2535 = vmatprep.subr.bf16.mxu0 0
    %2536 = vmatpush1.bf16.xpose.msra.mxu0 0
    %2537 = vmatprep.subr.bf16.mxu0 0
    %2538 = vmatpush1.bf16.xpose.msra.mxu0 0
    %2539 = vmatprep.subr.bf16.mxu0 0
    %2540 = vmatpush1.bf16.xpose.msra.mxu0 0
    %2541 = vmatprep.subr.bf16.mxu0 0
    %2542 = vmatpush1.bf16.xpose.msra.mxu0 0
    %2543 = vmatprep.subr.bf16.mxu0 0
    %2544 = vmatpush1.bf16.xpose.msra.mxu0 %v2527
    %2545 = vmatprep.subr.bf16.mxu0 0
    %2546 = vmatpush2.bf16.xpose.msra.mxu0 0
    %2547 = vmatprep.subr.bf16.mxu0 0
    %2548 = vmatpush2.bf16.xpose.msra.mxu0 0
    %2549 = vmatprep.subr.bf16.mxu0 0
    %2550 = vmatpush2.bf16.xpose.msra.mxu0 0
    %2551 = vmatprep.subr.bf16.mxu0 0
    %2552 = vmatpush2.bf16.xpose.msra.mxu0 0
    %2553 = vmatprep.subr.bf16.mxu0 0
    %2554 = vmatpush2.bf16.xpose.msra.mxu0 0
    %2555 = vmatprep.subr.bf16.mxu0 0
    %2556 = vmatpush2.bf16.xpose.msra.mxu0 0
    %2557 = vmatprep.subr.bf16.mxu0 0
    %2558 = vmatpush2.bf16.xpose.msra.mxu0 0
    %2559 = vmatprep.subr.bf16.mxu0 0
    %2560 = vmatpush2.bf16.xpose.msra.mxu0 0
    %2561 = vmatprep.mubr.bf16.mxu0 0
    %2562 = vmatmul.mubr.bf16.gmra.mxu0 %v2524
    %v2563 = vpop.f32.mrf.mxu0
    %v2564 = vadd.f32 %v46, %v2563
    %v2565 = vpop.f32.mrf.mxu0
    %v2566 = vpop.f32.mrf.mxu0
    %v2567 = vpop.f32.mrf.mxu0
    %2568 = vdwg.mxu0
    %v2569 = vsel %vm362, %v2514, -inf
    %2570 = vmax.xlane.f32.xlu0 %v2569
    %v2571 = vpop.xlane.xlu0 %2570
    %v2572 = vsel %vm362, %v2564, -inf
    %2573 = vmax.xlane.f32.xlu0 %v2572
    %v2574 = vpop.xlane.xlu0 %2573
    %v2575 = vsub.f32 %v2514, %v2571
    %v2576 = vsub.f32 %v2564, %v2574
    %v2577 = vmul.f32 %v2575, 1.442695
    %v2578 = vpow.pop %v2577
    %v2579 = vmul.f32 %v2576, 1.442695
    %v2580 = vpow.pop %v2579
    %v2581 = vsel %vm362, %v2578, 0.0
    %2582 = vadd.xlane.f32.xlu0 %v2581
    %v2583 = vpop.xlane.xlu0 %2582
    %v2584 = vsel %vm362, %v2580, 0.0
    %2585 = vadd.xlane.f32.xlu0 %v2584
    %v2586 = vpop.xlane.xlu0 %2585
    %v2587 = vrcp.pop %v2583
    %v2588 = vrcp.pop %v2586
    %v2589 = vmul.f32 %v2578, %v2587
    %v2590 = vmul.f32 %v2580, %v2588
    %v2591 = vpack.c.bf16 %v2589, %v2589
    %v2592 = vpack.c.bf16 %v2590, %v2590
    %2593 = vrot.lane.b32.xlu0 %v1811, 40
    %v2594 = vpop.permute.xlu0 %2593
    %v2596 = vsel %vm362, %v2591, 0
    %v2599 = vsel %vm487, %v2594, 0
    %2601 = vmatprep.subr.bf16.mxu0 0
    %2602 = vmatpush1.bf16.msra.mxu0 0
    %2603 = vmatprep.subr.bf16.mxu0 0
    %2604 = vmatpush1.bf16.msra.mxu0 0
    %2605 = vmatprep.subr.bf16.mxu0 0
    %2606 = vmatpush1.bf16.msra.mxu0 0
    %2607 = vmatprep.subr.bf16.mxu0 0
    %2608 = vmatpush1.bf16.msra.mxu0 0
    %2609 = vmatprep.subr.bf16.mxu0 0
    %2610 = vmatpush1.bf16.msra.mxu0 0
    %2611 = vmatprep.subr.bf16.mxu0 0
    %2612 = vmatpush1.bf16.msra.mxu0 0
    %2613 = vmatprep.subr.bf16.mxu0 0
    %2614 = vmatpush1.bf16.msra.mxu0 0
    %2615 = vmatprep.subr.bf16.mxu0 0
    %2616 = vmatpush1.bf16.msra.mxu0 %v2599
    %2617 = vmatprep.subr.bf16.mxu0 0
    %2618 = vmatpush2.bf16.msra.mxu0 0
    %2619 = vmatprep.subr.bf16.mxu0 0
    %2620 = vmatpush2.bf16.msra.mxu0 0
    %2621 = vmatprep.subr.bf16.mxu0 0
    %2622 = vmatpush2.bf16.msra.mxu0 0
    %2623 = vmatprep.subr.bf16.mxu0 0
    %2624 = vmatpush2.bf16.msra.mxu0 0
    %2625 = vmatprep.subr.bf16.mxu0 0
    %2626 = vmatpush2.bf16.msra.mxu0 0
    %2627 = vmatprep.subr.bf16.mxu0 0
    %2628 = vmatpush2.bf16.msra.mxu0 0
    %2629 = vmatprep.subr.bf16.mxu0 0
    %2630 = vmatpush2.bf16.msra.mxu0 0
    %2631 = vmatprep.subr.bf16.mxu0 0
    %2632 = vmatpush2.bf16.msra.mxu0 0
    %2633 = vmatprep.mubr.bf16.mxu0 0
    %2634 = vmatmul.mubr.bf16.gmra.mxu0 %v2596
    %v2635 = vpop.f32.mrf.mxu0
    %v2636 = vadd.f32 0.0, %v2635
    %v2637 = vpop.f32.mrf.mxu0
    %v2638 = vpop.f32.mrf.mxu0
    %v2639 = vpop.f32.mrf.mxu0
    %2640 = vdwg.mxu0
    %2641 = vrot.lane.b32.xlu0 %v1860, 40
    %v2642 = vpop.permute.xlu0 %2641
    %v2644 = vsel %vm362, %v2592, 0
    %v2647 = vsel %vm487, %v2642, 0
    %2649 = vmatprep.subr.bf16.mxu0 0
    %2650 = vmatpush1.bf16.msra.mxu0 0
    %2651 = vmatprep.subr.bf16.mxu0 0
    %2652 = vmatpush1.bf16.msra.mxu0 0
    %2653 = vmatprep.subr.bf16.mxu0 0
    %2654 = vmatpush1.bf16.msra.mxu0 0
    %2655 = vmatprep.subr.bf16.mxu0 0
    %2656 = vmatpush1.bf16.msra.mxu0 0
    %2657 = vmatprep.subr.bf16.mxu0 0
    %2658 = vmatpush1.bf16.msra.mxu0 0
    %2659 = vmatprep.subr.bf16.mxu0 0
    %2660 = vmatpush1.bf16.msra.mxu0 0
    %2661 = vmatprep.subr.bf16.mxu0 0
    %2662 = vmatpush1.bf16.msra.mxu0 0
    %2663 = vmatprep.subr.bf16.mxu0 0
    %2664 = vmatpush1.bf16.msra.mxu0 %v2647
    %2665 = vmatprep.subr.bf16.mxu0 0
    %2666 = vmatpush2.bf16.msra.mxu0 0
    %2667 = vmatprep.subr.bf16.mxu0 0
    %2668 = vmatpush2.bf16.msra.mxu0 0
    %2669 = vmatprep.subr.bf16.mxu0 0
    %2670 = vmatpush2.bf16.msra.mxu0 0
    %2671 = vmatprep.subr.bf16.mxu0 0
    %2672 = vmatpush2.bf16.msra.mxu0 0
    %2673 = vmatprep.subr.bf16.mxu0 0
    %2674 = vmatpush2.bf16.msra.mxu0 0
    %2675 = vmatprep.subr.bf16.mxu0 0
    %2676 = vmatpush2.bf16.msra.mxu0 0
    %2677 = vmatprep.subr.bf16.mxu0 0
    %2678 = vmatpush2.bf16.msra.mxu0 0
    %2679 = vmatprep.subr.bf16.mxu0 0
    %2680 = vmatpush2.bf16.msra.mxu0 0
    %2681 = vmatprep.mubr.bf16.mxu0 0
    %2682 = vmatmul.mubr.bf16.gmra.mxu0 %v2644
    %v2683 = vpop.f32.mrf.mxu0
    %v2684 = vadd.f32 0.0, %v2683
    %v2685 = vpop.f32.mrf.mxu0
    %v2686 = vpop.f32.mrf.mxu0
    %v2687 = vpop.f32.mrf.mxu0
    %2688 = vdwg.mxu0
    %2691 = vrot.lane.b32.xlu0 %v2196, 8
    %v2692 = vpop.permute.xlu0 %2691
    %2693 = vrot.lane.b32.xlu0 %v2244, 8
    %v2694 = vpop.permute.xlu0 %2693
    %2699 = vrot.lane.b32.xlu0 %v2416, 16
    %v2700 = vpop.permute.xlu0 %2699
    %2701 = vrot.lane.b32.xlu0 %v2464, 16
    %v2702 = vpop.permute.xlu0 %2701
    %2707 = vrot.lane.b32.xlu0 %v2636, 24
    %v2708 = vpop.permute.xlu0 %2707
    %2709 = vrot.lane.b32.xlu0 %v2684, 24
    %v2710 = vpop.permute.xlu0 %2709
    %v2713 = vsel %vm362, %v1976, %v2692
    %v2714 = vsel %vm362, %v2024, %v2694
    %v2715 = vsel %vm164, %v2713, %v2700
    %v2716 = vsel %vm164, %v2714, %v2702
    %v2717 = vsel %vm1267, %v2715, %v2708
    %v2718 = vsel %vm1267, %v2716, %v2710
    %v2719 = vpack.c.bf16 %v2718, %v2717
    %v2720 = vld [vmem:[#allocation2 + $0xb8] sm:$0xf]
    %v2721 = vld [vmem:[#allocation2 + $0xbc] sm:$0xf]
    %v2722 = vld [vmem:[#allocation2 + $0xc0] sm:$0xf]
    %v2723 = vld [vmem:[#allocation2 + $0xc4] sm:$0xf]
    %v2724 = vld [vmem:[%s1 + $0x14] sm:$0x1]
    %v2725 = vlaneseq
    %v2726 = vshrl.u32 %v2725, 7
    %v2727 = vsub.s32 0, %v2726
    %v2728 = vrot.slane %v2724, %v2727
    %v2733 = vunpack.c.l.b16 %v2720
    %v2734 = vunpack.c.l.b16 %v2721
    %v2735 = vunpack.c.l.b16 %v2722
    %v2736 = vunpack.c.l.b16 %v2723
    %v2737 = vpack.c.b16 %v2734, %v2733
    %v2738 = vpack.c.b16 %v2736, %v2735
    %v2742 = vsel %vm223, %v2719, 0
    %2744 = vmatprep.subr.bf16.mxu0 0
    %2745 = vmatpush1.bf16.msra.mxu0 0
    %2746 = vmatprep.subr.bf16.mxu0 0
    %2747 = vmatpush1.bf16.msra.mxu0 0
    %2748 = vmatprep.subr.bf16.mxu0 0
    %2749 = vmatpush1.bf16.msra.mxu0 0
    %2750 = vmatprep.subr.bf16.mxu0 0
    %2751 = vmatpush1.bf16.msra.mxu0 0
    %2752 = vmatprep.subr.bf16.mxu0 0
    %2753 = vmatpush1.bf16.msra.mxu0 0
    %2754 = vmatprep.subr.bf16.mxu0 0
    %2755 = vmatpush1.bf16.msra.mxu0 0
    %2756 = vmatprep.subr.bf16.mxu0 0
    %2757 = vmatpush1.bf16.msra.mxu0 %v2738
    %2758 = vmatprep.subr.bf16.mxu0 0
    %2759 = vmatpush1.bf16.msra.mxu0 %v2737
    %2760 = vmatprep.subr.bf16.mxu0 0
    %2761 = vmatpush2.bf16.msra.mxu0 0
    %2762 = vmatprep.subr.bf16.mxu0 0
    %2763 = vmatpush2.bf16.msra.mxu0 0
    %2764 = vmatprep.subr.bf16.mxu0 0
    %2765 = vmatpush2.bf16.msra.mxu0 0
    %2766 = vmatprep.subr.bf16.mxu0 0
    %2767 = vmatpush2.bf16.msra.mxu0 0
    %2768 = vmatprep.subr.bf16.mxu0 0
    %2769 = vmatpush2.bf16.msra.mxu0 0
    %2770 = vmatprep.subr.bf16.mxu0 0
    %2771 = vmatpush2.bf16.msra.mxu0 0
    %2772 = vmatprep.subr.bf16.mxu0 0
    %2773 = vmatpush2.bf16.msra.mxu0 0
    %2774 = vmatprep.subr.bf16.mxu0 0
    %2775 = vmatpush2.bf16.msra.mxu0 0
    %2776 = vmatprep.mubr.bf16.mxu0 0
    %2777 = vmatmul.mubr.bf16.gmra.mxu0 %v2742
    %v2778 = vpop.f32.mrf.mxu0
    %v2779 = vadd.f32 %v2728, %v2778
    %v2780 = vpop.f32.mrf.mxu0
    %v2781 = vpop.f32.mrf.mxu0
    %v2782 = vadd.f32 %v2728, %v2781
    %v2783 = vpop.f32.mrf.mxu0
    %2784 = vdwg.mxu0
    %v2785 = vadd.f32 %v1683, %v2779
    %v2786 = vadd.f32 %v1686, %v2782
    %v2787 = vsel %vm223, %v2785, 0.0
    %2788 = vadd.xlane.f32.xlu0 %v2787
    %v2789 = vpop.xlane.xlu0 %2788
    %v2790 = vsel %vm223, %v2786, 0.0
    %2791 = vadd.xlane.f32.xlu0 %v2790
    %v2792 = vpop.xlane.xlu0 %2791
    %v2793 = vmul.f32 %v2789, %v230
    %v2794 = vmul.f32 %v2792, %v230
    %v2795 = vmul.f32 %v2785, %v2785
    %v2796 = vmul.f32 %v2786, %v2786
    %v2797 = vsel %vm223, %v2795, 0.0
    %2798 = vadd.xlane.f32.xlu0 %v2797
    %v2799 = vpop.xlane.xlu0 %2798
    %v2800 = vsel %vm223, %v2796, 0.0
    %2801 = vadd.xlane.f32.xlu0 %v2800
    %v2802 = vpop.xlane.xlu0 %2801
    %v2803 = vmul.f32 %v2799, %v230
    %v2804 = vmul.f32 %v2802, %v230
    %v2805 = vmul.f32 %v2793, %v2793
    %v2806 = vmul.f32 %v2794, %v2794
    %v2807 = vsub.f32 %v2803, %v2805
    %v2808 = vsub.f32 %v2804, %v2806
    %v2809 = vsub.f32 %v2785, %v2793
    %v2810 = vsub.f32 %v2786, %v2794
    %v2811 = vadd.f32 %v2807, 1e-05
    %v2812 = vadd.f32 %v2808, 1e-05
    %v2813 = vrsqrt.pop %v2811
    %v2814 = vrsqrt.pop %v2812
    %v2815 = vmul.f32 %v2809, %v2813
    %v2816 = vmul.f32 %v2810, %v2814
    %v2817 = vld [vmem:[%s1 + $0xd] sm:$0x1]
    %v2818 = vlaneseq
    %v2819 = vshrl.u32 %v2818, 7
    %v2820 = vsub.s32 0, %v2819
    %v2821 = vrot.slane %v2817, %v2820
    %v2822 = vmul.f32 %v2815, %v2821
    %v2823 = vmul.f32 %v2816, %v2821
    %v2824 = vld [vmem:[%s1 + $0xe] sm:$0x1]
    %v2825 = vlaneseq
    %v2826 = vshrl.u32 %v2825, 7
    %v2827 = vsub.s32 0, %v2826
    %v2828 = vrot.slane %v2824, %v2827
    %v2829 = vadd.f32 %v2822, %v2828
    %v2830 = vadd.f32 %v2823, %v2828
    %v2831 = vpack.c.bf16 %v2830, %v2829
    %v2832 = vld [vmem:[#allocation2 + $0xc8] sm:$0xf]
    %v2833 = vld [vmem:[#allocation2 + $0xcc] sm:$0xf]
    %v2834 = vld [vmem:[#allocation2 + $0xd0] sm:$0xf]
    %v2835 = vld [vmem:[#allocation2 + $0xd4] sm:$0xf]
    %v2836 = vld [vmem:[%s1 + $0x15] sm:$0x1]
    %v2837 = vlaneseq
    %v2838 = vshrl.u32 %v2837, 7
    %v2839 = vsub.s32 0, %v2838
    %v2840 = vrot.slane %v2836, %v2839
    %v2845 = vunpack.c.l.b16 %v2832
    %v2846 = vunpack.c.l.b16 %v2833
    %v2847 = vunpack.c.l.b16 %v2834
    %v2848 = vunpack.c.l.b16 %v2835
    %v2849 = vpack.c.b16 %v2846, %v2845
    %v2850 = vpack.c.b16 %v2848, %v2847
    %v2854 = vsel %vm223, %v2831, 0
    %2856 = vmatprep.subr.bf16.mxu0 0
    %2857 = vmatpush1.bf16.msra.mxu0 0
    %2858 = vmatprep.subr.bf16.mxu0 0
    %2859 = vmatpush1.bf16.msra.mxu0 0
    %2860 = vmatprep.subr.bf16.mxu0 0
    %2861 = vmatpush1.bf16.msra.mxu0 0
    %2862 = vmatprep.subr.bf16.mxu0 0
    %2863 = vmatpush1.bf16.msra.mxu0 0
    %2864 = vmatprep.subr.bf16.mxu0 0
    %2865 = vmatpush1.bf16.msra.mxu0 0
    %2866 = vmatprep.subr.bf16.mxu0 0
    %2867 = vmatpush1.bf16.msra.mxu0 0
    %2868 = vmatprep.subr.bf16.mxu0 0
    %2869 = vmatpush1.bf16.msra.mxu0 %v2850
    %2870 = vmatprep.subr.bf16.mxu0 0
    %2871 = vmatpush1.bf16.msra.mxu0 %v2849
    %2872 = vmatprep.subr.bf16.mxu0 0
    %2873 = vmatpush2.bf16.msra.mxu0 0
    %2874 = vmatprep.subr.bf16.mxu0 0
    %2875 = vmatpush2.bf16.msra.mxu0 0
    %2876 = vmatprep.subr.bf16.mxu0 0
    %2877 = vmatpush2.bf16.msra.mxu0 0
    %2878 = vmatprep.subr.bf16.mxu0 0
    %2879 = vmatpush2.bf16.msra.mxu0 0
    %2880 = vmatprep.subr.bf16.mxu0 0
    %2881 = vmatpush2.bf16.msra.mxu0 0
    %2882 = vmatprep.subr.bf16.mxu0 0
    %2883 = vmatpush2.bf16.msra.mxu0 0
    %2884 = vmatprep.subr.bf16.mxu0 0
    %2885 = vmatpush2.bf16.msra.mxu0 0
    %2886 = vmatprep.subr.bf16.mxu0 0
    %2887 = vmatpush2.bf16.msra.mxu0 0
    %2888 = vmatprep.mubr.bf16.mxu0 0
    %2889 = vmatmul.mubr.bf16.gmra.mxu0 %v2854
    %v2890 = vpop.f32.mrf.mxu0
    %v2891 = vadd.f32 %v2840, %v2890
    %v2892 = vpop.f32.mrf.mxu0
    %v2893 = vpop.f32.mrf.mxu0
    %v2894 = vadd.f32 %v2840, %v2893
    %v2895 = vpop.f32.mrf.mxu0
    %2896 = vdwg.mxu0
    %v2897 = vpack.c.bf16 %v1593, %v1592
    %v2898 = vld [vmem:[#allocation2 + $0xd8] sm:$0xf]
    %v2899 = vld [vmem:[#allocation2 + $0xdc] sm:$0xf]
    %v2900 = vld [vmem:[#allocation2 + $0xe0] sm:$0xf]
    %v2901 = vld [vmem:[#allocation2 + $0xe4] sm:$0xf]
    %v2902 = vld [vmem:[%s1 + $0x16] sm:$0x1]
    %v2903 = vlaneseq
    %v2904 = vshrl.u32 %v2903, 7
    %v2905 = vsub.s32 0, %v2904
    %v2906 = vrot.slane %v2902, %v2905
    %v2911 = vunpack.c.l.b16 %v2898
    %v2912 = vunpack.c.l.b16 %v2899
    %v2913 = vunpack.c.l.b16 %v2900
    %v2914 = vunpack.c.l.b16 %v2901
    %v2915 = vpack.c.b16 %v2912, %v2911
    %v2916 = vpack.c.b16 %v2914, %v2913
    %v2920 = vsel %vm223, %v2897, 0
    %2922 = vmatprep.subr.bf16.mxu0 0
    %2923 = vmatpush1.bf16.msra.mxu0 0
    %2924 = vmatprep.subr.bf16.mxu0 0
    %2925 = vmatpush1.bf16.msra.mxu0 0
    %2926 = vmatprep.subr.bf16.mxu0 0
    %2927 = vmatpush1.bf16.msra.mxu0 0
    %2928 = vmatprep.subr.bf16.mxu0 0
    %2929 = vmatpush1.bf16.msra.mxu0 0
    %2930 = vmatprep.subr.bf16.mxu0 0
    %2931 = vmatpush1.bf16.msra.mxu0 0
    %2932 = vmatprep.subr.bf16.mxu0 0
    %2933 = vmatpush1.bf16.msra.mxu0 0
    %2934 = vmatprep.subr.bf16.mxu0 0
    %2935 = vmatpush1.bf16.msra.mxu0 %v2916
    %2936 = vmatprep.subr.bf16.mxu0 0
    %2937 = vmatpush1.bf16.msra.mxu0 %v2915
    %2938 = vmatprep.subr.bf16.mxu0 0
    %2939 = vmatpush2.bf16.msra.mxu0 0
    %2940 = vmatprep.subr.bf16.mxu0 0
    %2941 = vmatpush2.bf16.msra.mxu0 0
    %2942 = vmatprep.subr.bf16.mxu0 0
    %2943 = vmatpush2.bf16.msra.mxu0 0
    %2944 = vmatprep.subr.bf16.mxu0 0
    %2945 = vmatpush2.bf16.msra.mxu0 0
    %2946 = vmatprep.subr.bf16.mxu0 0
    %2947 = vmatpush2.bf16.msra.mxu0 0
    %2948 = vmatprep.subr.bf16.mxu0 0
    %2949 = vmatpush2.bf16.msra.mxu0 0
    %2950 = vmatprep.subr.bf16.mxu0 0
    %2951 = vmatpush2.bf16.msra.mxu0 0
    %2952 = vmatprep.subr.bf16.mxu0 0
    %2953 = vmatpush2.bf16.msra.mxu0 0
    %2954 = vmatprep.mubr.bf16.mxu0 0
    %2955 = vmatmul.mubr.bf16.gmra.mxu0 %v2920
    %v2956 = vpop.f32.mrf.mxu0
    %v2957 = vadd.f32 %v2906, %v2956
    %v2958 = vpop.f32.mrf.mxu0
    %v2959 = vpop.f32.mrf.mxu0
    %v2960 = vadd.f32 %v2906, %v2959
    %v2961 = vpop.f32.mrf.mxu0
    %2962 = vdwg.mxu0
    %v2963 = vmul.f32 %v2891, 0.35355338
    %v2964 = vmul.f32 %v2894, 0.35355338
    %v2965 = vpack.c.bf16 %v2964, %v2963
    %v2966 = vpack.c.bf16 %v2960, %v2957
    %v2968 = vunpack.c.l.b16 %v2965
    %v2969 = vunpack.c.h.b16 %v2965
    %v2970 = vpack.c.b16 %v2968, %v2968
    %v2971 = vpack.c.b16 %v2969, %v2969
    %v2973 = vunpack.c.l.b16 %v2966
    %v2974 = vunpack.c.h.b16 %v2966
    %v2975 = vpack.c.b16 %v2973, %v2973
    %v2976 = vpack.c.b16 %v2974, %v2974
    %v2978 = vsel %vm362, %v2970, 0
    %v2981 = vsel %vm362, %v2975, 0
    %2983 = vmatprep.subr.bf16.mxu0 0
    %2984 = vmatpush1.bf16.xpose.msra.mxu0 0
    %2985 = vmatprep.subr.bf16.mxu0 0
    %2986 = vmatpush1.bf16.xpose.msra.mxu0 0
    %2987 = vmatprep.subr.bf16.mxu0 0
    %2988 = vmatpush1.bf16.xpose.msra.mxu0 0
    %2989 = vmatprep.subr.bf16.mxu0 0
    %2990 = vmatpush1.bf16.xpose.msra.mxu0 0
    %2991 = vmatprep.subr.bf16.mxu0 0
    %2992 = vmatpush1.bf16.xpose.msra.mxu0 0
    %2993 = vmatprep.subr.bf16.mxu0 0
    %2994 = vmatpush1.bf16.xpose.msra.mxu0 0
    %2995 = vmatprep.subr.bf16.mxu0 0
    %2996 = vmatpush1.bf16.xpose.msra.mxu0 0
    %2997 = vmatprep.subr.bf16.mxu0 0
    %2998 = vmatpush1.bf16.xpose.msra.mxu0 %v2981
    %2999 = vmatprep.subr.bf16.mxu0 0
    %3000 = vmatpush2.bf16.xpose.msra.mxu0 0
    %3001 = vmatprep.subr.bf16.mxu0 0
    %3002 = vmatpush2.bf16.xpose.msra.mxu0 0
    %3003 = vmatprep.subr.bf16.mxu0 0
    %3004 = vmatpush2.bf16.xpose.msra.mxu0 0
    %3005 = vmatprep.subr.bf16.mxu0 0
    %3006 = vmatpush2.bf16.xpose.msra.mxu0 0
    %3007 = vmatprep.subr.bf16.mxu0 0
    %3008 = vmatpush2.bf16.xpose.msra.mxu0 0
    %3009 = vmatprep.subr.bf16.mxu0 0
    %3010 = vmatpush2.bf16.xpose.msra.mxu0 0
    %3011 = vmatprep.subr.bf16.mxu0 0
    %3012 = vmatpush2.bf16.xpose.msra.mxu0 0
    %3013 = vmatprep.subr.bf16.mxu0 0
    %3014 = vmatpush2.bf16.xpose.msra.mxu0 0
    %3015 = vmatprep.mubr.bf16.mxu0 0
    %3016 = vmatmul.mubr.bf16.gmra.mxu0 %v2978
    %v3017 = vpop.f32.mrf.mxu0
    %v3018 = vadd.f32 %v340, %v3017
    %v3019 = vpop.f32.mrf.mxu0
    %v3020 = vpop.f32.mrf.mxu0
    %v3021 = vpop.f32.mrf.mxu0
    %3022 = vdwg.mxu0
    %v3024 = vsel %vm362, %v2971, 0
    %v3027 = vsel %vm362, %v2976, 0
    %3029 = vmatprep.subr.bf16.mxu0 0
    %3030 = vmatpush1.bf16.xpose.msra.mxu0 0
    %3031 = vmatprep.subr.bf16.mxu0 0
    %3032 = vmatpush1.bf16.xpose.msra.mxu0 0
    %3033 = vmatprep.subr.bf16.mxu0 0
    %3034 = vmatpush1.bf16.xpose.msra.mxu0 0
    %3035 = vmatprep.subr.bf16.mxu0 0
    %3036 = vmatpush1.bf16.xpose.msra.mxu0 0
    %3037 = vmatprep.subr.bf16.mxu0 0
    %3038 = vmatpush1.bf16.xpose.msra.mxu0 0
    %3039 = vmatprep.subr.bf16.mxu0 0
    %3040 = vmatpush1.bf16.xpose.msra.mxu0 0
    %3041 = vmatprep.subr.bf16.mxu0 0
    %3042 = vmatpush1.bf16.xpose.msra.mxu0 0
    %3043 = vmatprep.subr.bf16.mxu0 0
    %3044 = vmatpush1.bf16.xpose.msra.mxu0 %v3027
    %3045 = vmatprep.subr.bf16.mxu0 0
    %3046 = vmatpush2.bf16.xpose.msra.mxu0 0
    %3047 = vmatprep.subr.bf16.mxu0 0
    %3048 = vmatpush2.bf16.xpose.msra.mxu0 0
    %3049 = vmatprep.subr.bf16.mxu0 0
    %3050 = vmatpush2.bf16.xpose.msra.mxu0 0
    %3051 = vmatprep.subr.bf16.mxu0 0
    %3052 = vmatpush2.bf16.xpose.msra.mxu0 0
    %3053 = vmatprep.subr.bf16.mxu0 0
    %3054 = vmatpush2.bf16.xpose.msra.mxu0 0
    %3055 = vmatprep.subr.bf16.mxu0 0
    %3056 = vmatpush2.bf16.xpose.msra.mxu0 0
    %3057 = vmatprep.subr.bf16.mxu0 0
    %3058 = vmatpush2.bf16.xpose.msra.mxu0 0
    %3059 = vmatprep.subr.bf16.mxu0 0
    %3060 = vmatpush2.bf16.xpose.msra.mxu0 0
    %3061 = vmatprep.mubr.bf16.mxu0 0
    %3062 = vmatmul.mubr.bf16.gmra.mxu0 %v3024
    %v3063 = vpop.f32.mrf.mxu0
    %v3064 = vadd.f32 %v344, %v3063
    %v3065 = vpop.f32.mrf.mxu0
    %v3066 = vpop.f32.mrf.mxu0
    %v3067 = vpop.f32.mrf.mxu0
    %3068 = vdwg.mxu0
    %v3069 = vsel %vm362, %v3018, -inf
    %3070 = vmax.xlane.f32.xlu0 %v3069
    %v3071 = vpop.xlane.xlu0 %3070
    %v3072 = vsel %vm362, %v3064, -inf
    %3073 = vmax.xlane.f32.xlu0 %v3072
    %v3074 = vpop.xlane.xlu0 %3073
    %v3075 = vsub.f32 %v3018, %v3071
    %v3076 = vsub.f32 %v3064, %v3074
    %v3077 = vmul.f32 %v3075, 1.442695
    %v3078 = vpow.pop %v3077
    %v3079 = vmul.f32 %v3076, 1.442695
    %v3080 = vpow.pop %v3079
    %v3081 = vsel %vm362, %v3078, 0.0
    %3082 = vadd.xlane.f32.xlu0 %v3081
    %v3083 = vpop.xlane.xlu0 %3082
    %v3084 = vsel %vm362, %v3080, 0.0
    %3085 = vadd.xlane.f32.xlu0 %v3084
    %v3086 = vpop.xlane.xlu0 %3085
    %v3087 = vrcp.pop %v3083
    %v3088 = vrcp.pop %v3086
    %v3089 = vmul.f32 %v3078, %v3087
    %v3090 = vmul.f32 %v3080, %v3088
    %v3091 = vpack.c.bf16 %v3089, %v3089
    %v3092 = vpack.c.bf16 %v3090, %v3090
    %3093 = vrot.lane.b32.xlu0 %v2975, 96
    %v3094 = vpop.permute.xlu0 %3093
    %v3096 = vsel %vm362, %v3091, 0
    %v3099 = vsel %vm487, %v3094, 0
    %3101 = vmatprep.subr.bf16.mxu0 0
    %3102 = vmatpush1.bf16.msra.mxu0 0
    %3103 = vmatprep.subr.bf16.mxu0 0
    %3104 = vmatpush1.bf16.msra.mxu0 0
    %3105 = vmatprep.subr.bf16.mxu0 0
    %3106 = vmatpush1.bf16.msra.mxu0 0
    %3107 = vmatprep.subr.bf16.mxu0 0
    %3108 = vmatpush1.bf16.msra.mxu0 0
    %3109 = vmatprep.subr.bf16.mxu0 0
    %3110 = vmatpush1.bf16.msra.mxu0 0
    %3111 = vmatprep.subr.bf16.mxu0 0
    %3112 = vmatpush1.bf16.msra.mxu0 0
    %3113 = vmatprep.subr.bf16.mxu0 0
    %3114 = vmatpush1.bf16.msra.mxu0 0
    %3115 = vmatprep.subr.bf16.mxu0 0
    %3116 = vmatpush1.bf16.msra.mxu0 %v3099
    %3117 = vmatprep.subr.bf16.mxu0 0
    %3118 = vmatpush2.bf16.msra.mxu0 0
    %3119 = vmatprep.subr.bf16.mxu0 0
    %3120 = vmatpush2.bf16.msra.mxu0 0
    %3121 = vmatprep.subr.bf16.mxu0 0
    %3122 = vmatpush2.bf16.msra.mxu0 0
    %3123 = vmatprep.subr.bf16.mxu0 0
    %3124 = vmatpush2.bf16.msra.mxu0 0
    %3125 = vmatprep.subr.bf16.mxu0 0
    %3126 = vmatpush2.bf16.msra.mxu0 0
    %3127 = vmatprep.subr.bf16.mxu0 0
    %3128 = vmatpush2.bf16.msra.mxu0 0
    %3129 = vmatprep.subr.bf16.mxu0 0
    %3130 = vmatpush2.bf16.msra.mxu0 0
    %3131 = vmatprep.subr.bf16.mxu0 0
    %3132 = vmatpush2.bf16.msra.mxu0 0
    %3133 = vmatprep.mubr.bf16.mxu0 0
    %3134 = vmatmul.mubr.bf16.gmra.mxu0 %v3096
    %v3135 = vpop.f32.mrf.mxu0
    %v3136 = vadd.f32 0.0, %v3135
    %v3137 = vpop.f32.mrf.mxu0
    %v3138 = vpop.f32.mrf.mxu0
    %v3139 = vpop.f32.mrf.mxu0
    %3140 = vdwg.mxu0
    %3141 = vrot.lane.b32.xlu0 %v2976, 96
    %v3142 = vpop.permute.xlu0 %3141
    %v3144 = vsel %vm362, %v3092, 0
    %v3147 = vsel %vm487, %v3142, 0
    %3149 = vmatprep.subr.bf16.mxu0 0
    %3150 = vmatpush1.bf16.msra.mxu0 0
    %3151 = vmatprep.subr.bf16.mxu0 0
    %3152 = vmatpush1.bf16.msra.mxu0 0
    %3153 = vmatprep.subr.bf16.mxu0 0
    %3154 = vmatpush1.bf16.msra.mxu0 0
    %3155 = vmatprep.subr.bf16.mxu0 0
    %3156 = vmatpush1.bf16.msra.mxu0 0
    %3157 = vmatprep.subr.bf16.mxu0 0
    %3158 = vmatpush1.bf16.msra.mxu0 0
    %3159 = vmatprep.subr.bf16.mxu0 0
    %3160 = vmatpush1.bf16.msra.mxu0 0
    %3161 = vmatprep.subr.bf16.mxu0 0
    %3162 = vmatpush1.bf16.msra.mxu0 0
    %3163 = vmatprep.subr.bf16.mxu0 0
    %3164 = vmatpush1.bf16.msra.mxu0 %v3147
    %3165 = vmatprep.subr.bf16.mxu0 0
    %3166 = vmatpush2.bf16.msra.mxu0 0
    %3167 = vmatprep.subr.bf16.mxu0 0
    %3168 = vmatpush2.bf16.msra.mxu0 0
    %3169 = vmatprep.subr.bf16.mxu0 0
    %3170 = vmatpush2.bf16.msra.mxu0 0
    %3171 = vmatprep.subr.bf16.mxu0 0
    %3172 = vmatpush2.bf16.msra.mxu0 0
    %3173 = vmatprep.subr.bf16.mxu0 0
    %3174 = vmatpush2.bf16.msra.mxu0 0
    %3175 = vmatprep.subr.bf16.mxu0 0
    %3176 = vmatpush2.bf16.msra.mxu0 0
    %3177 = vmatprep.subr.bf16.mxu0 0
    %3178 = vmatpush2.bf16.msra.mxu0 0
    %3179 = vmatprep.subr.bf16.mxu0 0
    %3180 = vmatpush2.bf16.msra.mxu0 0
    %3181 = vmatprep.mubr.bf16.mxu0 0
    %3182 = vmatmul.mubr.bf16.gmra.mxu0 %v3144
    %v3183 = vpop.f32.mrf.mxu0
    %v3184 = vadd.f32 0.0, %v3183
    %v3185 = vpop.f32.mrf.mxu0
    %v3186 = vpop.f32.mrf.mxu0
    %v3187 = vpop.f32.mrf.mxu0
    %3188 = vdwg.mxu0
    %3189 = vrot.lane.b32.xlu0 %v2970, 120
    %v3190 = vpop.permute.xlu0 %3189
    %3191 = vrot.lane.b32.xlu0 %v2975, 120
    %v3192 = vpop.permute.xlu0 %3191
    %v3194 = vsel %vm362, %v3190, 0
    %v3197 = vsel %vm362, %v3192, 0
    %3199 = vmatprep.subr.bf16.mxu0 0
    %3200 = vmatpush1.bf16.xpose.msra.mxu0 0
    %3201 = vmatprep.subr.bf16.mxu0 0
    %3202 = vmatpush1.bf16.xpose.msra.mxu0 0
    %3203 = vmatprep.subr.bf16.mxu0 0
    %3204 = vmatpush1.bf16.xpose.msra.mxu0 0
    %3205 = vmatprep.subr.bf16.mxu0 0
    %3206 = vmatpush1.bf16.xpose.msra.mxu0 0
    %3207 = vmatprep.subr.bf16.mxu0 0
    %3208 = vmatpush1.bf16.xpose.msra.mxu0 0
    %3209 = vmatprep.subr.bf16.mxu0 0
    %3210 = vmatpush1.bf16.xpose.msra.mxu0 0
    %3211 = vmatprep.subr.bf16.mxu0 0
    %3212 = vmatpush1.bf16.xpose.msra.mxu0 0
    %3213 = vmatprep.subr.bf16.mxu0 0
    %3214 = vmatpush1.bf16.xpose.msra.mxu0 %v3197
    %3215 = vmatprep.subr.bf16.mxu0 0
    %3216 = vmatpush2.bf16.xpose.msra.mxu0 0
    %3217 = vmatprep.subr.bf16.mxu0 0
    %3218 = vmatpush2.bf16.xpose.msra.mxu0 0
    %3219 = vmatprep.subr.bf16.mxu0 0
    %3220 = vmatpush2.bf16.xpose.msra.mxu0 0
    %3221 = vmatprep.subr.bf16.mxu0 0
    %3222 = vmatpush2.bf16.xpose.msra.mxu0 0
    %3223 = vmatprep.subr.bf16.mxu0 0
    %3224 = vmatpush2.bf16.xpose.msra.mxu0 0
    %3225 = vmatprep.subr.bf16.mxu0 0
    %3226 = vmatpush2.bf16.xpose.msra.mxu0 0
    %3227 = vmatprep.subr.bf16.mxu0 0
    %3228 = vmatpush2.bf16.xpose.msra.mxu0 0
    %3229 = vmatprep.subr.bf16.mxu0 0
    %3230 = vmatpush2.bf16.xpose.msra.mxu0 0
    %3231 = vmatprep.mubr.bf16.mxu0 0
    %3232 = vmatmul.mubr.bf16.gmra.mxu0 %v3194
    %v3233 = vpop.f32.mrf.mxu0
    %v3234 = vadd.f32 %v340, %v3233
    %v3235 = vpop.f32.mrf.mxu0
    %v3236 = vpop.f32.mrf.mxu0
    %v3237 = vpop.f32.mrf.mxu0
    %3238 = vdwg.mxu0
    %3239 = vrot.lane.b32.xlu0 %v2971, 120
    %v3240 = vpop.permute.xlu0 %3239
    %3241 = vrot.lane.b32.xlu0 %v2976, 120
    %v3242 = vpop.permute.xlu0 %3241
    %v3244 = vsel %vm362, %v3240, 0
    %v3247 = vsel %vm362, %v3242, 0
    %3249 = vmatprep.subr.bf16.mxu0 0
    %3250 = vmatpush1.bf16.xpose.msra.mxu0 0
    %3251 = vmatprep.subr.bf16.mxu0 0
    %3252 = vmatpush1.bf16.xpose.msra.mxu0 0
    %3253 = vmatprep.subr.bf16.mxu0 0
    %3254 = vmatpush1.bf16.xpose.msra.mxu0 0
    %3255 = vmatprep.subr.bf16.mxu0 0
    %3256 = vmatpush1.bf16.xpose.msra.mxu0 0
    %3257 = vmatprep.subr.bf16.mxu0 0
    %3258 = vmatpush1.bf16.xpose.msra.mxu0 0
    %3259 = vmatprep.subr.bf16.mxu0 0
    %3260 = vmatpush1.bf16.xpose.msra.mxu0 0
    %3261 = vmatprep.subr.bf16.mxu0 0
    %3262 = vmatpush1.bf16.xpose.msra.mxu0 0
    %3263 = vmatprep.subr.bf16.mxu0 0
    %3264 = vmatpush1.bf16.xpose.msra.mxu0 %v3247
    %3265 = vmatprep.subr.bf16.mxu0 0
    %3266 = vmatpush2.bf16.xpose.msra.mxu0 0
    %3267 = vmatprep.subr.bf16.mxu0 0
    %3268 = vmatpush2.bf16.xpose.msra.mxu0 0
    %3269 = vmatprep.subr.bf16.mxu0 0
    %3270 = vmatpush2.bf16.xpose.msra.mxu0 0
    %3271 = vmatprep.subr.bf16.mxu0 0
    %3272 = vmatpush2.bf16.xpose.msra.mxu0 0
    %3273 = vmatprep.subr.bf16.mxu0 0
    %3274 = vmatpush2.bf16.xpose.msra.mxu0 0
    %3275 = vmatprep.subr.bf16.mxu0 0
    %3276 = vmatpush2.bf16.xpose.msra.mxu0 0
    %3277 = vmatprep.subr.bf16.mxu0 0
    %3278 = vmatpush2.bf16.xpose.msra.mxu0 0
    %3279 = vmatprep.subr.bf16.mxu0 0
    %3280 = vmatpush2.bf16.xpose.msra.mxu0 0
    %3281 = vmatprep.mubr.bf16.mxu0 0
    %3282 = vmatmul.mubr.bf16.gmra.mxu0 %v3244
    %v3283 = vpop.f32.mrf.mxu0
    %v3284 = vadd.f32 %v344, %v3283
    %v3285 = vpop.f32.mrf.mxu0
    %v3286 = vpop.f32.mrf.mxu0
    %v3287 = vpop.f32.mrf.mxu0
    %3288 = vdwg.mxu0
    %v3289 = vsel %vm362, %v3234, -inf
    %3290 = vmax.xlane.f32.xlu0 %v3289
    %v3291 = vpop.xlane.xlu0 %3290
    %v3292 = vsel %vm362, %v3284, -inf
    %3293 = vmax.xlane.f32.xlu0 %v3292
    %v3294 = vpop.xlane.xlu0 %3293
    %v3295 = vsub.f32 %v3234, %v3291
    %v3296 = vsub.f32 %v3284, %v3294
    %v3297 = vmul.f32 %v3295, 1.442695
    %v3298 = vpow.pop %v3297
    %v3299 = vmul.f32 %v3296, 1.442695
    %v3300 = vpow.pop %v3299
    %v3301 = vsel %vm362, %v3298, 0.0
    %3302 = vadd.xlane.f32.xlu0 %v3301
    %v3303 = vpop.xlane.xlu0 %3302
    %v3304 = vsel %vm362, %v3300, 0.0
    %3305 = vadd.xlane.f32.xlu0 %v3304
    %v3306 = vpop.xlane.xlu0 %3305
    %v3307 = vrcp.pop %v3303
    %v3308 = vrcp.pop %v3306
    %v3309 = vmul.f32 %v3298, %v3307
    %v3310 = vmul.f32 %v3300, %v3308
    %v3311 = vpack.c.bf16 %v3309, %v3309
    %v3312 = vpack.c.bf16 %v3310, %v3310
    %3313 = vrot.lane.b32.xlu0 %v2975, 88
    %v3314 = vpop.permute.xlu0 %3313
    %v3316 = vsel %vm362, %v3311, 0
    %v3319 = vsel %vm487, %v3314, 0
    %3321 = vmatprep.subr.bf16.mxu0 0
    %3322 = vmatpush1.bf16.msra.mxu0 0
    %3323 = vmatprep.subr.bf16.mxu0 0
    %3324 = vmatpush1.bf16.msra.mxu0 0
    %3325 = vmatprep.subr.bf16.mxu0 0
    %3326 = vmatpush1.bf16.msra.mxu0 0
    %3327 = vmatprep.subr.bf16.mxu0 0
    %3328 = vmatpush1.bf16.msra.mxu0 0
    %3329 = vmatprep.subr.bf16.mxu0 0
    %3330 = vmatpush1.bf16.msra.mxu0 0
    %3331 = vmatprep.subr.bf16.mxu0 0
    %3332 = vmatpush1.bf16.msra.mxu0 0
    %3333 = vmatprep.subr.bf16.mxu0 0
    %3334 = vmatpush1.bf16.msra.mxu0 0
    %3335 = vmatprep.subr.bf16.mxu0 0
    %3336 = vmatpush1.bf16.msra.mxu0 %v3319
    %3337 = vmatprep.subr.bf16.mxu0 0
    %3338 = vmatpush2.bf16.msra.mxu0 0
    %3339 = vmatprep.subr.bf16.mxu0 0
    %3340 = vmatpush2.bf16.msra.mxu0 0
    %3341 = vmatprep.subr.bf16.mxu0 0
    %3342 = vmatpush2.bf16.msra.mxu0 0
    %3343 = vmatprep.subr.bf16.mxu0 0
    %3344 = vmatpush2.bf16.msra.mxu0 0
    %3345 = vmatprep.subr.bf16.mxu0 0
    %3346 = vmatpush2.bf16.msra.mxu0 0
    %3347 = vmatprep.subr.bf16.mxu0 0
    %3348 = vmatpush2.bf16.msra.mxu0 0
    %3349 = vmatprep.subr.bf16.mxu0 0
    %3350 = vmatpush2.bf16.msra.mxu0 0
    %3351 = vmatprep.subr.bf16.mxu0 0
    %3352 = vmatpush2.bf16.msra.mxu0 0
    %3353 = vmatprep.mubr.bf16.mxu0 0
    %3354 = vmatmul.mubr.bf16.gmra.mxu0 %v3316
    %v3355 = vpop.f32.mrf.mxu0
    %v3356 = vadd.f32 0.0, %v3355
    %v3357 = vpop.f32.mrf.mxu0
    %v3358 = vpop.f32.mrf.mxu0
    %v3359 = vpop.f32.mrf.mxu0
    %3360 = vdwg.mxu0
    %3361 = vrot.lane.b32.xlu0 %v2976, 88
    %v3362 = vpop.permute.xlu0 %3361
    %v3364 = vsel %vm362, %v3312, 0
    %v3367 = vsel %vm487, %v3362, 0
    %3369 = vmatprep.subr.bf16.mxu0 0
    %3370 = vmatpush1.bf16.msra.mxu0 0
    %3371 = vmatprep.subr.bf16.mxu0 0
    %3372 = vmatpush1.bf16.msra.mxu0 0
    %3373 = vmatprep.subr.bf16.mxu0 0
    %3374 = vmatpush1.bf16.msra.mxu0 0
    %3375 = vmatprep.subr.bf16.mxu0 0
    %3376 = vmatpush1.bf16.msra.mxu0 0
    %3377 = vmatprep.subr.bf16.mxu0 0
    %3378 = vmatpush1.bf16.msra.mxu0 0
    %3379 = vmatprep.subr.bf16.mxu0 0
    %3380 = vmatpush1.bf16.msra.mxu0 0
    %3381 = vmatprep.subr.bf16.mxu0 0
    %3382 = vmatpush1.bf16.msra.mxu0 0
    %3383 = vmatprep.subr.bf16.mxu0 0
    %3384 = vmatpush1.bf16.msra.mxu0 %v3367
    %3385 = vmatprep.subr.bf16.mxu0 0
    %3386 = vmatpush2.bf16.msra.mxu0 0
    %3387 = vmatprep.subr.bf16.mxu0 0
    %3388 = vmatpush2.bf16.msra.mxu0 0
    %3389 = vmatprep.subr.bf16.mxu0 0
    %3390 = vmatpush2.bf16.msra.mxu0 0
    %3391 = vmatprep.subr.bf16.mxu0 0
    %3392 = vmatpush2.bf16.msra.mxu0 0
    %3393 = vmatprep.subr.bf16.mxu0 0
    %3394 = vmatpush2.bf16.msra.mxu0 0
    %3395 = vmatprep.subr.bf16.mxu0 0
    %3396 = vmatpush2.bf16.msra.mxu0 0
    %3397 = vmatprep.subr.bf16.mxu0 0
    %3398 = vmatpush2.bf16.msra.mxu0 0
    %3399 = vmatprep.subr.bf16.mxu0 0
    %3400 = vmatpush2.bf16.msra.mxu0 0
    %3401 = vmatprep.mubr.bf16.mxu0 0
    %3402 = vmatmul.mubr.bf16.gmra.mxu0 %v3364
    %v3403 = vpop.f32.mrf.mxu0
    %v3404 = vadd.f32 0.0, %v3403
    %v3405 = vpop.f32.mrf.mxu0
    %v3406 = vpop.f32.mrf.mxu0
    %v3407 = vpop.f32.mrf.mxu0
    %3408 = vdwg.mxu0
    %3409 = vrot.lane.b32.xlu0 %v2970, 112
    %v3410 = vpop.permute.xlu0 %3409
    %3411 = vrot.lane.b32.xlu0 %v2975, 112
    %v3412 = vpop.permute.xlu0 %3411
    %v3414 = vsel %vm362, %v3410, 0
    %v3417 = vsel %vm362, %v3412, 0
    %3419 = vmatprep.subr.bf16.mxu0 0
    %3420 = vmatpush1.bf16.xpose.msra.mxu0 0
    %3421 = vmatprep.subr.bf16.mxu0 0
    %3422 = vmatpush1.bf16.xpose.msra.mxu0 0
    %3423 = vmatprep.subr.bf16.mxu0 0
    %3424 = vmatpush1.bf16.xpose.msra.mxu0 0
    %3425 = vmatprep.subr.bf16.mxu0 0
    %3426 = vmatpush1.bf16.xpose.msra.mxu0 0
    %3427 = vmatprep.subr.bf16.mxu0 0
    %3428 = vmatpush1.bf16.xpose.msra.mxu0 0
    %3429 = vmatprep.subr.bf16.mxu0 0
    %3430 = vmatpush1.bf16.xpose.msra.mxu0 0
    %3431 = vmatprep.subr.bf16.mxu0 0
    %3432 = vmatpush1.bf16.xpose.msra.mxu0 0
    %3433 = vmatprep.subr.bf16.mxu0 0
    %3434 = vmatpush1.bf16.xpose.msra.mxu0 %v3417
    %3435 = vmatprep.subr.bf16.mxu0 0
    %3436 = vmatpush2.bf16.xpose.msra.mxu0 0
    %3437 = vmatprep.subr.bf16.mxu0 0
    %3438 = vmatpush2.bf16.xpose.msra.mxu0 0
    %3439 = vmatprep.subr.bf16.mxu0 0
    %3440 = vmatpush2.bf16.xpose.msra.mxu0 0
    %3441 = vmatprep.subr.bf16.mxu0 0
    %3442 = vmatpush2.bf16.xpose.msra.mxu0 0
    %3443 = vmatprep.subr.bf16.mxu0 0
    %3444 = vmatpush2.bf16.xpose.msra.mxu0 0
    %3445 = vmatprep.subr.bf16.mxu0 0
    %3446 = vmatpush2.bf16.xpose.msra.mxu0 0
    %3447 = vmatprep.subr.bf16.mxu0 0
    %3448 = vmatpush2.bf16.xpose.msra.mxu0 0
    %3449 = vmatprep.subr.bf16.mxu0 0
    %3450 = vmatpush2.bf16.xpose.msra.mxu0 0
    %3451 = vmatprep.mubr.bf16.mxu0 0
    %3452 = vmatmul.mubr.bf16.gmra.mxu0 %v3414
    %v3453 = vpop.f32.mrf.mxu0
    %v3454 = vadd.f32 %v340, %v3453
    %v3455 = vpop.f32.mrf.mxu0
    %v3456 = vpop.f32.mrf.mxu0
    %v3457 = vpop.f32.mrf.mxu0
    %3458 = vdwg.mxu0
    %3459 = vrot.lane.b32.xlu0 %v2971, 112
    %v3460 = vpop.permute.xlu0 %3459
    %3461 = vrot.lane.b32.xlu0 %v2976, 112
    %v3462 = vpop.permute.xlu0 %3461
    %v3464 = vsel %vm362, %v3460, 0
    %v3467 = vsel %vm362, %v3462, 0
    %3469 = vmatprep.subr.bf16.mxu0 0
    %3470 = vmatpush1.bf16.xpose.msra.mxu0 0
    %3471 = vmatprep.subr.bf16.mxu0 0
    %3472 = vmatpush1.bf16.xpose.msra.mxu0 0
    %3473 = vmatprep.subr.bf16.mxu0 0
    %3474 = vmatpush1.bf16.xpose.msra.mxu0 0
    %3475 = vmatprep.subr.bf16.mxu0 0
    %3476 = vmatpush1.bf16.xpose.msra.mxu0 0
    %3477 = vmatprep.subr.bf16.mxu0 0
    %3478 = vmatpush1.bf16.xpose.msra.mxu0 0
    %3479 = vmatprep.subr.bf16.mxu0 0
    %3480 = vmatpush1.bf16.xpose.msra.mxu0 0
    %3481 = vmatprep.subr.bf16.mxu0 0
    %3482 = vmatpush1.bf16.xpose.msra.mxu0 0
    %3483 = vmatprep.subr.bf16.mxu0 0
    %3484 = vmatpush1.bf16.xpose.msra.mxu0 %v3467
    %3485 = vmatprep.subr.bf16.mxu0 0
    %3486 = vmatpush2.bf16.xpose.msra.mxu0 0
    %3487 = vmatprep.subr.bf16.mxu0 0
    %3488 = vmatpush2.bf16.xpose.msra.mxu0 0
    %3489 = vmatprep.subr.bf16.mxu0 0
    %3490 = vmatpush2.bf16.xpose.msra.mxu0 0
    %3491 = vmatprep.subr.bf16.mxu0 0
    %3492 = vmatpush2.bf16.xpose.msra.mxu0 0
    %3493 = vmatprep.subr.bf16.mxu0 0
    %3494 = vmatpush2.bf16.xpose.msra.mxu0 0
    %3495 = vmatprep.subr.bf16.mxu0 0
    %3496 = vmatpush2.bf16.xpose.msra.mxu0 0
    %3497 = vmatprep.subr.bf16.mxu0 0
    %3498 = vmatpush2.bf16.xpose.msra.mxu0 0
    %3499 = vmatprep.subr.bf16.mxu0 0
    %3500 = vmatpush2.bf16.xpose.msra.mxu0 0
    %3501 = vmatprep.mubr.bf16.mxu0 0
    %3502 = vmatmul.mubr.bf16.gmra.mxu0 %v3464
    %v3503 = vpop.f32.mrf.mxu0
    %v3504 = vadd.f32 %v344, %v3503
    %v3505 = vpop.f32.mrf.mxu0
    %v3506 = vpop.f32.mrf.mxu0
    %v3507 = vpop.f32.mrf.mxu0
    %3508 = vdwg.mxu0
    %v3509 = vsel %vm362, %v3454, -inf
    %3510 = vmax.xlane.f32.xlu0 %v3509
    %v3511 = vpop.xlane.xlu0 %3510
    %v3512 = vsel %vm362, %v3504, -inf
    %3513 = vmax.xlane.f32.xlu0 %v3512
    %v3514 = vpop.xlane.xlu0 %3513
    %v3515 = vsub.f32 %v3454, %v3511
    %v3516 = vsub.f32 %v3504, %v3514
    %v3517 = vmul.f32 %v3515, 1.442695
    %v3518 = vpow.pop %v3517
    %v3519 = vmul.f32 %v3516, 1.442695
    %v3520 = vpow.pop %v3519
    %v3521 = vsel %vm362, %v3518, 0.0
    %3522 = vadd.xlane.f32.xlu0 %v3521
    %v3523 = vpop.xlane.xlu0 %3522
    %v3524 = vsel %vm362, %v3520, 0.0
    %3525 = vadd.xlane.f32.xlu0 %v3524
    %v3526 = vpop.xlane.xlu0 %3525
    %v3527 = vrcp.pop %v3523
    %v3528 = vrcp.pop %v3526
    %v3529 = vmul.f32 %v3518, %v3527
    %v3530 = vmul.f32 %v3520, %v3528
    %v3531 = vpack.c.bf16 %v3529, %v3529
    %v3532 = vpack.c.bf16 %v3530, %v3530
    %3533 = vrot.lane.b32.xlu0 %v2975, 80
    %v3534 = vpop.permute.xlu0 %3533
    %v3536 = vsel %vm362, %v3531, 0
    %v3539 = vsel %vm487, %v3534, 0
    %3541 = vmatprep.subr.bf16.mxu0 0
    %3542 = vmatpush1.bf16.msra.mxu0 0
    %3543 = vmatprep.subr.bf16.mxu0 0
    %3544 = vmatpush1.bf16.msra.mxu0 0
    %3545 = vmatprep.subr.bf16.mxu0 0
    %3546 = vmatpush1.bf16.msra.mxu0 0
    %3547 = vmatprep.subr.bf16.mxu0 0
    %3548 = vmatpush1.bf16.msra.mxu0 0
    %3549 = vmatprep.subr.bf16.mxu0 0
    %3550 = vmatpush1.bf16.msra.mxu0 0
    %3551 = vmatprep.subr.bf16.mxu0 0
    %3552 = vmatpush1.bf16.msra.mxu0 0
    %3553 = vmatprep.subr.bf16.mxu0 0
    %3554 = vmatpush1.bf16.msra.mxu0 0
    %3555 = vmatprep.subr.bf16.mxu0 0
    %3556 = vmatpush1.bf16.msra.mxu0 %v3539
    %3557 = vmatprep.subr.bf16.mxu0 0
    %3558 = vmatpush2.bf16.msra.mxu0 0
    %3559 = vmatprep.subr.bf16.mxu0 0
    %3560 = vmatpush2.bf16.msra.mxu0 0
    %3561 = vmatprep.subr.bf16.mxu0 0
    %3562 = vmatpush2.bf16.msra.mxu0 0
    %3563 = vmatprep.subr.bf16.mxu0 0
    %3564 = vmatpush2.bf16.msra.mxu0 0
    %3565 = vmatprep.subr.bf16.mxu0 0
    %3566 = vmatpush2.bf16.msra.mxu0 0
    %3567 = vmatprep.subr.bf16.mxu0 0
    %3568 = vmatpush2.bf16.msra.mxu0 0
    %3569 = vmatprep.subr.bf16.mxu0 0
    %3570 = vmatpush2.bf16.msra.mxu0 0
    %3571 = vmatprep.subr.bf16.mxu0 0
    %3572 = vmatpush2.bf16.msra.mxu0 0
    %3573 = vmatprep.mubr.bf16.mxu0 0
    %3574 = vmatmul.mubr.bf16.gmra.mxu0 %v3536
    %v3575 = vpop.f32.mrf.mxu0
    %v3576 = vadd.f32 0.0, %v3575
    %v3577 = vpop.f32.mrf.mxu0
    %v3578 = vpop.f32.mrf.mxu0
    %v3579 = vpop.f32.mrf.mxu0
    %3580 = vdwg.mxu0
    %3581 = vrot.lane.b32.xlu0 %v2976, 80
    %v3582 = vpop.permute.xlu0 %3581
    %v3584 = vsel %vm362, %v3532, 0
    %v3587 = vsel %vm487, %v3582, 0
    %3589 = vmatprep.subr.bf16.mxu0 0
    %3590 = vmatpush1.bf16.msra.mxu0 0
    %3591 = vmatprep.subr.bf16.mxu0 0
    %3592 = vmatpush1.bf16.msra.mxu0 0
    %3593 = vmatprep.subr.bf16.mxu0 0
    %3594 = vmatpush1.bf16.msra.mxu0 0
    %3595 = vmatprep.subr.bf16.mxu0 0
    %3596 = vmatpush1.bf16.msra.mxu0 0
    %3597 = vmatprep.subr.bf16.mxu0 0
    %3598 = vmatpush1.bf16.msra.mxu0 0
    %3599 = vmatprep.subr.bf16.mxu0 0
    %3600 = vmatpush1.bf16.msra.mxu0 0
    %3601 = vmatprep.subr.bf16.mxu0 0
    %3602 = vmatpush1.bf16.msra.mxu0 0
    %3603 = vmatprep.subr.bf16.mxu0 0
    %3604 = vmatpush1.bf16.msra.mxu0 %v3587
    %3605 = vmatprep.subr.bf16.mxu0 0
    %3606 = vmatpush2.bf16.msra.mxu0 0
    %3607 = vmatprep.subr.bf16.mxu0 0
    %3608 = vmatpush2.bf16.msra.mxu0 0
    %3609 = vmatprep.subr.bf16.mxu0 0
    %3610 = vmatpush2.bf16.msra.mxu0 0
    %3611 = vmatprep.subr.bf16.mxu0 0
    %3612 = vmatpush2.bf16.msra.mxu0 0
    %3613 = vmatprep.subr.bf16.mxu0 0
    %3614 = vmatpush2.bf16.msra.mxu0 0
    %3615 = vmatprep.subr.bf16.mxu0 0
    %3616 = vmatpush2.bf16.msra.mxu0 0
    %3617 = vmatprep.subr.bf16.mxu0 0
    %3618 = vmatpush2.bf16.msra.mxu0 0
    %3619 = vmatprep.subr.bf16.mxu0 0
    %3620 = vmatpush2.bf16.msra.mxu0 0
    %3621 = vmatprep.mubr.bf16.mxu0 0
    %3622 = vmatmul.mubr.bf16.gmra.mxu0 %v3584
    %v3623 = vpop.f32.mrf.mxu0
    %v3624 = vadd.f32 0.0, %v3623
    %v3625 = vpop.f32.mrf.mxu0
    %v3626 = vpop.f32.mrf.mxu0
    %v3627 = vpop.f32.mrf.mxu0
    %3628 = vdwg.mxu0
    %3629 = vrot.lane.b32.xlu0 %v2970, 104
    %v3630 = vpop.permute.xlu0 %3629
    %3631 = vrot.lane.b32.xlu0 %v2975, 104
    %v3632 = vpop.permute.xlu0 %3631
    %v3634 = vsel %vm362, %v3630, 0
    %v3637 = vsel %vm362, %v3632, 0
    %3639 = vmatprep.subr.bf16.mxu0 0
    %3640 = vmatpush1.bf16.xpose.msra.mxu0 0
    %3641 = vmatprep.subr.bf16.mxu0 0
    %3642 = vmatpush1.bf16.xpose.msra.mxu0 0
    %3643 = vmatprep.subr.bf16.mxu0 0
    %3644 = vmatpush1.bf16.xpose.msra.mxu0 0
    %3645 = vmatprep.subr.bf16.mxu0 0
    %3646 = vmatpush1.bf16.xpose.msra.mxu0 0
    %3647 = vmatprep.subr.bf16.mxu0 0
    %3648 = vmatpush1.bf16.xpose.msra.mxu0 0
    %3649 = vmatprep.subr.bf16.mxu0 0
    %3650 = vmatpush1.bf16.xpose.msra.mxu0 0
    %3651 = vmatprep.subr.bf16.mxu0 0
    %3652 = vmatpush1.bf16.xpose.msra.mxu0 0
    %3653 = vmatprep.subr.bf16.mxu0 0
    %3654 = vmatpush1.bf16.xpose.msra.mxu0 %v3637
    %3655 = vmatprep.subr.bf16.mxu0 0
    %3656 = vmatpush2.bf16.xpose.msra.mxu0 0
    %3657 = vmatprep.subr.bf16.mxu0 0
    %3658 = vmatpush2.bf16.xpose.msra.mxu0 0
    %3659 = vmatprep.subr.bf16.mxu0 0
    %3660 = vmatpush2.bf16.xpose.msra.mxu0 0
    %3661 = vmatprep.subr.bf16.mxu0 0
    %3662 = vmatpush2.bf16.xpose.msra.mxu0 0
    %3663 = vmatprep.subr.bf16.mxu0 0
    %3664 = vmatpush2.bf16.xpose.msra.mxu0 0
    %3665 = vmatprep.subr.bf16.mxu0 0
    %3666 = vmatpush2.bf16.xpose.msra.mxu0 0
    %3667 = vmatprep.subr.bf16.mxu0 0
    %3668 = vmatpush2.bf16.xpose.msra.mxu0 0
    %3669 = vmatprep.subr.bf16.mxu0 0
    %3670 = vmatpush2.bf16.xpose.msra.mxu0 0
    %3671 = vmatprep.mubr.bf16.mxu0 0
    %3672 = vmatmul.mubr.bf16.gmra.mxu0 %v3634
    %v3673 = vpop.f32.mrf.mxu0
    %v3674 = vadd.f32 %v340, %v3673
    %v3675 = vpop.f32.mrf.mxu0
    %v3676 = vpop.f32.mrf.mxu0
    %v3677 = vpop.f32.mrf.mxu0
    %3678 = vdwg.mxu0
    %3679 = vrot.lane.b32.xlu0 %v2971, 104
    %v3680 = vpop.permute.xlu0 %3679
    %3681 = vrot.lane.b32.xlu0 %v2976, 104
    %v3682 = vpop.permute.xlu0 %3681
    %v3684 = vsel %vm362, %v3680, 0
    %v3687 = vsel %vm362, %v3682, 0
    %3689 = vmatprep.subr.bf16.mxu0 0
    %3690 = vmatpush1.bf16.xpose.msra.mxu0 0
    %3691 = vmatprep.subr.bf16.mxu0 0
    %3692 = vmatpush1.bf16.xpose.msra.mxu0 0
    %3693 = vmatprep.subr.bf16.mxu0 0
    %3694 = vmatpush1.bf16.xpose.msra.mxu0 0
    %3695 = vmatprep.subr.bf16.mxu0 0
    %3696 = vmatpush1.bf16.xpose.msra.mxu0 0
    %3697 = vmatprep.subr.bf16.mxu0 0
    %3698 = vmatpush1.bf16.xpose.msra.mxu0 0
    %3699 = vmatprep.subr.bf16.mxu0 0
    %3700 = vmatpush1.bf16.xpose.msra.mxu0 0
    %3701 = vmatprep.subr.bf16.mxu0 0
    %3702 = vmatpush1.bf16.xpose.msra.mxu0 0
    %3703 = vmatprep.subr.bf16.mxu0 0
    %3704 = vmatpush1.bf16.xpose.msra.mxu0 %v3687
    %3705 = vmatprep.subr.bf16.mxu0 0
    %3706 = vmatpush2.bf16.xpose.msra.mxu0 0
    %3707 = vmatprep.subr.bf16.mxu0 0
    %3708 = vmatpush2.bf16.xpose.msra.mxu0 0
    %3709 = vmatprep.subr.bf16.mxu0 0
    %3710 = vmatpush2.bf16.xpose.msra.mxu0 0
    %3711 = vmatprep.subr.bf16.mxu0 0
    %3712 = vmatpush2.bf16.xpose.msra.mxu0 0
    %3713 = vmatprep.subr.bf16.mxu0 0
    %3714 = vmatpush2.bf16.xpose.msra.mxu0 0
    %3715 = vmatprep.subr.bf16.mxu0 0
    %3716 = vmatpush2.bf16.xpose.msra.mxu0 0
    %3717 = vmatprep.subr.bf16.mxu0 0
    %3718 = vmatpush2.bf16.xpose.msra.mxu0 0
    %3719 = vmatprep.subr.bf16.mxu0 0
    %3720 = vmatpush2.bf16.xpose.msra.mxu0 0
    %3721 = vmatprep.mubr.bf16.mxu0 0
    %3722 = vmatmul.mubr.bf16.gmra.mxu0 %v3684
    %v3723 = vpop.f32.mrf.mxu0
    %v3724 = vadd.f32 %v344, %v3723
    %v3725 = vpop.f32.mrf.mxu0
    %v3726 = vpop.f32.mrf.mxu0
    %v3727 = vpop.f32.mrf.mxu0
    %3728 = vdwg.mxu0
    %v3729 = vsel %vm362, %v3674, -inf
    %3730 = vmax.xlane.f32.xlu0 %v3729
    %v3731 = vpop.xlane.xlu0 %3730
    %v3732 = vsel %vm362, %v3724, -inf
    %3733 = vmax.xlane.f32.xlu0 %v3732
    %v3734 = vpop.xlane.xlu0 %3733
    %v3735 = vsub.f32 %v3674, %v3731
    %v3736 = vsub.f32 %v3724, %v3734
    %v3737 = vmul.f32 %v3735, 1.442695
    %v3738 = vpow.pop %v3737
    %v3739 = vmul.f32 %v3736, 1.442695
    %v3740 = vpow.pop %v3739
    %v3741 = vsel %vm362, %v3738, 0.0
    %3742 = vadd.xlane.f32.xlu0 %v3741
    %v3743 = vpop.xlane.xlu0 %3742
    %v3744 = vsel %vm362, %v3740, 0.0
    %3745 = vadd.xlane.f32.xlu0 %v3744
    %v3746 = vpop.xlane.xlu0 %3745
    %v3747 = vrcp.pop %v3743
    %v3748 = vrcp.pop %v3746
    %v3749 = vmul.f32 %v3738, %v3747
    %v3750 = vmul.f32 %v3740, %v3748
    %v3751 = vpack.c.bf16 %v3749, %v3749
    %v3752 = vpack.c.bf16 %v3750, %v3750
    %3753 = vrot.lane.b32.xlu0 %v2975, 72
    %v3754 = vpop.permute.xlu0 %3753
    %v3756 = vsel %vm362, %v3751, 0
    %v3759 = vsel %vm487, %v3754, 0
    %3761 = vmatprep.subr.bf16.mxu0 0
    %3762 = vmatpush1.bf16.msra.mxu0 0
    %3763 = vmatprep.subr.bf16.mxu0 0
    %3764 = vmatpush1.bf16.msra.mxu0 0
    %3765 = vmatprep.subr.bf16.mxu0 0
    %3766 = vmatpush1.bf16.msra.mxu0 0
    %3767 = vmatprep.subr.bf16.mxu0 0
    %3768 = vmatpush1.bf16.msra.mxu0 0
    %3769 = vmatprep.subr.bf16.mxu0 0
    %3770 = vmatpush1.bf16.msra.mxu0 0
    %3771 = vmatprep.subr.bf16.mxu0 0
    %3772 = vmatpush1.bf16.msra.mxu0 0
    %3773 = vmatprep.subr.bf16.mxu0 0
    %3774 = vmatpush1.bf16.msra.mxu0 0
    %3775 = vmatprep.subr.bf16.mxu0 0
    %3776 = vmatpush1.bf16.msra.mxu0 %v3759
    %3777 = vmatprep.subr.bf16.mxu0 0
    %3778 = vmatpush2.bf16.msra.mxu0 0
    %3779 = vmatprep.subr.bf16.mxu0 0
    %3780 = vmatpush2.bf16.msra.mxu0 0
    %3781 = vmatprep.subr.bf16.mxu0 0
    %3782 = vmatpush2.bf16.msra.mxu0 0
    %3783 = vmatprep.subr.bf16.mxu0 0
    %3784 = vmatpush2.bf16.msra.mxu0 0
    %3785 = vmatprep.subr.bf16.mxu0 0
    %3786 = vmatpush2.bf16.msra.mxu0 0
    %3787 = vmatprep.subr.bf16.mxu0 0
    %3788 = vmatpush2.bf16.msra.mxu0 0
    %3789 = vmatprep.subr.bf16.mxu0 0
    %3790 = vmatpush2.bf16.msra.mxu0 0
    %3791 = vmatprep.subr.bf16.mxu0 0
    %3792 = vmatpush2.bf16.msra.mxu0 0
    %3793 = vmatprep.mubr.bf16.mxu0 0
    %3794 = vmatmul.mubr.bf16.gmra.mxu0 %v3756
    %v3795 = vpop.f32.mrf.mxu0
    %v3796 = vadd.f32 0.0, %v3795
    %v3797 = vpop.f32.mrf.mxu0
    %v3798 = vpop.f32.mrf.mxu0
    %v3799 = vpop.f32.mrf.mxu0
    %3800 = vdwg.mxu0
    %3801 = vrot.lane.b32.xlu0 %v2976, 72
    %v3802 = vpop.permute.xlu0 %3801
    %v3804 = vsel %vm362, %v3752, 0
    %v3807 = vsel %vm487, %v3802, 0
    %3809 = vmatprep.subr.bf16.mxu0 0
    %3810 = vmatpush1.bf16.msra.mxu0 0
    %3811 = vmatprep.subr.bf16.mxu0 0
    %3812 = vmatpush1.bf16.msra.mxu0 0
    %3813 = vmatprep.subr.bf16.mxu0 0
    %3814 = vmatpush1.bf16.msra.mxu0 0
    %3815 = vmatprep.subr.bf16.mxu0 0
    %3816 = vmatpush1.bf16.msra.mxu0 0
    %3817 = vmatprep.subr.bf16.mxu0 0
    %3818 = vmatpush1.bf16.msra.mxu0 0
    %3819 = vmatprep.subr.bf16.mxu0 0
    %3820 = vmatpush1.bf16.msra.mxu0 0
    %3821 = vmatprep.subr.bf16.mxu0 0
    %3822 = vmatpush1.bf16.msra.mxu0 0
    %3823 = vmatprep.subr.bf16.mxu0 0
    %3824 = vmatpush1.bf16.msra.mxu0 %v3807
    %3825 = vmatprep.subr.bf16.mxu0 0
    %3826 = vmatpush2.bf16.msra.mxu0 0
    %3827 = vmatprep.subr.bf16.mxu0 0
    %3828 = vmatpush2.bf16.msra.mxu0 0
    %3829 = vmatprep.subr.bf16.mxu0 0
    %3830 = vmatpush2.bf16.msra.mxu0 0
    %3831 = vmatprep.subr.bf16.mxu0 0
    %3832 = vmatpush2.bf16.msra.mxu0 0
    %3833 = vmatprep.subr.bf16.mxu0 0
    %3834 = vmatpush2.bf16.msra.mxu0 0
    %3835 = vmatprep.subr.bf16.mxu0 0
    %3836 = vmatpush2.bf16.msra.mxu0 0
    %3837 = vmatprep.subr.bf16.mxu0 0
    %3838 = vmatpush2.bf16.msra.mxu0 0
    %3839 = vmatprep.subr.bf16.mxu0 0
    %3840 = vmatpush2.bf16.msra.mxu0 0
    %3841 = vmatprep.mubr.bf16.mxu0 0
    %3842 = vmatmul.mubr.bf16.gmra.mxu0 %v3804
    %v3843 = vpop.f32.mrf.mxu0
    %v3844 = vadd.f32 0.0, %v3843
    %v3845 = vpop.f32.mrf.mxu0
    %v3846 = vpop.f32.mrf.mxu0
    %v3847 = vpop.f32.mrf.mxu0
    %3848 = vdwg.mxu0
    %3851 = vrot.lane.b32.xlu0 %v3356, 8
    %v3852 = vpop.permute.xlu0 %3851
    %3853 = vrot.lane.b32.xlu0 %v3404, 8
    %v3854 = vpop.permute.xlu0 %3853
    %3859 = vrot.lane.b32.xlu0 %v3576, 16
    %v3860 = vpop.permute.xlu0 %3859
    %3861 = vrot.lane.b32.xlu0 %v3624, 16
    %v3862 = vpop.permute.xlu0 %3861
    %3867 = vrot.lane.b32.xlu0 %v3796, 24
    %v3868 = vpop.permute.xlu0 %3867
    %3869 = vrot.lane.b32.xlu0 %v3844, 24
    %v3870 = vpop.permute.xlu0 %3869
    %v3873 = vsel %vm362, %v3136, %v3852
    %v3874 = vsel %vm362, %v3184, %v3854
    %v3875 = vsel %vm164, %v3873, %v3860
    %v3876 = vsel %vm164, %v3874, %v3862
    %v3877 = vsel %vm1267, %v3875, %v3868
    %v3878 = vsel %vm1267, %v3876, %v3870
    %v3879 = vpack.c.bf16 %v3878, %v3877
    %v3880 = vld [vmem:[#allocation2 + $0xe8] sm:$0xf]
    %v3881 = vld [vmem:[#allocation2 + $0xec] sm:$0xf]
    %v3882 = vld [vmem:[#allocation2 + $0xf0] sm:$0xf]
    %v3883 = vld [vmem:[#allocation2 + $0xf4] sm:$0xf]
    %v3884 = vld [vmem:[%s1 + $0x17] sm:$0x1]
    %v3885 = vlaneseq
    %v3886 = vshrl.u32 %v3885, 7
    %v3887 = vsub.s32 0, %v3886
    %v3888 = vrot.slane %v3884, %v3887
    %v3893 = vunpack.c.l.b16 %v3880
    %v3894 = vunpack.c.l.b16 %v3881
    %v3895 = vunpack.c.l.b16 %v3882
    %v3896 = vunpack.c.l.b16 %v3883
    %v3897 = vpack.c.b16 %v3894, %v3893
    %v3898 = vpack.c.b16 %v3896, %v3895
    %v3902 = vsel %vm223, %v3879, 0
    %3904 = vmatprep.subr.bf16.mxu0 0
    %3905 = vmatpush1.bf16.msra.mxu0 0
    %3906 = vmatprep.subr.bf16.mxu0 0
    %3907 = vmatpush1.bf16.msra.mxu0 0
    %3908 = vmatprep.subr.bf16.mxu0 0
    %3909 = vmatpush1.bf16.msra.mxu0 0
    %3910 = vmatprep.subr.bf16.mxu0 0
    %3911 = vmatpush1.bf16.msra.mxu0 0
    %3912 = vmatprep.subr.bf16.mxu0 0
    %3913 = vmatpush1.bf16.msra.mxu0 0
    %3914 = vmatprep.subr.bf16.mxu0 0
    %3915 = vmatpush1.bf16.msra.mxu0 0
    %3916 = vmatprep.subr.bf16.mxu0 0
    %3917 = vmatpush1.bf16.msra.mxu0 %v3898
    %3918 = vmatprep.subr.bf16.mxu0 0
    %3919 = vmatpush1.bf16.msra.mxu0 %v3897
    %3920 = vmatprep.subr.bf16.mxu0 0
    %3921 = vmatpush2.bf16.msra.mxu0 0
    %3922 = vmatprep.subr.bf16.mxu0 0
    %3923 = vmatpush2.bf16.msra.mxu0 0
    %3924 = vmatprep.subr.bf16.mxu0 0
    %3925 = vmatpush2.bf16.msra.mxu0 0
    %3926 = vmatprep.subr.bf16.mxu0 0
    %3927 = vmatpush2.bf16.msra.mxu0 0
    %3928 = vmatprep.subr.bf16.mxu0 0
    %3929 = vmatpush2.bf16.msra.mxu0 0
    %3930 = vmatprep.subr.bf16.mxu0 0
    %3931 = vmatpush2.bf16.msra.mxu0 0
    %3932 = vmatprep.subr.bf16.mxu0 0
    %3933 = vmatpush2.bf16.msra.mxu0 0
    %3934 = vmatprep.subr.bf16.mxu0 0
    %3935 = vmatpush2.bf16.msra.mxu0 0
    %3936 = vmatprep.mubr.bf16.mxu0 0
    %3937 = vmatmul.mubr.bf16.gmra.mxu0 %v3902
    %v3938 = vpop.f32.mrf.mxu0
    %v3939 = vadd.f32 %v3888, %v3938
    %v3940 = vpop.f32.mrf.mxu0
    %v3941 = vpop.f32.mrf.mxu0
    %v3942 = vadd.f32 %v3888, %v3941
    %v3943 = vpop.f32.mrf.mxu0
    %3944 = vdwg.mxu0
    %v3945 = vadd.f32 %v2785, %v3939
    %v3946 = vadd.f32 %v2786, %v3942
    %v3947 = vsel %vm223, %v3945, 0.0
    %3948 = vadd.xlane.f32.xlu0 %v3947
    %v3949 = vpop.xlane.xlu0 %3948
    %v3950 = vsel %vm223, %v3946, 0.0
    %3951 = vadd.xlane.f32.xlu0 %v3950
    %v3952 = vpop.xlane.xlu0 %3951
    %v3953 = vmul.f32 %v3949, %v230
    %v3954 = vmul.f32 %v3952, %v230
    %v3955 = vmul.f32 %v3945, %v3945
    %v3956 = vmul.f32 %v3946, %v3946
    %v3957 = vsel %vm223, %v3955, 0.0
    %3958 = vadd.xlane.f32.xlu0 %v3957
    %v3959 = vpop.xlane.xlu0 %3958
    %v3960 = vsel %vm223, %v3956, 0.0
    %3961 = vadd.xlane.f32.xlu0 %v3960
    %v3962 = vpop.xlane.xlu0 %3961
    %v3963 = vmul.f32 %v3959, %v230
    %v3964 = vmul.f32 %v3962, %v230
    %v3965 = vmul.f32 %v3953, %v3953
    %v3966 = vmul.f32 %v3954, %v3954
    %v3967 = vsub.f32 %v3963, %v3965
    %v3968 = vsub.f32 %v3964, %v3966
    %v3969 = vsub.f32 %v3945, %v3953
    %v3970 = vsub.f32 %v3946, %v3954
    %v3971 = vadd.f32 %v3967, 1e-05
    %v3972 = vadd.f32 %v3968, 1e-05
    %v3973 = vrsqrt.pop %v3971
    %v3974 = vrsqrt.pop %v3972
    %v3975 = vmul.f32 %v3969, %v3973
    %v3976 = vmul.f32 %v3970, %v3974
    %v3977 = vld [vmem:[%s1 + $0xf] sm:$0x1]
    %v3978 = vlaneseq
    %v3979 = vshrl.u32 %v3978, 7
    %v3980 = vsub.s32 0, %v3979
    %v3981 = vrot.slane %v3977, %v3980
    %v3982 = vmul.f32 %v3975, %v3981
    %v3983 = vmul.f32 %v3976, %v3981
    %v3984 = vld [vmem:[%s1 + $0x10] sm:$0x1]
    %v3985 = vlaneseq
    %v3986 = vshrl.u32 %v3985, 7
    %v3987 = vsub.s32 0, %v3986
    %v3988 = vrot.slane %v3984, %v3987
    %v3989 = vadd.f32 %v3982, %v3988
    %v3990 = vadd.f32 %v3983, %v3988
    %v3991 = vpack.c.bf16 %v3990, %v3989
    %v3992 = vld [vmem:[#allocation2 + $0xf8] sm:$0xf]
    %v3993 = vld [vmem:[#allocation2 + $0xfc] sm:$0xf]
    %v3994 = vld [vmem:[#allocation2 + $0x100] sm:$0xf]
    %v3995 = vld [vmem:[#allocation2 + $0x104] sm:$0xf]
    %v3996 = vld [vmem:[%s1 + $0x18] sm:$0x1]
    %v3997 = vlaneseq
    %v3998 = vshrl.u32 %v3997, 7
    %v3999 = vsub.s32 0, %v3998
    %v4000 = vrot.slane %v3996, %v3999
    %v4005 = vunpack.c.l.b16 %v3992
    %v4006 = vunpack.c.l.b16 %v3993
    %v4007 = vunpack.c.l.b16 %v3994
    %v4008 = vunpack.c.l.b16 %v3995
    %v4009 = vpack.c.b16 %v4006, %v4005
    %v4010 = vpack.c.b16 %v4008, %v4007
    %v4014 = vsel %vm223, %v3991, 0
    %4016 = vmatprep.subr.bf16.mxu0 0
    %4017 = vmatpush1.bf16.msra.mxu0 0
    %4018 = vmatprep.subr.bf16.mxu0 0
    %4019 = vmatpush1.bf16.msra.mxu0 0
    %4020 = vmatprep.subr.bf16.mxu0 0
    %4021 = vmatpush1.bf16.msra.mxu0 0
    %4022 = vmatprep.subr.bf16.mxu0 0
    %4023 = vmatpush1.bf16.msra.mxu0 0
    %4024 = vmatprep.subr.bf16.mxu0 0
    %4025 = vmatpush1.bf16.msra.mxu0 0
    %4026 = vmatprep.subr.bf16.mxu0 0
    %4027 = vmatpush1.bf16.msra.mxu0 0
    %4028 = vmatprep.subr.bf16.mxu0 0
    %4029 = vmatpush1.bf16.msra.mxu0 %v4010
    %4030 = vmatprep.subr.bf16.mxu0 0
    %4031 = vmatpush1.bf16.msra.mxu0 %v4009
    %4032 = vmatprep.subr.bf16.mxu0 0
    %4033 = vmatpush2.bf16.msra.mxu0 0
    %4034 = vmatprep.subr.bf16.mxu0 0
    %4035 = vmatpush2.bf16.msra.mxu0 0
    %4036 = vmatprep.subr.bf16.mxu0 0
    %4037 = vmatpush2.bf16.msra.mxu0 0
    %4038 = vmatprep.subr.bf16.mxu0 0
    %4039 = vmatpush2.bf16.msra.mxu0 0
    %4040 = vmatprep.subr.bf16.mxu0 0
    %4041 = vmatpush2.bf16.msra.mxu0 0
    %4042 = vmatprep.subr.bf16.mxu0 0
    %4043 = vmatpush2.bf16.msra.mxu0 0
    %4044 = vmatprep.subr.bf16.mxu0 0
    %4045 = vmatpush2.bf16.msra.mxu0 0
    %4046 = vmatprep.subr.bf16.mxu0 0
    %4047 = vmatpush2.bf16.msra.mxu0 0
    %4048 = vmatprep.mubr.bf16.mxu0 0
    %4049 = vmatmul.mubr.bf16.gmra.mxu0 %v4014
    %v4050 = vpop.f32.mrf.mxu0
    %v4051 = vadd.f32 %v4000, %v4050
    %v4052 = vpop.f32.mrf.mxu0
    %v4053 = vpop.f32.mrf.mxu0
    %v4054 = vadd.f32 %v4000, %v4053
    %v4055 = vpop.f32.mrf.mxu0
    %4056 = vdwg.mxu0
    %v4057 = vmul.f32 %v4051, %v4051
    %v4058 = vmul.f32 %v4054, %v4054
    %v4059 = vmul.f32 %v4051, %v4057
    %v4060 = vmul.f32 %v4054, %v4058
    %v4061 = vmul.f32 %v4059, 0.044715
    %v4062 = vmul.f32 %v4060, 0.044715
    %v4063 = vadd.f32 %v4051, %v4061
    %v4064 = vadd.f32 %v4054, %v4062
    %v4065 = vmul.f32 %v4063, 0.7978846
    %v4066 = vmul.f32 %v4064, 0.7978846
    %v4067 = vtanh.pop %v4065
    %v4068 = vtanh.pop %v4066
    %v4069 = vadd.f32 %v4067, 1.0
    %v4070 = vadd.f32 %v4068, 1.0
    %v4071 = vmul.f32 %v4069, 0.5
    %v4072 = vmul.f32 %v4070, 0.5
    %v4073 = vmul.f32 %v4051, %v4071
    %v4074 = vmul.f32 %v4054, %v4072
    %v4075 = vpack.c.bf16 %v4074, %v4073
    %v4076 = vld [vmem:[#allocation2 + $0x108] sm:$0xf]
    %v4077 = vld [vmem:[#allocation2 + $0x10c] sm:$0xf]
    %v4078 = vld [vmem:[#allocation2 + $0x110] sm:$0xf]
    %v4079 = vld [vmem:[#allocation2 + $0x114] sm:$0xf]
    %v4080 = vld [vmem:[#allocation2 + $0x118] sm:$0xf]
    %v4081 = vld [vmem:[#allocation2 + $0x11c] sm:$0xf]
    %v4082 = vld [vmem:[#allocation2 + $0x120] sm:$0xf]
    %v4083 = vld [vmem:[#allocation2 + $0x124] sm:$0xf]
    %v4084 = vld [vmem:[%s1 + $0x19] sm:$0x1]
    %v4085 = vlaneseq
    %v4086 = vshrl.u32 %v4085, 7
    %v4087 = vsub.s32 0, %v4086
    %v4088 = vrot.slane %v4084, %v4087
    %v4097 = vunpack.c.l.b16 %v4076
    %v4098 = vunpack.c.l.b16 %v4077
    %v4099 = vunpack.c.l.b16 %v4078
    %v4100 = vunpack.c.l.b16 %v4079
    %v4101 = vunpack.c.l.b16 %v4080
    %v4102 = vunpack.c.l.b16 %v4081
    %v4103 = vunpack.c.l.b16 %v4082
    %v4104 = vunpack.c.l.b16 %v4083
    %v4105 = vpack.c.b16 %v4098, %v4097
    %v4106 = vpack.c.b16 %v4100, %v4099
    %v4107 = vpack.c.b16 %v4102, %v4101
    %v4108 = vpack.c.b16 %v4104, %v4103
    %v4114 = vsel %vm103, %v4075, 0
    %4116 = vmatprep.subr.bf16.mxu0 0
    %4117 = vmatpush1.bf16.msra.mxu0 0
    %4118 = vmatprep.subr.bf16.mxu0 0
    %4119 = vmatpush1.bf16.msra.mxu0 0
    %4120 = vmatprep.subr.bf16.mxu0 0
    %4121 = vmatpush1.bf16.msra.mxu0 0
    %4122 = vmatprep.subr.bf16.mxu0 0
    %4123 = vmatpush1.bf16.msra.mxu0 0
    %4124 = vmatprep.subr.bf16.mxu0 0
    %4125 = vmatpush1.bf16.msra.mxu0 %v4108
    %4126 = vmatprep.subr.bf16.mxu0 0
    %4127 = vmatpush1.bf16.msra.mxu0 %v4107
    %4128 = vmatprep.subr.bf16.mxu0 0
    %4129 = vmatpush1.bf16.msra.mxu0 %v4106
    %4130 = vmatprep.subr.bf16.mxu0 0
    %4131 = vmatpush1.bf16.msra.mxu0 %v4105
    %4132 = vmatprep.subr.bf16.mxu0 0
    %4133 = vmatpush2.bf16.msra.mxu0 0
    %4134 = vmatprep.subr.bf16.mxu0 0
    %4135 = vmatpush2.bf16.msra.mxu0 0
    %4136 = vmatprep.subr.bf16.mxu0 0
    %4137 = vmatpush2.bf16.msra.mxu0 0
    %4138 = vmatprep.subr.bf16.mxu0 0
    %4139 = vmatpush2.bf16.msra.mxu0 0
    %4140 = vmatprep.subr.bf16.mxu0 0
    %4141 = vmatpush2.bf16.msra.mxu0 0
    %4142 = vmatprep.subr.bf16.mxu0 0
    %4143 = vmatpush2.bf16.msra.mxu0 0
    %4144 = vmatprep.subr.bf16.mxu0 0
    %4145 = vmatpush2.bf16.msra.mxu0 0
    %4146 = vmatprep.subr.bf16.mxu0 0
    %4147 = vmatpush2.bf16.msra.mxu0 0
    %4148 = vmatprep.mubr.bf16.mxu0 0
    %4149 = vmatmul.mubr.bf16.gmra.mxu0 %v4114
    %v4150 = vpop.f32.mrf.mxu0
    %v4151 = vadd.f32 %v4088, %v4150
    %v4152 = vpop.f32.mrf.mxu0
    %v4153 = vpop.f32.mrf.mxu0
    %v4154 = vadd.f32 %v4088, %v4153
    %v4155 = vpop.f32.mrf.mxu0
    %4156 = vdwg.mxu0
    %v4157 = vadd.f32 %v3945, %v4151
    %v4158 = vadd.f32 %v3946, %v4154
    %v4159 = vsel %vm223, %v4157, 0.0
    %4160 = vadd.xlane.f32.xlu0 %v4159
    %v4161 = vpop.xlane.xlu0 %4160
    %v4162 = vsel %vm223, %v4158, 0.0
    %4163 = vadd.xlane.f32.xlu0 %v4162
    %v4164 = vpop.xlane.xlu0 %4163
    %v4165 = vmul.f32 %v4161, %v230
    %v4166 = vmul.f32 %v4164, %v230
    %v4167 = vmul.f32 %v4157, %v4157
    %v4168 = vmul.f32 %v4158, %v4158
    %v4169 = vsel %vm223, %v4167, 0.0
    %4170 = vadd.xlane.f32.xlu0 %v4169
    %v4171 = vpop.xlane.xlu0 %4170
    %v4172 = vsel %vm223, %v4168, 0.0
    %4173 = vadd.xlane.f32.xlu0 %v4172
    %v4174 = vpop.xlane.xlu0 %4173
    %v4175 = vmul.f32 %v4171, %v230
    %v4176 = vmul.f32 %v4174, %v230
    %v4177 = vmul.f32 %v4165, %v4165
    %v4178 = vmul.f32 %v4166, %v4166
    %v4179 = vsub.f32 %v4175, %v4177
    %v4180 = vsub.f32 %v4176, %v4178
    %v4181 = vsub.f32 %v4157, %v4165
    %v4182 = vsub.f32 %v4158, %v4166
    %v4183 = vadd.f32 %v4179, 1e-05
    %v4184 = vadd.f32 %v4180, 1e-05
    %v4185 = vrsqrt.pop %v4183
    %v4186 = vrsqrt.pop %v4184
    %v4187 = vmul.f32 %v4181, %v4185
    %v4188 = vmul.f32 %v4182, %v4186
    %v4189 = vld [vmem:[%s1 + $0x11] sm:$0x1]
    %v4190 = vlaneseq
    %v4191 = vshrl.u32 %v4190, 7
    %v4192 = vsub.s32 0, %v4191
    %v4193 = vrot.slane %v4189, %v4192
    %v4194 = vmul.f32 %v4187, %v4193
    %v4195 = vmul.f32 %v4188, %v4193
    %v4196 = vld [vmem:[%s1 + $0x12] sm:$0x1]
    %v4197 = vlaneseq
    %v4198 = vshrl.u32 %v4197, 7
    %v4199 = vsub.s32 0, %v4198
    %v4200 = vrot.slane %v4196, %v4199
    %v4201 = vadd.f32 %v4194, %v4200
    %v4202 = vadd.f32 %v4195, %v4200
    %v4203 = vpack.c.bf16 %v4202, %v4201
    %v4204 = vld [vmem:[#allocation2 + $0x128] sm:$0xf]
    %v4205 = vld [vmem:[#allocation2 + $0x12c] sm:$0xf]
    %v4206 = vld [vmem:[#allocation2 + $0x130] sm:$0xf]
    %v4207 = vld [vmem:[#allocation2 + $0x134] sm:$0xf]
    %v4208 = vld [vmem:[%s1 + $0x1a] sm:$0x1]
    %v4209 = vlaneseq
    %v4210 = vshrl.u32 %v4209, 7
    %v4211 = vsub.s32 0, %v4210
    %v4212 = vrot.slane %v4208, %v4211
    %v4217 = vunpack.c.l.b16 %v4204
    %v4218 = vunpack.c.l.b16 %v4205
    %v4219 = vunpack.c.l.b16 %v4206
    %v4220 = vunpack.c.l.b16 %v4207
    %v4221 = vpack.c.b16 %v4218, %v4217
    %v4222 = vpack.c.b16 %v4220, %v4219
    %v4226 = vsel %vm223, %v4203, 0
    %4228 = vmatprep.subr.bf16.mxu0 0
    %4229 = vmatpush1.bf16.msra.mxu0 0
    %4230 = vmatprep.subr.bf16.mxu0 0
    %4231 = vmatpush1.bf16.msra.mxu0 0
    %4232 = vmatprep.subr.bf16.mxu0 0
    %4233 = vmatpush1.bf16.msra.mxu0 0
    %4234 = vmatprep.subr.bf16.mxu0 0
    %4235 = vmatpush1.bf16.msra.mxu0 0
    %4236 = vmatprep.subr.bf16.mxu0 0
    %4237 = vmatpush1.bf16.msra.mxu0 0
    %4238 = vmatprep.subr.bf16.mxu0 0
    %4239 = vmatpush1.bf16.msra.mxu0 0
    %4240 = vmatprep.subr.bf16.mxu0 0
    %4241 = vmatpush1.bf16.msra.mxu0 %v4222
    %4242 = vmatprep.subr.bf16.mxu0 0
    %4243 = vmatpush1.bf16.msra.mxu0 %v4221
    %4244 = vmatprep.subr.bf16.mxu0 0
    %4245 = vmatpush2.bf16.msra.mxu0 0
    %4246 = vmatprep.subr.bf16.mxu0 0
    %4247 = vmatpush2.bf16.msra.mxu0 0
    %4248 = vmatprep.subr.bf16.mxu0 0
    %4249 = vmatpush2.bf16.msra.mxu0 0
    %4250 = vmatprep.subr.bf16.mxu0 0
    %4251 = vmatpush2.bf16.msra.mxu0 0
    %4252 = vmatprep.subr.bf16.mxu0 0
    %4253 = vmatpush2.bf16.msra.mxu0 0
    %4254 = vmatprep.subr.bf16.mxu0 0
    %4255 = vmatpush2.bf16.msra.mxu0 0
    %4256 = vmatprep.subr.bf16.mxu0 0
    %4257 = vmatpush2.bf16.msra.mxu0 0
    %4258 = vmatprep.subr.bf16.mxu0 0
    %4259 = vmatpush2.bf16.msra.mxu0 0
    %4260 = vmatprep.mubr.bf16.mxu0 0
    %4261 = vmatmul.mubr.bf16.gmra.mxu0 %v4226
    %v4262 = vpop.f32.mrf.mxu0
    %v4263 = vadd.f32 %v4212, %v4262
    %v4264 = vpop.f32.mrf.mxu0
    %v4265 = vpop.f32.mrf.mxu0
    %v4266 = vadd.f32 %v4212, %v4265
    %v4267 = vpop.f32.mrf.mxu0
    %4268 = vdwg.mxu0
    %4269 = vst [vmem:[%s5] sm:$0xff] %v4263
    %4270 = vst [vmem:[%s5 + $0x8] sm:$0xff] %v4266
    // Predicated region
    $region26: #{uniter_gpt_forward.1} parent=1 // pred_check
      _
    $region27: #{uniter_gpt_forward.1} parent=1 // pred_check_branch
      %4272 = sbr.rel (0) target = $region29
    $region28: #{uniter_gpt_forward.1} parent=1 // pred_region
      _
    $region29: #{uniter_gpt_forward.1} parent=1 // pred_fallthru
      _
    // Predicated region
    $region30: #{uniter_gpt_forward.1} parent=1 // pred_check
      _
    $region31: #{uniter_gpt_forward.1} parent=1 // pred_check_branch
      %4274 = sbr.rel (0) target = $region33
    $region32: #{uniter_gpt_forward.1} parent=1 // pred_region
      _
    $region33: #{uniter_gpt_forward.1} parent=1 // pred_fallthru
      _
    %4275 = vsyncpa [#allocation3], 1

</llo_original>
